<compile_context>
chip_gen: v6e
topology: v6e:2x2x1
jax: 0.10.0
libtpu: 0.0.40
codegen_flags: <defaults>
</compile_context>

<pallas_src>
import jax
import jax.numpy as jnp
from jax import lax
from jax.experimental import pallas as pl
from jax.experimental.pallas import tpu as pltpu

# ---- config (mirrors the PyTorch module's config, small shapes) -----------------
WORD_HIDDEN = 16            # config.word_hidden_size
SENT_HIDDEN = 16            # config.sentence_hidden_size      -> H
CTX_SIZE = 32               # config.sentence_context_size     -> C
NUM_SENTENCES = 8           # config.num_sentences             -> T
BATCH = 4                   # batch size                       -> B
IN_SIZE = 2 * WORD_HIDDEN   # GRU input size                   -> I
BN_EPS = 1e-5


# ================================ Pallas kernel ==================================
def s2d_kernel(x_ref, lens_ref, h0_ref, wih6_ref, bi6_ref, whh6_ref, bhn_ref,
               wp_ref, bp_ref, ctx_ref, gamma_ref, beta_ref, selg_ref, sele_ref,
               doc_ref, gi_scr, out_scr):
    TB, sixH = gi_scr.shape
    Bp = h0_ref.shape[0]
    T = TB // Bp
    twoH = out_scr.shape[1]
    H = twoH // 2
    f32 = jnp.float32

    # ---- 1) hoisted input-to-hidden gates: ONE [TB, I] @ [I, 6H] MXU push.
    #         (r/z gate biases already include the hoistable hidden-to-hidden biases)
    gi_scr[...] = (jnp.dot(x_ref[...], wih6_ref[...], preferred_element_type=f32)
                   + bi6_ref[...])

    lens = lens_ref[...]                                          # [Bp, 1] int32
    lane2 = lax.broadcasted_iota(jnp.int32, (Bp, twoH), 1)
    fwd_half = lane2 < H                                          # fwd lanes of [Bp,2H]

    whh6 = whh6_ref[...]                                          # [2H, 6H]
    bhn = bhn_ref[...]                                            # [1, 2H]

    # ---- 2) interleaved bidirectional GRU recurrence (static unroll over T):
    #         ONE [Bp,2H] @ [2H,6H] MXU push per step on the serial chain.
    h = h0_ref[...]                                               # [Bp, 2H] = [hf | hb]
    raw_f = [None] * T                                            # h_new whose fwd lanes are time t
    raw_b = [None] * T                                            # h_new whose bwd lanes are time t
    for s in range(T):
        tf, tb = s, T - 1 - s                                     # fwd time, bwd time
        gif = gi_scr[tf * Bp:(tf + 1) * Bp, :]                    # [Bp, 6H] (off the h-chain)
        gib = gi_scr[tb * Bp:(tb + 1) * Bp, :]
        gi_r = jnp.where(fwd_half, gif[:, 0:twoH], gib[:, 0:twoH])
        gi_z = jnp.where(fwd_half, gif[:, twoH:2 * twoH], gib[:, twoH:2 * twoH])
        gi_n = jnp.where(fwd_half, gif[:, 2 * twoH:], gib[:, 2 * twoH:])

        gh = jnp.dot(h, whh6, preferred_element_type=f32)         # ONE push per step
        r = jax.nn.sigmoid(gi_r + gh[:, 0:twoH])
        z = jax.nn.sigmoid(gi_z + gh[:, twoH:2 * twoH])
        n = jnp.tanh(gi_n + r * (gh[:, 2 * twoH:] + bhn))
        h_new = n + z * (h - n)                                   # both directions at once

        tvec = jnp.where(fwd_half, tf, tb)                        # per-lane time index
        h = jnp.where(lens > tvec, h_new, h)                      # freeze past length
        raw_f[tf] = h_new
        raw_b[tb] = h_new

    # combine directions into ONE output slab (fwd lanes | bwd lanes), zeroing
    # positions past each sequence's length (as pad_packed_sequence does).
    for t in range(T):
        blk = jnp.where(fwd_half, raw_f[t], raw_b[t])
        out_scr[t * Bp:(t + 1) * Bp, :] = jnp.where(lens > t, blk, 0.0)

    # ---- 3) sentence projection: ONE [TB, 2H] @ [2H, C] matmul ----
    out2d = out_scr[...]
    proj = jnp.dot(out2d, wp_ref[...], preferred_element_type=f32) + bp_ref[...]

    # ---- 4) BatchNorm (training stats) + ReLU + logits, vectorized over the slab ----
    rowsum = jnp.sum(proj, axis=1, keepdims=True)                 # [TB, 1]
    rowsq = jnp.sum(proj * proj, axis=1, keepdims=True)           # [TB, 1]
    selg = selg_ref[...]                                          # [T, TB] pre-scaled, real rows only
    mean = jnp.dot(selg, rowsum, preferred_element_type=f32)      # [T, 1]
    ex2 = jnp.dot(selg, rowsq, preferred_element_type=f32)        # [T, 1]
    rstd = lax.rsqrt(ex2 - mean * mean + BN_EPS)                  # biased var, one pass
    scale = gamma_ref[...] * rstd                                 # [T, 1]
    shift = beta_ref[...] - mean * scale                          # [T, 1]
    sele = sele_ref[...]                                          # [TB, T] group -> rows
    scale_rows = jnp.dot(sele, scale, preferred_element_type=f32)
    shift_rows = jnp.dot(sele, shift, preferred_element_type=f32)
    act = jnp.maximum(proj * scale_rows + shift_rows, 0.0)        # [TB, C]
    logits = jnp.dot(act, ctx_ref[...], preferred_element_type=f32)  # [TB, 1]

    # ---- 5) softmax over sentences (per batch row) ----
    lv = [logits[t * Bp:(t + 1) * Bp, :] for t in range(T)]       # [Bp, 1] each
    mx = lv[0]
    for t in range(1, T):
        mx = jnp.maximum(mx, lv[t])
    es = [jnp.exp(l - mx) for l in lv]
    den = es[0]
    for t in range(1, T):
        den = den + es[t]
    inv_den = pl.reciprocal(den, approx=True)                     # EUP, off the VALU path

    # ---- 6) attention-weighted sum of GRU outputs ----
    acc = (es[0] * inv_den) * out_scr[0:Bp, :]
    for t in range(1, T):
        acc = acc + (es[t] * inv_den) * out_scr[t * Bp:(t + 1) * Bp, :]
    doc_ref[...] = acc                                            # [Bp, 2H]


# ================================ wrapper =========================================
def _pack_inputs(x_bti, sent_hidden, lens, p, Bp):
    """Build packed kernel operands (plain XLA ops outside the kernel)."""
    B, T, _ = x_bti.shape
    H = p["whh_f"].shape[-1]
    C = p["wp"].shape[1]

    # time-major input, batch padded to Bp (full 8-sublane tiles): [T*Bp, I]
    x_tbi = jnp.transpose(x_bti, (1, 0, 2)).astype(jnp.float32)
    x_tbi = jnp.pad(x_tbi, ((0, 0), (0, Bp - B), (0, 0)))
    x2 = x_tbi.reshape(T * Bp, IN_SIZE)

    # input-to-hidden: [I, 6H]; gate-major chunks [r|z|n], fwd|bwd halves inside each
    wih6 = jnp.concatenate(
        [jnp.concatenate([p["wih_f"][g], p["wih_b"][g]], axis=1) for g in range(3)],
        axis=1)

    # biases: r/z absorb the hidden-to-hidden biases (summed before the sigmoid);
    # the n hidden bias stays separate (it is gated by r).
    def _b(g, with_hh):
        bf = p["bih_f"][g] + (p["bhh_f"][g] if with_hh else 0.0)
        bb = p["bih_b"][g] + (p["bhh_b"][g] if with_hh else 0.0)
        return jnp.concatenate([bf, bb], axis=1)                  # [1, 2H]
    bi6 = jnp.concatenate([_b(0, True), _b(1, True), _b(2, False)], axis=1)  # [1, 6H]
    bhn = jnp.concatenate([p["bhh_f"][2], p["bhh_b"][2]], axis=1)            # [1, 2H]

    # hidden-to-hidden: [2H, 6H], block-diagonal fwd/bwd inside each gate chunk
    def _h(g):
        w = jnp.zeros((2 * H, 2 * H), jnp.float32)
        w = w.at[0:H, 0:H].set(p["whh_f"][g])
        w = w.at[H:, H:].set(p["whh_b"][g])
        return w
    whh6 = jnp.concatenate([_h(0), _h(1), _h(2)], axis=1)                    # [2H, 6H]

    h0 = jnp.concatenate([sent_hidden[0], sent_hidden[1]], axis=-1)          # [B, 2H]
    h0 = jnp.pad(h0, ((0, Bp - B), (0, 0))).astype(jnp.float32)
    lens2 = jnp.pad(lens.astype(jnp.int32), (0, Bp - B)).reshape(Bp, 1)

    # BN selectors: group-sum over REAL batch rows only (pre-scaled by 1/(B*C)),
    # and group -> row expansion for applying the per-sentence scale/shift.
    rows = jnp.arange(T * Bp)
    t_of = rows // Bp
    b_of = rows % Bp
    selg = (((t_of[None, :] == jnp.arange(T)[:, None]) & (b_of[None, :] < B))
            .astype(jnp.float32)) / float(B * C)                             # [T, T*Bp]
    sele = (t_of[:, None] == jnp.arange(T)[None, :]).astype(jnp.float32)     # [T*Bp, T]

    return x2, lens2, h0, wih6, bi6, whh6, bhn, selg, sele


def sentence_to_document(x_bti, sent_hidden, lens, params):
    """x_bti: [B, T, I] (module layout), sent_hidden: [2, B, H], lens: [B] int32."""
    B, T, _ = x_bti.shape
    H = sent_hidden.shape[-1]
    C = params["wp"].shape[1]
    Bp = max(8, ((B + 7) // 8) * 8)   # pad batch to a full sublane tile

    x2, lens2, h0, wih6, bi6, whh6, bhn, selg, sele = _pack_inputs(
        x_bti, sent_hidden, lens, params, Bp)

    vmem = pl.BlockSpec(memory_space=pltpu.MemorySpace.VMEM)
    args = (x2, lens2, h0, wih6, bi6, whh6, bhn,
            params["wp"].astype(jnp.float32),
            params["bp"].astype(jnp.float32),
            params["ctx"].reshape(C, 1).astype(jnp.float32),
            params["gamma"].reshape(T, 1).astype(jnp.float32),
            params["beta"].reshape(T, 1).astype(jnp.float32),
            selg, sele)

    # TODO(synk): if this runs per document inside a larger model, add a "parallel"
    # grid axis over documents (weights index_map -> same block) to amortize launch
    # overhead and occupy both TensorCores on v7x.
    doc_pad = pl.pallas_call(
        s2d_kernel,
        out_shape=jax.ShapeDtypeStruct((Bp, 2 * H), jnp.float32),
        in_specs=[vmem] * len(args),
        out_specs=vmem,
        scratch_shapes=[
            pltpu.VMEM((T * Bp, 6 * H), jnp.float32),   # fused gi (r|z|n, fwd|bwd lanes)
            pltpu.VMEM((T * Bp, 2 * H), jnp.float32),   # GRU outputs (fwd|bwd lanes)
        ],
    )(*args)
    return doc_pad[:B]


# ================================ parameters ======================================
def init_params(key):
    ks = jax.random.split(key, 11)
    kg = float(1.0 / (SENT_HIDDEN ** 0.5))       # PyTorch GRU init range
    kl = float(1.0 / ((2 * SENT_HIDDEN) ** 0.5)) # PyTorch Linear init range

    def u(k, shape, lim):
        return jax.random.uniform(k, shape, jnp.float32, -lim, lim)

    return dict(
        wih_f=u(ks[0], (3, IN_SIZE, SENT_HIDDEN), kg),       # [r,z,n] input weights (fwd)
        whh_f=u(ks[1], (3, SENT_HIDDEN, SENT_HIDDEN), kg),
        bih_f=u(ks[2], (3, 1, SENT_HIDDEN), kg),
        bhh_f=u(ks[3], (3, 1, SENT_HIDDEN), kg),
        wih_b=u(ks[4], (3, IN_SIZE, SENT_HIDDEN), kg),       # backward direction
        whh_b=u(ks[5], (3, SENT_HIDDEN, SENT_HIDDEN), kg),
        bih_b=u(ks[6], (3, 1, SENT_HIDDEN), kg),
        bhh_b=u(ks[7], (3, 1, SENT_HIDDEN), kg),
        wp=u(ks[8], (2 * SENT_HIDDEN, CTX_SIZE), kl),        # Linear weight (transposed)
        bp=u(ks[9], (1, CTX_SIZE), kl),
        ctx=u(ks[10], (1, CTX_SIZE), 0.1),                   # sentence_context (row)
        gamma=jnp.ones((NUM_SENTENCES,), jnp.float32),       # BN affine (default init)
        beta=jnp.zeros((NUM_SENTENCES,), jnp.float32),
    )


# ================================ pure-JAX reference ==============================
def _ref_cell(x_t, h, wih, whh, bih, bhh):
    P = jax.lax.Precision.HIGHEST
    gi_r = jnp.dot(x_t, wih[0], precision=P) + bih[0]
    gi_z = jnp.dot(x_t, wih[1], precision=P) + bih[1]
    gi_n = jnp.dot(x_t, wih[2], precision=P) + bih[2]
    gh_r = jnp.dot(h, whh[0], precision=P) + bhh[0]
    gh_z = jnp.dot(h, whh[1], precision=P) + bhh[1]
    gh_n = jnp.dot(h, whh[2], precision=P) + bhh[2]
    r = jax.nn.sigmoid(gi_r + gh_r)
    z = jax.nn.sigmoid(gi_z + gh_z)
    n = jnp.tanh(gi_n + r * gh_n)
    return (1.0 - z) * n + z * h


def reference_forward(x_bti, sent_hidden, lens, p):
    P = jax.lax.Precision.HIGHEST
    B, T, _ = x_bti.shape
    mask = (jnp.arange(T)[None, :] < lens[:, None]).astype(jnp.float32)   # [B, T]

    hf = sent_hidden[0]
    outf = []
    for t in range(T):
        hn = _ref_cell(x_bti[:, t], hf, p["wih_f"], p["whh_f"], p["bih_f"], p["bhh_f"])
        m = mask[:, t][:, None]
        outf.append(m * hn)
        hf = m * hn + (1 - m) * hf
    outf = jnp.stack(outf, axis=1)

    hb = sent_hidden[1]
    outb = [None] * T
    for t in range(T - 1, -1, -1):
        hn = _ref_cell(x_bti[:, t], hb, p["wih_b"], p["whh_b"], p["bih_b"], p["bhh_b"])
        m = mask[:, t][:, None]
        outb[t] = m * hn
        hb = m * hn + (1 - m) * hb
    outb = jnp.stack(outb, axis=1)

    out = jnp.concatenate([outf, outb], axis=-1)                          # [B, T, 2H]
    proj = jnp.einsum("bth,hc->btc", out, p["wp"], precision=P) + p["bp"][0]
    mean = proj.mean(axis=(0, 2), keepdims=True)
    var = ((proj - mean) ** 2).mean(axis=(0, 2), keepdims=True)
    bn = (proj - mean) / jnp.sqrt(var + BN_EPS) * p["gamma"].reshape(1, T, 1) \
         + p["beta"].reshape(1, T, 1)
    act = jnp.maximum(bn, 0.0)
    logits = jnp.sum(act * p["ctx"].reshape(1, 1, -1), axis=-1)           # [B, T]
    att = jax.nn.softmax(logits, axis=1)
    return jnp.sum(out * att[:, :, None], axis=1)                         # [B, 2H]


# ================================ main ============================================
if __name__ == "__main__":
    key = jax.random.PRNGKey(0)
    kx, kh, kp = jax.random.split(key, 3)

    x = jax.random.normal(kx, (BATCH, NUM_SENTENCES, IN_SIZE), jnp.float32)
    sent_hidden = 0.1 * jax.random.normal(kh, (2, BATCH, SENT_HIDDEN), jnp.float32)
    lens = jnp.array([NUM_SENTENCES, NUM_SENTENCES - 2,
                      NUM_SENTENCES, NUM_SENTENCES - 3], jnp.int32)
    params = init_params(kp)

    doc = sentence_to_document(x, sent_hidden, lens, params)
    doc = jax.block_until_ready(doc)

    ref = reference_forward(x, sent_hidden, lens, params)
    assert doc.shape == (BATCH, 2 * SENT_HIDDEN)
    err = float(jnp.max(jnp.abs(doc - ref)))
    assert err < 5e-3, f"max abs err {err}"
    print("KERNEL_OK")
</pallas_src>

<mosaic_0001>
module attributes {stable_mosaic.version = 11 : i64} {
  func.func @s2d_kernel(%arg0: memref<64x32xf32, #tpu.memory_space<vmem>>, %arg1: memref<8x1xi32, #tpu.memory_space<vmem>>, %arg2: memref<8x32xf32, #tpu.memory_space<vmem>>, %arg3: memref<32x96xf32, #tpu.memory_space<vmem>>, %arg4: memref<1x96xf32, #tpu.memory_space<vmem>>, %arg5: memref<32x96xf32, #tpu.memory_space<vmem>>, %arg6: memref<1x32xf32, #tpu.memory_space<vmem>>, %arg7: memref<32x32xf32, #tpu.memory_space<vmem>>, %arg8: memref<1x32xf32, #tpu.memory_space<vmem>>, %arg9: memref<32x1xf32, #tpu.memory_space<vmem>>, %arg10: memref<8x1xf32, #tpu.memory_space<vmem>>, %arg11: memref<8x1xf32, #tpu.memory_space<vmem>>, %arg12: memref<8x64xf32, #tpu.memory_space<vmem>>, %arg13: memref<64x8xf32, #tpu.memory_space<vmem>>, %arg14: memref<8x32xf32, #tpu.memory_space<vmem>>, %arg15: memref<64x96xf32, #tpu.memory_space<vmem>>, %arg16: memref<64x32xf32, #tpu.memory_space<vmem>>) attributes {dimension_semantics = [], scalar_prefetch = 0 : i64, scratch_operands = 2 : i64, tpu.core_type = #tpu.core_type<tc>} {
    %c0 = arith.constant 0 : index
    %c0_0 = arith.constant 0 : index
    %0 = vector.load %arg0[%c0, %c0_0] : memref<64x32xf32, #tpu.memory_space<vmem>>, vector<64x32xf32>
    %c0_1 = arith.constant 0 : index
    %c0_2 = arith.constant 0 : index
    %1 = vector.load %arg3[%c0_1, %c0_2] : memref<32x96xf32, #tpu.memory_space<vmem>>, vector<32x96xf32>
    %cst = arith.constant dense<0.000000e+00> : vector<64x96xf32>
    %2 = tpu.matmul %0, %1, %cst {dimension_numbers = #tpu.dot_dimension_numbers<[1], [0], [0], [1], [0, 0, 1, 1], [], []>} : vector<64x32xf32>, vector<32x96xf32>, vector<64x96xf32> -> vector<64x96xf32>
    %c0_3 = arith.constant 0 : index
    %c0_4 = arith.constant 0 : index
    %3 = vector.load %arg4[%c0_3, %c0_4] : memref<1x96xf32, #tpu.memory_space<vmem>>, vector<1x96xf32>
    %4 = vector.broadcast %3 : vector<1x96xf32> to vector<64x96xf32>
    %5 = arith.addf %2, %4 : vector<64x96xf32>
    %c0_5 = arith.constant 0 : index
    %c0_6 = arith.constant 0 : index
    %6 = vector.load %arg15[%c0_5, %c0_6] : memref<64x96xf32, #tpu.memory_space<vmem>>, vector<64x96xf32>
    tpu.vector_store %arg15[%c0_5, %c0_6], %5 {strides = array<i32>} : memref<64x96xf32, #tpu.memory_space<vmem>>, vector<64x96xf32>,
    %c0_7 = arith.constant 0 : index
    %c0_8 = arith.constant 0 : index
    %7 = vector.load %arg1[%c0_7, %c0_8] : memref<8x1xi32, #tpu.memory_space<vmem>>, vector<8x1xi32>
    %8 = tpu.iota {dimensions = array<i32: 1>} : vector<8x32xi32>
    %c16_i32 = arith.constant 16 : i32
    %9 = vector.broadcast %c16_i32 : i32 to vector<8x32xi32>
    %10 = arith.cmpi slt, %8, %9 : vector<8x32xi32>
    %c0_9 = arith.constant 0 : index
    %c0_10 = arith.constant 0 : index
    %11 = vector.load %arg5[%c0_9, %c0_10] : memref<32x96xf32, #tpu.memory_space<vmem>>, vector<32x96xf32>
    %c0_11 = arith.constant 0 : index
    %c0_12 = arith.constant 0 : index
    %12 = vector.load %arg6[%c0_11, %c0_12] : memref<1x32xf32, #tpu.memory_space<vmem>>, vector<1x32xf32>
    %c0_13 = arith.constant 0 : index
    %c0_14 = arith.constant 0 : index
    %13 = vector.load %arg2[%c0_13, %c0_14] : memref<8x32xf32, #tpu.memory_space<vmem>>, vector<8x32xf32>
    %c0_15 = arith.constant 0 : index
    %c0_16 = arith.constant 0 : index
    %14 = vector.load %arg15[%c0_15, %c0_16] : memref<64x96xf32, #tpu.memory_space<vmem>>, vector<8x96xf32>
    %c56 = arith.constant 56 : index
    %c0_17 = arith.constant 0 : index
    %15 = vector.load %arg15[%c56, %c0_17] : memref<64x96xf32, #tpu.memory_space<vmem>>, vector<8x96xf32>
    %16 = vector.extract_strided_slice %14 {offsets = [0, 0], sizes = [8, 32], strides = [1, 1]} : vector<8x96xf32> to vector<8x32xf32>
    %17 = vector.extract_strided_slice %15 {offsets = [0, 0], sizes = [8, 32], strides = [1, 1]} : vector<8x96xf32> to vector<8x32xf32>
    %18 = arith.select %10, %16, %17 : vector<8x32xi1>, vector<8x32xf32>
    %19 = vector.extract_strided_slice %14 {offsets = [0, 32], sizes = [8, 32], strides = [1, 1]} : vector<8x96xf32> to vector<8x32xf32>
    %20 = vector.extract_strided_slice %15 {offsets = [0, 32], sizes = [8, 32], strides = [1, 1]} : vector<8x96xf32> to vector<8x32xf32>
    %21 = arith.select %10, %19, %20 : vector<8x32xi1>, vector<8x32xf32>
    %22 = vector.extract_strided_slice %14 {offsets = [0, 64], sizes = [8, 32], strides = [1, 1]} : vector<8x96xf32> to vector<8x32xf32>
    %23 = vector.extract_strided_slice %15 {offsets = [0, 64], sizes = [8, 32], strides = [1, 1]} : vector<8x96xf32> to vector<8x32xf32>
    %24 = arith.select %10, %22, %23 : vector<8x32xi1>, vector<8x32xf32>
    %cst_18 = arith.constant dense<0.000000e+00> : vector<8x96xf32>
    %25 = tpu.matmul %13, %11, %cst_18 {dimension_numbers = #tpu.dot_dimension_numbers<[1], [0], [0], [1], [0, 0, 1, 1], [], []>} : vector<8x32xf32>, vector<32x96xf32>, vector<8x96xf32> -> vector<8x96xf32>
    %26 = vector.extract_strided_slice %25 {offsets = [0, 0], sizes = [8, 32], strides = [1, 1]} : vector<8x96xf32> to vector<8x32xf32>
    %27 = arith.addf %18, %26 : vector<8x32xf32>
    %28 = arith.negf %27 : vector<8x32xf32>
    %29 = math.exp %28 : vector<8x32xf32>
    %cst_19 = arith.constant 1.000000e+00 : f32
    %30 = vector.broadcast %cst_19 : f32 to vector<8x32xf32>
    %31 = arith.addf %30, %29 : vector<8x32xf32>
    %32 = arith.divf %30, %31 : vector<8x32xf32>
    %33 = vector.extract_strided_slice %25 {offsets = [0, 32], sizes = [8, 32], strides = [1, 1]} : vector<8x96xf32> to vector<8x32xf32>
    %34 = arith.addf %21, %33 : vector<8x32xf32>
    %35 = arith.negf %34 : vector<8x32xf32>
    %36 = math.exp %35 : vector<8x32xf32>
    %cst_20 = arith.constant 1.000000e+00 : f32
    %37 = vector.broadcast %cst_20 : f32 to vector<8x32xf32>
    %38 = arith.addf %37, %36 : vector<8x32xf32>
    %39 = arith.divf %37, %38 : vector<8x32xf32>
    %40 = vector.extract_strided_slice %25 {offsets = [0, 64], sizes = [8, 32], strides = [1, 1]} : vector<8x96xf32> to vector<8x32xf32>
    %41 = vector.broadcast %12 : vector<1x32xf32> to vector<8x32xf32>
    %42 = arith.addf %40, %41 : vector<8x32xf32>
    %43 = arith.mulf %32, %42 : vector<8x32xf32>
    %44 = arith.addf %24, %43 : vector<8x32xf32>
    %45 = math.tanh %44 : vector<8x32xf32>
    %46 = arith.subf %13, %45 : vector<8x32xf32>
    %47 = arith.mulf %39, %46 : vector<8x32xf32>
    %48 = arith.addf %45, %47 : vector<8x32xf32>
    %c0_i32 = arith.constant 0 : i32
    %c7_i32 = arith.constant 7 : i32
    %49 = vector.broadcast %c0_i32 : i32 to vector<8x32xi32>
    %50 = vector.broadcast %c7_i32 : i32 to vector<8x32xi32>
    %51 = arith.select %10, %49, %50 : vector<8x32xi1>, vector<8x32xi32>
    %52 = vector.broadcast %7 : vector<8x1xi32> to vector<8x32xi32>
    %53 = arith.cmpi sgt, %52, %51 : vector<8x32xi32>
    %54 = arith.select %53, %48, %13 : vector<8x32xi1>, vector<8x32xf32>
    %c8 = arith.constant 8 : index
    %c0_21 = arith.constant 0 : index
    %55 = vector.load %arg15[%c8, %c0_21] : memref<64x96xf32, #tpu.memory_space<vmem>>, vector<8x96xf32>
    %c48 = arith.constant 48 : index
    %c0_22 = arith.constant 0 : index
    %56 = vector.load %arg15[%c48, %c0_22] : memref<64x96xf32, #tpu.memory_space<vmem>>, vector<8x96xf32>
    %57 = vector.extract_strided_slice %55 {offsets = [0, 0], sizes = [8, 32], strides = [1, 1]} : vector<8x96xf32> to vector<8x32xf32>
    %58 = vector.extract_strided_slice %56 {offsets = [0, 0], sizes = [8, 32], strides = [1, 1]} : vector<8x96xf32> to vector<8x32xf32>
    %59 = arith.select %10, %57, %58 : vector<8x32xi1>, vector<8x32xf32>
    %60 = vector.extract_strided_slice %55 {offsets = [0, 32], sizes = [8, 32], strides = [1, 1]} : vector<8x96xf32> to vector<8x32xf32>
    %61 = vector.extract_strided_slice %56 {offsets = [0, 32], sizes = [8, 32], strides = [1, 1]} : vector<8x96xf32> to vector<8x32xf32>
    %62 = arith.select %10, %60, %61 : vector<8x32xi1>, vector<8x32xf32>
    %63 = vector.extract_strided_slice %55 {offsets = [0, 64], sizes = [8, 32], strides = [1, 1]} : vector<8x96xf32> to vector<8x32xf32>
    %64 = vector.extract_strided_slice %56 {offsets = [0, 64], sizes = [8, 32], strides = [1, 1]} : vector<8x96xf32> to vector<8x32xf32>
    %65 = arith.select %10, %63, %64 : vector<8x32xi1>, vector<8x32xf32>
    %cst_23 = arith.constant dense<0.000000e+00> : vector<8x96xf32>
    %66 = tpu.matmul %54, %11, %cst_23 {dimension_numbers = #tpu.dot_dimension_numbers<[1], [0], [0], [1], [0, 0, 1, 1], [], []>} : vector<8x32xf32>, vector<32x96xf32>, vector<8x96xf32> -> vector<8x96xf32>
    %67 = vector.extract_strided_slice %66 {offsets = [0, 0], sizes = [8, 32], strides = [1, 1]} : vector<8x96xf32> to vector<8x32xf32>
    %68 = arith.addf %59, %67 : vector<8x32xf32>
    %69 = arith.negf %68 : vector<8x32xf32>
    %70 = math.exp %69 : vector<8x32xf32>
    %cst_24 = arith.constant 1.000000e+00 : f32
    %71 = vector.broadcast %cst_24 : f32 to vector<8x32xf32>
    %72 = arith.addf %71, %70 : vector<8x32xf32>
    %73 = arith.divf %71, %72 : vector<8x32xf32>
    %74 = vector.extract_strided_slice %66 {offsets = [0, 32], sizes = [8, 32], strides = [1, 1]} : vector<8x96xf32> to vector<8x32xf32>
    %75 = arith.addf %62, %74 : vector<8x32xf32>
    %76 = arith.negf %75 : vector<8x32xf32>
    %77 = math.exp %76 : vector<8x32xf32>
    %cst_25 = arith.constant 1.000000e+00 : f32
    %78 = vector.broadcast %cst_25 : f32 to vector<8x32xf32>
    %79 = arith.addf %78, %77 : vector<8x32xf32>
    %80 = arith.divf %78, %79 : vector<8x32xf32>
    %81 = vector.extract_strided_slice %66 {offsets = [0, 64], sizes = [8, 32], strides = [1, 1]} : vector<8x96xf32> to vector<8x32xf32>
    %82 = vector.broadcast %12 : vector<1x32xf32> to vector<8x32xf32>
    %83 = arith.addf %81, %82 : vector<8x32xf32>
    %84 = arith.mulf %73, %83 : vector<8x32xf32>
    %85 = arith.addf %65, %84 : vector<8x32xf32>
    %86 = math.tanh %85 : vector<8x32xf32>
    %87 = arith.subf %54, %86 : vector<8x32xf32>
    %88 = arith.mulf %80, %87 : vector<8x32xf32>
    %89 = arith.addf %86, %88 : vector<8x32xf32>
    %c1_i32 = arith.constant 1 : i32
    %c6_i32 = arith.constant 6 : i32
    %90 = vector.broadcast %c1_i32 : i32 to vector<8x32xi32>
    %91 = vector.broadcast %c6_i32 : i32 to vector<8x32xi32>
    %92 = arith.select %10, %90, %91 : vector<8x32xi1>, vector<8x32xi32>
    %93 = vector.broadcast %7 : vector<8x1xi32> to vector<8x32xi32>
    %94 = arith.cmpi sgt, %93, %92 : vector<8x32xi32>
    %95 = arith.select %94, %89, %54 : vector<8x32xi1>, vector<8x32xf32>
    %c16 = arith.constant 16 : index
    %c0_26 = arith.constant 0 : index
    %96 = vector.load %arg15[%c16, %c0_26] : memref<64x96xf32, #tpu.memory_space<vmem>>, vector<8x96xf32>
    %c40 = arith.constant 40 : index
    %c0_27 = arith.constant 0 : index
    %97 = vector.load %arg15[%c40, %c0_27] : memref<64x96xf32, #tpu.memory_space<vmem>>, vector<8x96xf32>
    %98 = vector.extract_strided_slice %96 {offsets = [0, 0], sizes = [8, 32], strides = [1, 1]} : vector<8x96xf32> to vector<8x32xf32>
    %99 = vector.extract_strided_slice %97 {offsets = [0, 0], sizes = [8, 32], strides = [1, 1]} : vector<8x96xf32> to vector<8x32xf32>
    %100 = arith.select %10, %98, %99 : vector<8x32xi1>, vector<8x32xf32>
    %101 = vector.extract_strided_slice %96 {offsets = [0, 32], sizes = [8, 32], strides = [1, 1]} : vector<8x96xf32> to vector<8x32xf32>
    %102 = vector.extract_strided_slice %97 {offsets = [0, 32], sizes = [8, 32], strides = [1, 1]} : vector<8x96xf32> to vector<8x32xf32>
    %103 = arith.select %10, %101, %102 : vector<8x32xi1>, vector<8x32xf32>
    %104 = vector.extract_strided_slice %96 {offsets = [0, 64], sizes = [8, 32], strides = [1, 1]} : vector<8x96xf32> to vector<8x32xf32>
    %105 = vector.extract_strided_slice %97 {offsets = [0, 64], sizes = [8, 32], strides = [1, 1]} : vector<8x96xf32> to vector<8x32xf32>
    %106 = arith.select %10, %104, %105 : vector<8x32xi1>, vector<8x32xf32>
    %cst_28 = arith.constant dense<0.000000e+00> : vector<8x96xf32>
    %107 = tpu.matmul %95, %11, %cst_28 {dimension_numbers = #tpu.dot_dimension_numbers<[1], [0], [0], [1], [0, 0, 1, 1], [], []>} : vector<8x32xf32>, vector<32x96xf32>, vector<8x96xf32> -> vector<8x96xf32>
    %108 = vector.extract_strided_slice %107 {offsets = [0, 0], sizes = [8, 32], strides = [1, 1]} : vector<8x96xf32> to vector<8x32xf32>
    %109 = arith.addf %100, %108 : vector<8x32xf32>
    %110 = arith.negf %109 : vector<8x32xf32>
    %111 = math.exp %110 : vector<8x32xf32>
    %cst_29 = arith.constant 1.000000e+00 : f32
    %112 = vector.broadcast %cst_29 : f32 to vector<8x32xf32>
    %113 = arith.addf %112, %111 : vector<8x32xf32>
    %114 = arith.divf %112, %113 : vector<8x32xf32>
    %115 = vector.extract_strided_slice %107 {offsets = [0, 32], sizes = [8, 32], strides = [1, 1]} : vector<8x96xf32> to vector<8x32xf32>
    %116 = arith.addf %103, %115 : vector<8x32xf32>
    %117 = arith.negf %116 : vector<8x32xf32>
    %118 = math.exp %117 : vector<8x32xf32>
    %cst_30 = arith.constant 1.000000e+00 : f32
    %119 = vector.broadcast %cst_30 : f32 to vector<8x32xf32>
    %120 = arith.addf %119, %118 : vector<8x32xf32>
    %121 = arith.divf %119, %120 : vector<8x32xf32>
    %122 = vector.extract_strided_slice %107 {offsets = [0, 64], sizes = [8, 32], strides = [1, 1]} : vector<8x96xf32> to vector<8x32xf32>
    %123 = vector.broadcast %12 : vector<1x32xf32> to vector<8x32xf32>
    %124 = arith.addf %122, %123 : vector<8x32xf32>
    %125 = arith.mulf %114, %124 : vector<8x32xf32>
    %126 = arith.addf %106, %125 : vector<8x32xf32>
    %127 = math.tanh %126 : vector<8x32xf32>
    %128 = arith.subf %95, %127 : vector<8x32xf32>
    %129 = arith.mulf %121, %128 : vector<8x32xf32>
    %130 = arith.addf %127, %129 : vector<8x32xf32>
    %c2_i32 = arith.constant 2 : i32
    %c5_i32 = arith.constant 5 : i32
    %131 = vector.broadcast %c2_i32 : i32 to vector<8x32xi32>
    %132 = vector.broadcast %c5_i32 : i32 to vector<8x32xi32>
    %133 = arith.select %10, %131, %132 : vector<8x32xi1>, vector<8x32xi32>
    %134 = vector.broadcast %7 : vector<8x1xi32> to vector<8x32xi32>
    %135 = arith.cmpi sgt, %134, %133 : vector<8x32xi32>
    %136 = arith.select %135, %130, %95 : vector<8x32xi1>, vector<8x32xf32>
    %c24 = arith.constant 24 : index
    %c0_31 = arith.constant 0 : index
    %137 = vector.load %arg15[%c24, %c0_31] : memref<64x96xf32, #tpu.memory_space<vmem>>, vector<8x96xf32>
    %c32 = arith.constant 32 : index
    %c0_32 = arith.constant 0 : index
    %138 = vector.load %arg15[%c32, %c0_32] : memref<64x96xf32, #tpu.memory_space<vmem>>, vector<8x96xf32>
    %139 = vector.extract_strided_slice %137 {offsets = [0, 0], sizes = [8, 32], strides = [1, 1]} : vector<8x96xf32> to vector<8x32xf32>
    %140 = vector.extract_strided_slice %138 {offsets = [0, 0], sizes = [8, 32], strides = [1, 1]} : vector<8x96xf32> to vector<8x32xf32>
    %141 = arith.select %10, %139, %140 : vector<8x32xi1>, vector<8x32xf32>
    %142 = vector.extract_strided_slice %137 {offsets = [0, 32], sizes = [8, 32], strides = [1, 1]} : vector<8x96xf32> to vector<8x32xf32>
    %143 = vector.extract_strided_slice %138 {offsets = [0, 32], sizes = [8, 32], strides = [1, 1]} : vector<8x96xf32> to vector<8x32xf32>
    %144 = arith.select %10, %142, %143 : vector<8x32xi1>, vector<8x32xf32>
    %145 = vector.extract_strided_slice %137 {offsets = [0, 64], sizes = [8, 32], strides = [1, 1]} : vector<8x96xf32> to vector<8x32xf32>
    %146 = vector.extract_strided_slice %138 {offsets = [0, 64], sizes = [8, 32], strides = [1, 1]} : vector<8x96xf32> to vector<8x32xf32>
    %147 = arith.select %10, %145, %146 : vector<8x32xi1>, vector<8x32xf32>
    %cst_33 = arith.constant dense<0.000000e+00> : vector<8x96xf32>
    %148 = tpu.matmul %136, %11, %cst_33 {dimension_numbers = #tpu.dot_dimension_numbers<[1], [0], [0], [1], [0, 0, 1, 1], [], []>} : vector<8x32xf32>, vector<32x96xf32>, vector<8x96xf32> -> vector<8x96xf32>
    %149 = vector.extract_strided_slice %148 {offsets = [0, 0], sizes = [8, 32], strides = [1, 1]} : vector<8x96xf32> to vector<8x32xf32>
    %150 = arith.addf %141, %149 : vector<8x32xf32>
    %151 = arith.negf %150 : vector<8x32xf32>
    %152 = math.exp %151 : vector<8x32xf32>
    %cst_34 = arith.constant 1.000000e+00 : f32
    %153 = vector.broadcast %cst_34 : f32 to vector<8x32xf32>
    %154 = arith.addf %153, %152 : vector<8x32xf32>
    %155 = arith.divf %153, %154 : vector<8x32xf32>
    %156 = vector.extract_strided_slice %148 {offsets = [0, 32], sizes = [8, 32], strides = [1, 1]} : vector<8x96xf32> to vector<8x32xf32>
    %157 = arith.addf %144, %156 : vector<8x32xf32>
    %158 = arith.negf %157 : vector<8x32xf32>
    %159 = math.exp %158 : vector<8x32xf32>
    %cst_35 = arith.constant 1.000000e+00 : f32
    %160 = vector.broadcast %cst_35 : f32 to vector<8x32xf32>
    %161 = arith.addf %160, %159 : vector<8x32xf32>
    %162 = arith.divf %160, %161 : vector<8x32xf32>
    %163 = vector.extract_strided_slice %148 {offsets = [0, 64], sizes = [8, 32], strides = [1, 1]} : vector<8x96xf32> to vector<8x32xf32>
    %164 = vector.broadcast %12 : vector<1x32xf32> to vector<8x32xf32>
    %165 = arith.addf %163, %164 : vector<8x32xf32>
    %166 = arith.mulf %155, %165 : vector<8x32xf32>
    %167 = arith.addf %147, %166 : vector<8x32xf32>
    %168 = math.tanh %167 : vector<8x32xf32>
    %169 = arith.subf %136, %168 : vector<8x32xf32>
    %170 = arith.mulf %162, %169 : vector<8x32xf32>
    %171 = arith.addf %168, %170 : vector<8x32xf32>
    %c3_i32 = arith.constant 3 : i32
    %c4_i32 = arith.constant 4 : i32
    %172 = vector.broadcast %c3_i32 : i32 to vector<8x32xi32>
    %173 = vector.broadcast %c4_i32 : i32 to vector<8x32xi32>
    %174 = arith.select %10, %172, %173 : vector<8x32xi1>, vector<8x32xi32>
    %175 = vector.broadcast %7 : vector<8x1xi32> to vector<8x32xi32>
    %176 = arith.cmpi sgt, %175, %174 : vector<8x32xi32>
    %177 = arith.select %176, %171, %136 : vector<8x32xi1>, vector<8x32xf32>
    %c32_36 = arith.constant 32 : index
    %c0_37 = arith.constant 0 : index
    %178 = vector.load %arg15[%c32_36, %c0_37] : memref<64x96xf32, #tpu.memory_space<vmem>>, vector<8x96xf32>
    %c24_38 = arith.constant 24 : index
    %c0_39 = arith.constant 0 : index
    %179 = vector.load %arg15[%c24_38, %c0_39] : memref<64x96xf32, #tpu.memory_space<vmem>>, vector<8x96xf32>
    %180 = vector.extract_strided_slice %178 {offsets = [0, 0], sizes = [8, 32], strides = [1, 1]} : vector<8x96xf32> to vector<8x32xf32>
    %181 = vector.extract_strided_slice %179 {offsets = [0, 0], sizes = [8, 32], strides = [1, 1]} : vector<8x96xf32> to vector<8x32xf32>
    %182 = arith.select %10, %180, %181 : vector<8x32xi1>, vector<8x32xf32>
    %183 = vector.extract_strided_slice %178 {offsets = [0, 32], sizes = [8, 32], strides = [1, 1]} : vector<8x96xf32> to vector<8x32xf32>
    %184 = vector.extract_strided_slice %179 {offsets = [0, 32], sizes = [8, 32], strides = [1, 1]} : vector<8x96xf32> to vector<8x32xf32>
    %185 = arith.select %10, %183, %184 : vector<8x32xi1>, vector<8x32xf32>
    %186 = vector.extract_strided_slice %178 {offsets = [0, 64], sizes = [8, 32], strides = [1, 1]} : vector<8x96xf32> to vector<8x32xf32>
    %187 = vector.extract_strided_slice %179 {offsets = [0, 64], sizes = [8, 32], strides = [1, 1]} : vector<8x96xf32> to vector<8x32xf32>
    %188 = arith.select %10, %186, %187 : vector<8x32xi1>, vector<8x32xf32>
    %cst_40 = arith.constant dense<0.000000e+00> : vector<8x96xf32>
    %189 = tpu.matmul %177, %11, %cst_40 {dimension_numbers = #tpu.dot_dimension_numbers<[1], [0], [0], [1], [0, 0, 1, 1], [], []>} : vector<8x32xf32>, vector<32x96xf32>, vector<8x96xf32> -> vector<8x96xf32>
    %190 = vector.extract_strided_slice %189 {offsets = [0, 0], sizes = [8, 32], strides = [1, 1]} : vector<8x96xf32> to vector<8x32xf32>
    %191 = arith.addf %182, %190 : vector<8x32xf32>
    %192 = arith.negf %191 : vector<8x32xf32>
    %193 = math.exp %192 : vector<8x32xf32>
    %cst_41 = arith.constant 1.000000e+00 : f32
    %194 = vector.broadcast %cst_41 : f32 to vector<8x32xf32>
    %195 = arith.addf %194, %193 : vector<8x32xf32>
    %196 = arith.divf %194, %195 : vector<8x32xf32>
    %197 = vector.extract_strided_slice %189 {offsets = [0, 32], sizes = [8, 32], strides = [1, 1]} : vector<8x96xf32> to vector<8x32xf32>
    %198 = arith.addf %185, %197 : vector<8x32xf32>
    %199 = arith.negf %198 : vector<8x32xf32>
    %200 = math.exp %199 : vector<8x32xf32>
    %cst_42 = arith.constant 1.000000e+00 : f32
    %201 = vector.broadcast %cst_42 : f32 to vector<8x32xf32>
    %202 = arith.addf %201, %200 : vector<8x32xf32>
    %203 = arith.divf %201, %202 : vector<8x32xf32>
    %204 = vector.extract_strided_slice %189 {offsets = [0, 64], sizes = [8, 32], strides = [1, 1]} : vector<8x96xf32> to vector<8x32xf32>
    %205 = vector.broadcast %12 : vector<1x32xf32> to vector<8x32xf32>
    %206 = arith.addf %204, %205 : vector<8x32xf32>
    %207 = arith.mulf %196, %206 : vector<8x32xf32>
    %208 = arith.addf %188, %207 : vector<8x32xf32>
    %209 = math.tanh %208 : vector<8x32xf32>
    %210 = arith.subf %177, %209 : vector<8x32xf32>
    %211 = arith.mulf %203, %210 : vector<8x32xf32>
    %212 = arith.addf %209, %211 : vector<8x32xf32>
    %c4_i32_43 = arith.constant 4 : i32
    %c3_i32_44 = arith.constant 3 : i32
    %213 = vector.broadcast %c4_i32_43 : i32 to vector<8x32xi32>
    %214 = vector.broadcast %c3_i32_44 : i32 to vector<8x32xi32>
    %215 = arith.select %10, %213, %214 : vector<8x32xi1>, vector<8x32xi32>
    %216 = vector.broadcast %7 : vector<8x1xi32> to vector<8x32xi32>
    %217 = arith.cmpi sgt, %216, %215 : vector<8x32xi32>
    %218 = arith.select %217, %212, %177 : vector<8x32xi1>, vector<8x32xf32>
    %c40_45 = arith.constant 40 : index
    %c0_46 = arith.constant 0 : index
    %219 = vector.load %arg15[%c40_45, %c0_46] : memref<64x96xf32, #tpu.memory_space<vmem>>, vector<8x96xf32>
    %c16_47 = arith.constant 16 : index
    %c0_48 = arith.constant 0 : index
    %220 = vector.load %arg15[%c16_47, %c0_48] : memref<64x96xf32, #tpu.memory_space<vmem>>, vector<8x96xf32>
    %221 = vector.extract_strided_slice %219 {offsets = [0, 0], sizes = [8, 32], strides = [1, 1]} : vector<8x96xf32> to vector<8x32xf32>
    %222 = vector.extract_strided_slice %220 {offsets = [0, 0], sizes = [8, 32], strides = [1, 1]} : vector<8x96xf32> to vector<8x32xf32>
    %223 = arith.select %10, %221, %222 : vector<8x32xi1>, vector<8x32xf32>
    %224 = vector.extract_strided_slice %219 {offsets = [0, 32], sizes = [8, 32], strides = [1, 1]} : vector<8x96xf32> to vector<8x32xf32>
    %225 = vector.extract_strided_slice %220 {offsets = [0, 32], sizes = [8, 32], strides = [1, 1]} : vector<8x96xf32> to vector<8x32xf32>
    %226 = arith.select %10, %224, %225 : vector<8x32xi1>, vector<8x32xf32>
    %227 = vector.extract_strided_slice %219 {offsets = [0, 64], sizes = [8, 32], strides = [1, 1]} : vector<8x96xf32> to vector<8x32xf32>
    %228 = vector.extract_strided_slice %220 {offsets = [0, 64], sizes = [8, 32], strides = [1, 1]} : vector<8x96xf32> to vector<8x32xf32>
    %229 = arith.select %10, %227, %228 : vector<8x32xi1>, vector<8x32xf32>
    %cst_49 = arith.constant dense<0.000000e+00> : vector<8x96xf32>
    %230 = tpu.matmul %218, %11, %cst_49 {dimension_numbers = #tpu.dot_dimension_numbers<[1], [0], [0], [1], [0, 0, 1, 1], [], []>} : vector<8x32xf32>, vector<32x96xf32>, vector<8x96xf32> -> vector<8x96xf32>
    %231 = vector.extract_strided_slice %230 {offsets = [0, 0], sizes = [8, 32], strides = [1, 1]} : vector<8x96xf32> to vector<8x32xf32>
    %232 = arith.addf %223, %231 : vector<8x32xf32>
    %233 = arith.negf %232 : vector<8x32xf32>
    %234 = math.exp %233 : vector<8x32xf32>
    %cst_50 = arith.constant 1.000000e+00 : f32
    %235 = vector.broadcast %cst_50 : f32 to vector<8x32xf32>
    %236 = arith.addf %235, %234 : vector<8x32xf32>
    %237 = arith.divf %235, %236 : vector<8x32xf32>
    %238 = vector.extract_strided_slice %230 {offsets = [0, 32], sizes = [8, 32], strides = [1, 1]} : vector<8x96xf32> to vector<8x32xf32>
    %239 = arith.addf %226, %238 : vector<8x32xf32>
    %240 = arith.negf %239 : vector<8x32xf32>
    %241 = math.exp %240 : vector<8x32xf32>
    %cst_51 = arith.constant 1.000000e+00 : f32
    %242 = vector.broadcast %cst_51 : f32 to vector<8x32xf32>
    %243 = arith.addf %242, %241 : vector<8x32xf32>
    %244 = arith.divf %242, %243 : vector<8x32xf32>
    %245 = vector.extract_strided_slice %230 {offsets = [0, 64], sizes = [8, 32], strides = [1, 1]} : vector<8x96xf32> to vector<8x32xf32>
    %246 = vector.broadcast %12 : vector<1x32xf32> to vector<8x32xf32>
    %247 = arith.addf %245, %246 : vector<8x32xf32>
    %248 = arith.mulf %237, %247 : vector<8x32xf32>
    %249 = arith.addf %229, %248 : vector<8x32xf32>
    %250 = math.tanh %249 : vector<8x32xf32>
    %251 = arith.subf %218, %250 : vector<8x32xf32>
    %252 = arith.mulf %244, %251 : vector<8x32xf32>
    %253 = arith.addf %250, %252 : vector<8x32xf32>
    %c5_i32_52 = arith.constant 5 : i32
    %c2_i32_53 = arith.constant 2 : i32
    %254 = vector.broadcast %c5_i32_52 : i32 to vector<8x32xi32>
    %255 = vector.broadcast %c2_i32_53 : i32 to vector<8x32xi32>
    %256 = arith.select %10, %254, %255 : vector<8x32xi1>, vector<8x32xi32>
    %257 = vector.broadcast %7 : vector<8x1xi32> to vector<8x32xi32>
    %258 = arith.cmpi sgt, %257, %256 : vector<8x32xi32>
    %259 = arith.select %258, %253, %218 : vector<8x32xi1>, vector<8x32xf32>
    %c48_54 = arith.constant 48 : index
    %c0_55 = arith.constant 0 : index
    %260 = vector.load %arg15[%c48_54, %c0_55] : memref<64x96xf32, #tpu.memory_space<vmem>>, vector<8x96xf32>
    %c8_56 = arith.constant 8 : index
    %c0_57 = arith.constant 0 : index
    %261 = vector.load %arg15[%c8_56, %c0_57] : memref<64x96xf32, #tpu.memory_space<vmem>>, vector<8x96xf32>
    %262 = vector.extract_strided_slice %260 {offsets = [0, 0], sizes = [8, 32], strides = [1, 1]} : vector<8x96xf32> to vector<8x32xf32>
    %263 = vector.extract_strided_slice %261 {offsets = [0, 0], sizes = [8, 32], strides = [1, 1]} : vector<8x96xf32> to vector<8x32xf32>
    %264 = arith.select %10, %262, %263 : vector<8x32xi1>, vector<8x32xf32>
    %265 = vector.extract_strided_slice %260 {offsets = [0, 32], sizes = [8, 32], strides = [1, 1]} : vector<8x96xf32> to vector<8x32xf32>
    %266 = vector.extract_strided_slice %261 {offsets = [0, 32], sizes = [8, 32], strides = [1, 1]} : vector<8x96xf32> to vector<8x32xf32>
    %267 = arith.select %10, %265, %266 : vector<8x32xi1>, vector<8x32xf32>
    %268 = vector.extract_strided_slice %260 {offsets = [0, 64], sizes = [8, 32], strides = [1, 1]} : vector<8x96xf32> to vector<8x32xf32>
    %269 = vector.extract_strided_slice %261 {offsets = [0, 64], sizes = [8, 32], strides = [1, 1]} : vector<8x96xf32> to vector<8x32xf32>
    %270 = arith.select %10, %268, %269 : vector<8x32xi1>, vector<8x32xf32>
    %cst_58 = arith.constant dense<0.000000e+00> : vector<8x96xf32>
    %271 = tpu.matmul %259, %11, %cst_58 {dimension_numbers = #tpu.dot_dimension_numbers<[1], [0], [0], [1], [0, 0, 1, 1], [], []>} : vector<8x32xf32>, vector<32x96xf32>, vector<8x96xf32> -> vector<8x96xf32>
    %272 = vector.extract_strided_slice %271 {offsets = [0, 0], sizes = [8, 32], strides = [1, 1]} : vector<8x96xf32> to vector<8x32xf32>
    %273 = arith.addf %264, %272 : vector<8x32xf32>
    %274 = arith.negf %273 : vector<8x32xf32>
    %275 = math.exp %274 : vector<8x32xf32>
    %cst_59 = arith.constant 1.000000e+00 : f32
    %276 = vector.broadcast %cst_59 : f32 to vector<8x32xf32>
    %277 = arith.addf %276, %275 : vector<8x32xf32>
    %278 = arith.divf %276, %277 : vector<8x32xf32>
    %279 = vector.extract_strided_slice %271 {offsets = [0, 32], sizes = [8, 32], strides = [1, 1]} : vector<8x96xf32> to vector<8x32xf32>
    %280 = arith.addf %267, %279 : vector<8x32xf32>
    %281 = arith.negf %280 : vector<8x32xf32>
    %282 = math.exp %281 : vector<8x32xf32>
    %cst_60 = arith.constant 1.000000e+00 : f32
    %283 = vector.broadcast %cst_60 : f32 to vector<8x32xf32>
    %284 = arith.addf %283, %282 : vector<8x32xf32>
    %285 = arith.divf %283, %284 : vector<8x32xf32>
    %286 = vector.extract_strided_slice %271 {offsets = [0, 64], sizes = [8, 32], strides = [1, 1]} : vector<8x96xf32> to vector<8x32xf32>
    %287 = vector.broadcast %12 : vector<1x32xf32> to vector<8x32xf32>
    %288 = arith.addf %286, %287 : vector<8x32xf32>
    %289 = arith.mulf %278, %288 : vector<8x32xf32>
    %290 = arith.addf %270, %289 : vector<8x32xf32>
    %291 = math.tanh %290 : vector<8x32xf32>
    %292 = arith.subf %259, %291 : vector<8x32xf32>
    %293 = arith.mulf %285, %292 : vector<8x32xf32>
    %294 = arith.addf %291, %293 : vector<8x32xf32>
    %c6_i32_61 = arith.constant 6 : i32
    %c1_i32_62 = arith.constant 1 : i32
    %295 = vector.broadcast %c6_i32_61 : i32 to vector<8x32xi32>
    %296 = vector.broadcast %c1_i32_62 : i32 to vector<8x32xi32>
    %297 = arith.select %10, %295, %296 : vector<8x32xi1>, vector<8x32xi32>
    %298 = vector.broadcast %7 : vector<8x1xi32> to vector<8x32xi32>
    %299 = arith.cmpi sgt, %298, %297 : vector<8x32xi32>
    %300 = arith.select %299, %294, %259 : vector<8x32xi1>, vector<8x32xf32>
    %c56_63 = arith.constant 56 : index
    %c0_64 = arith.constant 0 : index
    %301 = vector.load %arg15[%c56_63, %c0_64] : memref<64x96xf32, #tpu.memory_space<vmem>>, vector<8x96xf32>
    %c0_65 = arith.constant 0 : index
    %c0_66 = arith.constant 0 : index
    %302 = vector.load %arg15[%c0_65, %c0_66] : memref<64x96xf32, #tpu.memory_space<vmem>>, vector<8x96xf32>
    %303 = vector.extract_strided_slice %301 {offsets = [0, 0], sizes = [8, 32], strides = [1, 1]} : vector<8x96xf32> to vector<8x32xf32>
    %304 = vector.extract_strided_slice %302 {offsets = [0, 0], sizes = [8, 32], strides = [1, 1]} : vector<8x96xf32> to vector<8x32xf32>
    %305 = arith.select %10, %303, %304 : vector<8x32xi1>, vector<8x32xf32>
    %306 = vector.extract_strided_slice %301 {offsets = [0, 32], sizes = [8, 32], strides = [1, 1]} : vector<8x96xf32> to vector<8x32xf32>
    %307 = vector.extract_strided_slice %302 {offsets = [0, 32], sizes = [8, 32], strides = [1, 1]} : vector<8x96xf32> to vector<8x32xf32>
    %308 = arith.select %10, %306, %307 : vector<8x32xi1>, vector<8x32xf32>
    %309 = vector.extract_strided_slice %301 {offsets = [0, 64], sizes = [8, 32], strides = [1, 1]} : vector<8x96xf32> to vector<8x32xf32>
    %310 = vector.extract_strided_slice %302 {offsets = [0, 64], sizes = [8, 32], strides = [1, 1]} : vector<8x96xf32> to vector<8x32xf32>
    %311 = arith.select %10, %309, %310 : vector<8x32xi1>, vector<8x32xf32>
    %cst_67 = arith.constant dense<0.000000e+00> : vector<8x96xf32>
    %312 = tpu.matmul %300, %11, %cst_67 {dimension_numbers = #tpu.dot_dimension_numbers<[1], [0], [0], [1], [0, 0, 1, 1], [], []>} : vector<8x32xf32>, vector<32x96xf32>, vector<8x96xf32> -> vector<8x96xf32>
    %313 = vector.extract_strided_slice %312 {offsets = [0, 0], sizes = [8, 32], strides = [1, 1]} : vector<8x96xf32> to vector<8x32xf32>
    %314 = arith.addf %305, %313 : vector<8x32xf32>
    %315 = arith.negf %314 : vector<8x32xf32>
    %316 = math.exp %315 : vector<8x32xf32>
    %cst_68 = arith.constant 1.000000e+00 : f32
    %317 = vector.broadcast %cst_68 : f32 to vector<8x32xf32>
    %318 = arith.addf %317, %316 : vector<8x32xf32>
    %319 = arith.divf %317, %318 : vector<8x32xf32>
    %320 = vector.extract_strided_slice %312 {offsets = [0, 32], sizes = [8, 32], strides = [1, 1]} : vector<8x96xf32> to vector<8x32xf32>
    %321 = arith.addf %308, %320 : vector<8x32xf32>
    %322 = arith.negf %321 : vector<8x32xf32>
    %323 = math.exp %322 : vector<8x32xf32>
    %cst_69 = arith.constant 1.000000e+00 : f32
    %324 = vector.broadcast %cst_69 : f32 to vector<8x32xf32>
    %325 = arith.addf %324, %323 : vector<8x32xf32>
    %326 = arith.divf %324, %325 : vector<8x32xf32>
    %327 = vector.extract_strided_slice %312 {offsets = [0, 64], sizes = [8, 32], strides = [1, 1]} : vector<8x96xf32> to vector<8x32xf32>
    %328 = vector.broadcast %12 : vector<1x32xf32> to vector<8x32xf32>
    %329 = arith.addf %327, %328 : vector<8x32xf32>
    %330 = arith.mulf %319, %329 : vector<8x32xf32>
    %331 = arith.addf %311, %330 : vector<8x32xf32>
    %332 = math.tanh %331 : vector<8x32xf32>
    %333 = arith.subf %300, %332 : vector<8x32xf32>
    %334 = arith.mulf %326, %333 : vector<8x32xf32>
    %335 = arith.addf %332, %334 : vector<8x32xf32>
    %336 = arith.select %10, %48, %335 : vector<8x32xi1>, vector<8x32xf32>
    %c0_i32_70 = arith.constant 0 : i32
    %337 = vector.broadcast %c0_i32_70 : i32 to vector<8x1xi32>
    %338 = arith.cmpi sgt, %7, %337 : vector<8x1xi32>
    %cst_71 = arith.constant 0.000000e+00 : f32
    %339 = vector.shape_cast %338 : vector<8x1xi1> to vector<8x1xi1>
    %340 = vector.broadcast %339 : vector<8x1xi1> to vector<8x32xi1>
    %341 = vector.broadcast %cst_71 : f32 to vector<8x32xf32>
    %342 = arith.select %340, %336, %341 : vector<8x32xi1>, vector<8x32xf32>
    %c0_72 = arith.constant 0 : index
    %c0_73 = arith.constant 0 : index
    %343 = vector.load %arg16[%c0_72, %c0_73] : memref<64x32xf32, #tpu.memory_space<vmem>>, vector<8x32xf32>
    tpu.vector_store %arg16[%c0_72, %c0_73], %342 {strides = array<i32>} : memref<64x32xf32, #tpu.memory_space<vmem>>, vector<8x32xf32>,
    %344 = arith.select %10, %89, %294 : vector<8x32xi1>, vector<8x32xf32>
    %c1_i32_74 = arith.constant 1 : i32
    %345 = vector.broadcast %c1_i32_74 : i32 to vector<8x1xi32>
    %346 = arith.cmpi sgt, %7, %345 : vector<8x1xi32>
    %cst_75 = arith.constant 0.000000e+00 : f32
    %347 = vector.shape_cast %346 : vector<8x1xi1> to vector<8x1xi1>
    %348 = vector.broadcast %347 : vector<8x1xi1> to vector<8x32xi1>
    %349 = vector.broadcast %cst_75 : f32 to vector<8x32xf32>
    %350 = arith.select %348, %344, %349 : vector<8x32xi1>, vector<8x32xf32>
    %c8_76 = arith.constant 8 : index
    %c0_77 = arith.constant 0 : index
    %351 = vector.load %arg16[%c8_76, %c0_77] : memref<64x32xf32, #tpu.memory_space<vmem>>, vector<8x32xf32>
    tpu.vector_store %arg16[%c8_76, %c0_77], %350 {strides = array<i32>} : memref<64x32xf32, #tpu.memory_space<vmem>>, vector<8x32xf32>,
    %352 = arith.select %10, %130, %253 : vector<8x32xi1>, vector<8x32xf32>
    %c2_i32_78 = arith.constant 2 : i32
    %353 = vector.broadcast %c2_i32_78 : i32 to vector<8x1xi32>
    %354 = arith.cmpi sgt, %7, %353 : vector<8x1xi32>
    %cst_79 = arith.constant 0.000000e+00 : f32
    %355 = vector.shape_cast %354 : vector<8x1xi1> to vector<8x1xi1>
    %356 = vector.broadcast %355 : vector<8x1xi1> to vector<8x32xi1>
    %357 = vector.broadcast %cst_79 : f32 to vector<8x32xf32>
    %358 = arith.select %356, %352, %357 : vector<8x32xi1>, vector<8x32xf32>
    %c16_80 = arith.constant 16 : index
    %c0_81 = arith.constant 0 : index
    %359 = vector.load %arg16[%c16_80, %c0_81] : memref<64x32xf32, #tpu.memory_space<vmem>>, vector<8x32xf32>
    tpu.vector_store %arg16[%c16_80, %c0_81], %358 {strides = array<i32>} : memref<64x32xf32, #tpu.memory_space<vmem>>, vector<8x32xf32>,
    %360 = arith.select %10, %171, %212 : vector<8x32xi1>, vector<8x32xf32>
    %c3_i32_82 = arith.constant 3 : i32
    %361 = vector.broadcast %c3_i32_82 : i32 to vector<8x1xi32>
    %362 = arith.cmpi sgt, %7, %361 : vector<8x1xi32>
    %cst_83 = arith.constant 0.000000e+00 : f32
    %363 = vector.shape_cast %362 : vector<8x1xi1> to vector<8x1xi1>
    %364 = vector.broadcast %363 : vector<8x1xi1> to vector<8x32xi1>
    %365 = vector.broadcast %cst_83 : f32 to vector<8x32xf32>
    %366 = arith.select %364, %360, %365 : vector<8x32xi1>, vector<8x32xf32>
    %c24_84 = arith.constant 24 : index
    %c0_85 = arith.constant 0 : index
    %367 = vector.load %arg16[%c24_84, %c0_85] : memref<64x32xf32, #tpu.memory_space<vmem>>, vector<8x32xf32>
    tpu.vector_store %arg16[%c24_84, %c0_85], %366 {strides = array<i32>} : memref<64x32xf32, #tpu.memory_space<vmem>>, vector<8x32xf32>,
    %368 = arith.select %10, %212, %171 : vector<8x32xi1>, vector<8x32xf32>
    %c4_i32_86 = arith.constant 4 : i32
    %369 = vector.broadcast %c4_i32_86 : i32 to vector<8x1xi32>
    %370 = arith.cmpi sgt, %7, %369 : vector<8x1xi32>
    %cst_87 = arith.constant 0.000000e+00 : f32
    %371 = vector.shape_cast %370 : vector<8x1xi1> to vector<8x1xi1>
    %372 = vector.broadcast %371 : vector<8x1xi1> to vector<8x32xi1>
    %373 = vector.broadcast %cst_87 : f32 to vector<8x32xf32>
    %374 = arith.select %372, %368, %373 : vector<8x32xi1>, vector<8x32xf32>
    %c32_88 = arith.constant 32 : index
    %c0_89 = arith.constant 0 : index
    %375 = vector.load %arg16[%c32_88, %c0_89] : memref<64x32xf32, #tpu.memory_space<vmem>>, vector<8x32xf32>
    tpu.vector_store %arg16[%c32_88, %c0_89], %374 {strides = array<i32>} : memref<64x32xf32, #tpu.memory_space<vmem>>, vector<8x32xf32>,
    %376 = arith.select %10, %253, %130 : vector<8x32xi1>, vector<8x32xf32>
    %c5_i32_90 = arith.constant 5 : i32
    %377 = vector.broadcast %c5_i32_90 : i32 to vector<8x1xi32>
    %378 = arith.cmpi sgt, %7, %377 : vector<8x1xi32>
    %cst_91 = arith.constant 0.000000e+00 : f32
    %379 = vector.shape_cast %378 : vector<8x1xi1> to vector<8x1xi1>
    %380 = vector.broadcast %379 : vector<8x1xi1> to vector<8x32xi1>
    %381 = vector.broadcast %cst_91 : f32 to vector<8x32xf32>
    %382 = arith.select %380, %376, %381 : vector<8x32xi1>, vector<8x32xf32>
    %c40_92 = arith.constant 40 : index
    %c0_93 = arith.constant 0 : index
    %383 = vector.load %arg16[%c40_92, %c0_93] : memref<64x32xf32, #tpu.memory_space<vmem>>, vector<8x32xf32>
    tpu.vector_store %arg16[%c40_92, %c0_93], %382 {strides = array<i32>} : memref<64x32xf32, #tpu.memory_space<vmem>>, vector<8x32xf32>,
    %384 = arith.select %10, %294, %89 : vector<8x32xi1>, vector<8x32xf32>
    %c6_i32_94 = arith.constant 6 : i32
    %385 = vector.broadcast %c6_i32_94 : i32 to vector<8x1xi32>
    %386 = arith.cmpi sgt, %7, %385 : vector<8x1xi32>
    %cst_95 = arith.constant 0.000000e+00 : f32
    %387 = vector.shape_cast %386 : vector<8x1xi1> to vector<8x1xi1>
    %388 = vector.broadcast %387 : vector<8x1xi1> to vector<8x32xi1>
    %389 = vector.broadcast %cst_95 : f32 to vector<8x32xf32>
    %390 = arith.select %388, %384, %389 : vector<8x32xi1>, vector<8x32xf32>
    %c48_96 = arith.constant 48 : index
    %c0_97 = arith.constant 0 : index
    %391 = vector.load %arg16[%c48_96, %c0_97] : memref<64x32xf32, #tpu.memory_space<vmem>>, vector<8x32xf32>
    tpu.vector_store %arg16[%c48_96, %c0_97], %390 {strides = array<i32>} : memref<64x32xf32, #tpu.memory_space<vmem>>, vector<8x32xf32>,
    %392 = arith.select %10, %335, %48 : vector<8x32xi1>, vector<8x32xf32>
    %c7_i32_98 = arith.constant 7 : i32
    %393 = vector.broadcast %c7_i32_98 : i32 to vector<8x1xi32>
    %394 = arith.cmpi sgt, %7, %393 : vector<8x1xi32>
    %cst_99 = arith.constant 0.000000e+00 : f32
    %395 = vector.shape_cast %394 : vector<8x1xi1> to vector<8x1xi1>
    %396 = vector.broadcast %395 : vector<8x1xi1> to vector<8x32xi1>
    %397 = vector.broadcast %cst_99 : f32 to vector<8x32xf32>
    %398 = arith.select %396, %392, %397 : vector<8x32xi1>, vector<8x32xf32>
    %c56_100 = arith.constant 56 : index
    %c0_101 = arith.constant 0 : index
    %399 = vector.load %arg16[%c56_100, %c0_101] : memref<64x32xf32, #tpu.memory_space<vmem>>, vector<8x32xf32>
    tpu.vector_store %arg16[%c56_100, %c0_101], %398 {strides = array<i32>} : memref<64x32xf32, #tpu.memory_space<vmem>>, vector<8x32xf32>,
    %c0_102 = arith.constant 0 : index
    %c0_103 = arith.constant 0 : index
    %400 = vector.load %arg16[%c0_102, %c0_103] : memref<64x32xf32, #tpu.memory_space<vmem>>, vector<64x32xf32>
    %c0_104 = arith.constant 0 : index
    %c0_105 = arith.constant 0 : index
    %401 = vector.load %arg7[%c0_104, %c0_105] : memref<32x32xf32, #tpu.memory_space<vmem>>, vector<32x32xf32>
    %cst_106 = arith.constant dense<0.000000e+00> : vector<64x32xf32>
    %402 = tpu.matmul %400, %401, %cst_106 {dimension_numbers = #tpu.dot_dimension_numbers<[1], [0], [0], [1], [0, 0, 1, 1], [], []>} : vector<64x32xf32>, vector<32x32xf32>, vector<64x32xf32> -> vector<64x32xf32>
    %c0_107 = arith.constant 0 : index
    %c0_108 = arith.constant 0 : index
    %403 = vector.load %arg8[%c0_107, %c0_108] : memref<1x32xf32, #tpu.memory_space<vmem>>, vector<1x32xf32>
    %404 = vector.broadcast %403 : vector<1x32xf32> to vector<64x32xf32>
    %405 = arith.addf %402, %404 : vector<64x32xf32>
    %cst_109 = arith.constant dense<0.000000e+00> : vector<64xf32>
    %406 = vector.multi_reduction <add>, %405, %cst_109 [1] : vector<64x32xf32> to vector<64xf32>
    %407 = vector.shape_cast %406 : vector<64xf32> to vector<64x1xf32>
    %408 = arith.mulf %405, %405 : vector<64x32xf32>
    %cst_110 = arith.constant dense<0.000000e+00> : vector<64xf32>
    %409 = vector.multi_reduction <add>, %408, %cst_110 [1] : vector<64x32xf32> to vector<64xf32>
    %410 = vector.shape_cast %409 : vector<64xf32> to vector<64x1xf32>
    %c0_111 = arith.constant 0 : index
    %c0_112 = arith.constant 0 : index
    %411 = vector.load %arg12[%c0_111, %c0_112] : memref<8x64xf32, #tpu.memory_space<vmem>>, vector<8x64xf32>
    %cst_113 = arith.constant dense<0.000000e+00> : vector<8x1xf32>
    %412 = tpu.matmul %411, %407, %cst_113 {dimension_numbers = #tpu.dot_dimension_numbers<[1], [0], [0], [1], [0, 0, 1, 1], [], []>} : vector<8x64xf32>, vector<64x1xf32>, vector<8x1xf32> -> vector<8x1xf32>
    %cst_114 = arith.constant dense<0.000000e+00> : vector<8x1xf32>
    %413 = tpu.matmul %411, %410, %cst_114 {dimension_numbers = #tpu.dot_dimension_numbers<[1], [0], [0], [1], [0, 0, 1, 1], [], []>} : vector<8x64xf32>, vector<64x1xf32>, vector<8x1xf32> -> vector<8x1xf32>
    %414 = arith.mulf %412, %412 : vector<8x1xf32>
    %415 = arith.subf %413, %414 : vector<8x1xf32>
    %cst_115 = arith.constant 9.99999974E-6 : f32
    %416 = vector.broadcast %cst_115 : f32 to vector<8x1xf32>
    %417 = arith.addf %415, %416 : vector<8x1xf32>
    %418 = math.rsqrt %417 : vector<8x1xf32>
    %c0_116 = arith.constant 0 : index
    %c0_117 = arith.constant 0 : index
    %419 = vector.load %arg10[%c0_116, %c0_117] : memref<8x1xf32, #tpu.memory_space<vmem>>, vector<8x1xf32>
    %420 = arith.mulf %419, %418 : vector<8x1xf32>
    %c0_118 = arith.constant 0 : index
    %c0_119 = arith.constant 0 : index
    %421 = vector.load %arg11[%c0_118, %c0_119] : memref<8x1xf32, #tpu.memory_space<vmem>>, vector<8x1xf32>
    %422 = arith.mulf %412, %420 : vector<8x1xf32>
    %423 = arith.subf %421, %422 : vector<8x1xf32>
    %c0_120 = arith.constant 0 : index
    %c0_121 = arith.constant 0 : index
    %424 = vector.load %arg13[%c0_120, %c0_121] : memref<64x8xf32, #tpu.memory_space<vmem>>, vector<64x8xf32>
    %cst_122 = arith.constant dense<0.000000e+00> : vector<64x1xf32>
    %425 = tpu.matmul %424, %420, %cst_122 {dimension_numbers = #tpu.dot_dimension_numbers<[1], [0], [0], [1], [0, 0, 1, 1], [], []>} : vector<64x8xf32>, vector<8x1xf32>, vector<64x1xf32> -> vector<64x1xf32>
    %cst_123 = arith.constant dense<0.000000e+00> : vector<64x1xf32>
    %426 = tpu.matmul %424, %423, %cst_123 {dimension_numbers = #tpu.dot_dimension_numbers<[1], [0], [0], [1], [0, 0, 1, 1], [], []>} : vector<64x8xf32>, vector<8x1xf32>, vector<64x1xf32> -> vector<64x1xf32>
    %427 = vector.broadcast %425 : vector<64x1xf32> to vector<64x32xf32>
    %428 = arith.mulf %405, %427 : vector<64x32xf32>
    %429 = vector.broadcast %426 : vector<64x1xf32> to vector<64x32xf32>
    %430 = arith.addf %428, %429 : vector<64x32xf32>
    %cst_124 = arith.constant 0.000000e+00 : f32
    %431 = vector.broadcast %cst_124 : f32 to vector<64x32xf32>
    %432 = arith.maximumf %430, %431 : vector<64x32xf32>
    %c0_125 = arith.constant 0 : index
    %c0_126 = arith.constant 0 : index
    %433 = vector.load %arg9[%c0_125, %c0_126] : memref<32x1xf32, #tpu.memory_space<vmem>>, vector<32x1xf32>
    %cst_127 = arith.constant dense<0.000000e+00> : vector<64x1xf32>
    %434 = tpu.matmul %432, %433, %cst_127 {dimension_numbers = #tpu.dot_dimension_numbers<[1], [0], [0], [1], [0, 0, 1, 1], [], []>} : vector<64x32xf32>, vector<32x1xf32>, vector<64x1xf32> -> vector<64x1xf32>
    %435 = vector.extract_strided_slice %434 {offsets = [0, 0], sizes = [8, 1], strides = [1, 1]} : vector<64x1xf32> to vector<8x1xf32>
    %436 = vector.extract_strided_slice %434 {offsets = [8, 0], sizes = [8, 1], strides = [1, 1]} : vector<64x1xf32> to vector<8x1xf32>
    %437 = vector.extract_strided_slice %434 {offsets = [16, 0], sizes = [8, 1], strides = [1, 1]} : vector<64x1xf32> to vector<8x1xf32>
    %438 = vector.extract_strided_slice %434 {offsets = [24, 0], sizes = [8, 1], strides = [1, 1]} : vector<64x1xf32> to vector<8x1xf32>
    %439 = vector.extract_strided_slice %434 {offsets = [32, 0], sizes = [8, 1], strides = [1, 1]} : vector<64x1xf32> to vector<8x1xf32>
    %440 = vector.extract_strided_slice %434 {offsets = [40, 0], sizes = [8, 1], strides = [1, 1]} : vector<64x1xf32> to vector<8x1xf32>
    %441 = vector.extract_strided_slice %434 {offsets = [48, 0], sizes = [8, 1], strides = [1, 1]} : vector<64x1xf32> to vector<8x1xf32>
    %442 = vector.extract_strided_slice %434 {offsets = [56, 0], sizes = [8, 1], strides = [1, 1]} : vector<64x1xf32> to vector<8x1xf32>
    %443 = arith.maximumf %435, %436 : vector<8x1xf32>
    %444 = arith.maximumf %443, %437 : vector<8x1xf32>
    %445 = arith.maximumf %444, %438 : vector<8x1xf32>
    %446 = arith.maximumf %445, %439 : vector<8x1xf32>
    %447 = arith.maximumf %446, %440 : vector<8x1xf32>
    %448 = arith.maximumf %447, %441 : vector<8x1xf32>
    %449 = arith.maximumf %448, %442 : vector<8x1xf32>
    %450 = arith.subf %435, %449 : vector<8x1xf32>
    %451 = math.exp %450 : vector<8x1xf32>
    %452 = arith.subf %436, %449 : vector<8x1xf32>
    %453 = math.exp %452 : vector<8x1xf32>
    %454 = arith.subf %437, %449 : vector<8x1xf32>
    %455 = math.exp %454 : vector<8x1xf32>
    %456 = arith.subf %438, %449 : vector<8x1xf32>
    %457 = math.exp %456 : vector<8x1xf32>
    %458 = arith.subf %439, %449 : vector<8x1xf32>
    %459 = math.exp %458 : vector<8x1xf32>
    %460 = arith.subf %440, %449 : vector<8x1xf32>
    %461 = math.exp %460 : vector<8x1xf32>
    %462 = arith.subf %441, %449 : vector<8x1xf32>
    %463 = math.exp %462 : vector<8x1xf32>
    %464 = arith.subf %442, %449 : vector<8x1xf32>
    %465 = math.exp %464 : vector<8x1xf32>
    %466 = arith.addf %451, %453 : vector<8x1xf32>
    %467 = arith.addf %466, %455 : vector<8x1xf32>
    %468 = arith.addf %467, %457 : vector<8x1xf32>
    %469 = arith.addf %468, %459 : vector<8x1xf32>
    %470 = arith.addf %469, %461 : vector<8x1xf32>
    %471 = arith.addf %470, %463 : vector<8x1xf32>
    %472 = arith.addf %471, %465 : vector<8x1xf32>
    %473 = tpu.reciprocal %472 {approx = true} : vector<8x1xf32> -> vector<8x1xf32>
    %474 = arith.mulf %451, %473 : vector<8x1xf32>
    %c0_128 = arith.constant 0 : index
    %c0_129 = arith.constant 0 : index
    %475 = vector.load %arg16[%c0_128, %c0_129] : memref<64x32xf32, #tpu.memory_space<vmem>>, vector<8x32xf32>
    %476 = vector.broadcast %474 : vector<8x1xf32> to vector<8x32xf32>
    %477 = arith.mulf %476, %475 : vector<8x32xf32>
    %478 = arith.mulf %453, %473 : vector<8x1xf32>
    %c8_130 = arith.constant 8 : index
    %c0_131 = arith.constant 0 : index
    %479 = vector.load %arg16[%c8_130, %c0_131] : memref<64x32xf32, #tpu.memory_space<vmem>>, vector<8x32xf32>
    %480 = vector.broadcast %478 : vector<8x1xf32> to vector<8x32xf32>
    %481 = arith.mulf %480, %479 : vector<8x32xf32>
    %482 = arith.addf %477, %481 : vector<8x32xf32>
    %483 = arith.mulf %455, %473 : vector<8x1xf32>
    %c16_132 = arith.constant 16 : index
    %c0_133 = arith.constant 0 : index
    %484 = vector.load %arg16[%c16_132, %c0_133] : memref<64x32xf32, #tpu.memory_space<vmem>>, vector<8x32xf32>
    %485 = vector.broadcast %483 : vector<8x1xf32> to vector<8x32xf32>
    %486 = arith.mulf %485, %484 : vector<8x32xf32>
    %487 = arith.addf %482, %486 : vector<8x32xf32>
    %488 = arith.mulf %457, %473 : vector<8x1xf32>
    %c24_134 = arith.constant 24 : index
    %c0_135 = arith.constant 0 : index
    %489 = vector.load %arg16[%c24_134, %c0_135] : memref<64x32xf32, #tpu.memory_space<vmem>>, vector<8x32xf32>
    %490 = vector.broadcast %488 : vector<8x1xf32> to vector<8x32xf32>
    %491 = arith.mulf %490, %489 : vector<8x32xf32>
    %492 = arith.addf %487, %491 : vector<8x32xf32>
    %493 = arith.mulf %459, %473 : vector<8x1xf32>
    %c32_136 = arith.constant 32 : index
    %c0_137 = arith.constant 0 : index
    %494 = vector.load %arg16[%c32_136, %c0_137] : memref<64x32xf32, #tpu.memory_space<vmem>>, vector<8x32xf32>
    %495 = vector.broadcast %493 : vector<8x1xf32> to vector<8x32xf32>
    %496 = arith.mulf %495, %494 : vector<8x32xf32>
    %497 = arith.addf %492, %496 : vector<8x32xf32>
    %498 = arith.mulf %461, %473 : vector<8x1xf32>
    %c40_138 = arith.constant 40 : index
    %c0_139 = arith.constant 0 : index
    %499 = vector.load %arg16[%c40_138, %c0_139] : memref<64x32xf32, #tpu.memory_space<vmem>>, vector<8x32xf32>
    %500 = vector.broadcast %498 : vector<8x1xf32> to vector<8x32xf32>
    %501 = arith.mulf %500, %499 : vector<8x32xf32>
    %502 = arith.addf %497, %501 : vector<8x32xf32>
    %503 = arith.mulf %463, %473 : vector<8x1xf32>
    %c48_140 = arith.constant 48 : index
    %c0_141 = arith.constant 0 : index
    %504 = vector.load %arg16[%c48_140, %c0_141] : memref<64x32xf32, #tpu.memory_space<vmem>>, vector<8x32xf32>
    %505 = vector.broadcast %503 : vector<8x1xf32> to vector<8x32xf32>
    %506 = arith.mulf %505, %504 : vector<8x32xf32>
    %507 = arith.addf %502, %506 : vector<8x32xf32>
    %508 = arith.mulf %465, %473 : vector<8x1xf32>
    %c56_142 = arith.constant 56 : index
    %c0_143 = arith.constant 0 : index
    %509 = vector.load %arg16[%c56_142, %c0_143] : memref<64x32xf32, #tpu.memory_space<vmem>>, vector<8x32xf32>
    %510 = vector.broadcast %508 : vector<8x1xf32> to vector<8x32xf32>
    %511 = arith.mulf %510, %509 : vector<8x32xf32>
    %512 = arith.addf %507, %511 : vector<8x32xf32>
    %c0_144 = arith.constant 0 : index
    %c0_145 = arith.constant 0 : index
    %513 = vector.load %arg14[%c0_144, %c0_145] : memref<8x32xf32, #tpu.memory_space<vmem>>, vector<8x32xf32>
    tpu.vector_store %arg14[%c0_144, %c0_145], %512 {strides = array<i32>} : memref<8x32xf32, #tpu.memory_space<vmem>>, vector<8x32xf32>,
    return
  }
}

</mosaic_0001>

<llo_original>
// kernel: tpu_custom_call.1
$region0: #{tpu_custom_call.1}
  #allocation0 [shape = 'u32[]', space=smem, size = 0x4, offset = 0x4, fixed_abs, tag = 'smem constant byte address 0x4 - core index']
  #allocation1 [shape = 'u32[144,128]{1,0:T(1,128)}', space=vmem, size = 0x12000, scoped, tag = 'internal scratch']
  #allocation2 [shape = 'f32[64,96]{1,0:T(8,128)}', space=vmem, size = 0x8000, scoped, tag = 'scratch operand']
  #allocation3 [shape = 'f32[64,32]{1,0:T(8,128)}', space=vmem, size = 0x8000, scoped, tag = 'scratch operand']
  %s0 = inlined_call_operand.vmem [shape: f32[64,32], index: 0, kind: input, shape index: {}]
  %s1 = inlined_call_operand.vmem [shape: s32[8,1], index: 1, kind: input, shape index: {}]
  %s2 = inlined_call_operand.vmem [shape: f32[8,32], index: 2, kind: input, shape index: {}]
  %s3 = inlined_call_operand.vmem [shape: f32[32,96], index: 3, kind: input, shape index: {}]
  %s4 = inlined_call_operand.vmem [shape: f32[1,96], index: 4, kind: input, shape index: {}]
  %s5 = inlined_call_operand.vmem [shape: f32[32,96], index: 5, kind: input, shape index: {}]
  %s6 = inlined_call_operand.vmem [shape: f32[1,32], index: 6, kind: input, shape index: {}]
  %s7 = inlined_call_operand.vmem [shape: f32[32,32], index: 7, kind: input, shape index: {}]
  %s8 = inlined_call_operand.vmem [shape: f32[1,32], index: 8, kind: input, shape index: {}]
  %s9 = inlined_call_operand.vmem [shape: f32[32,1], index: 9, kind: input, shape index: {}]
  %s10 = inlined_call_operand.vmem [shape: f32[8,1], index: 10, kind: input, shape index: {}]
  %s11 = inlined_call_operand.vmem [shape: f32[8,1], index: 11, kind: input, shape index: {}]
  %s12 = inlined_call_operand.vmem [shape: f32[8,64], index: 12, kind: input, shape index: {}]
  %s13 = inlined_call_operand.vmem [shape: f32[64,8], index: 13, kind: input, shape index: {}]
  %s14 = inlined_call_operand.hbm [shape: f32[8,32], index: 14, kind: output, shape index: {}]
  %s15 = sld [smem:[#allocation0]]
  $region66: #{tpu_custom_call.1} parent=0
    _
  %s17 = ssub.s32 1, %s15
  %s18 = scalar_select 0, %s17, %s15
  $region1: #{tpu_custom_call.1} parent=0
    #allocation4 [shape = 'u8[4096]{0}', space=vmem, size = 0x1000, scoped, tag = 'output window, operand 0, single buffered']
    #allocation5 [shape = 's32[1]{0}', space=sflag, size = 0x4, scoped, tag = 'scoped memory for tpu_custom_call.1']
    %19 = vsyncpa [#allocation5], 0
    // Predicated region
    $region2: #{tpu_custom_call.1} parent=1 // pred_check
      _
    $region3: #{tpu_custom_call.1} parent=1 // pred_check_branch
      %21 = sbr.rel (0) target = $region5
    $region4: #{tpu_custom_call.1} parent=1 // pred_region
      _
    $region5: #{tpu_custom_call.1} parent=1 // pred_fallthru
      _
    // Predicated region
    $region6: #{tpu_custom_call.1} parent=1 // pred_check
      _
    $region7: #{tpu_custom_call.1} parent=1 // pred_check_branch
      %23 = sbr.rel (0) target = $region9
    $region8: #{tpu_custom_call.1} parent=1 // pred_region
      _
    $region9: #{tpu_custom_call.1} parent=1 // pred_fallthru
      _
    // Predicated region
    $region10: #{tpu_custom_call.1} parent=1 // pred_check
      _
    $region11: #{tpu_custom_call.1} parent=1 // pred_check_branch
      %25 = sbr.rel (0) target = $region13
    $region12: #{tpu_custom_call.1} parent=1 // pred_region
      _
    $region13: #{tpu_custom_call.1} parent=1 // pred_fallthru
      _
    // Predicated region
    $region14: #{tpu_custom_call.1} parent=1 // pred_check
      _
    $region15: #{tpu_custom_call.1} parent=1 // pred_check_branch
      %27 = sbr.rel (0) target = $region17
    $region16: #{tpu_custom_call.1} parent=1 // pred_region
      _
    $region17: #{tpu_custom_call.1} parent=1 // pred_fallthru
      _
    // Predicated region
    $region18: #{tpu_custom_call.1} parent=1 // pred_check
      _
    $region19: #{tpu_custom_call.1} parent=1 // pred_check_branch
      %29 = sbr.rel (0) target = $region21
    $region20: #{tpu_custom_call.1} parent=1 // pred_region
      _
    $region21: #{tpu_custom_call.1} parent=1 // pred_fallthru
      _
    // Predicated region
    $region22: #{tpu_custom_call.1} parent=1 // pred_check
      _
    $region23: #{tpu_custom_call.1} parent=1 // pred_check_branch
      %31 = sbr.rel (0) target = $region25
    $region24: #{tpu_custom_call.1} parent=1 // pred_region
      _
    $region25: #{tpu_custom_call.1} parent=1 // pred_fallthru
      _
    // Predicated region
    $region26: #{tpu_custom_call.1} parent=1 // pred_check
      _
    $region27: #{tpu_custom_call.1} parent=1 // pred_check_branch
      %33 = sbr.rel (0) target = $region29
    $region28: #{tpu_custom_call.1} parent=1 // pred_region
      _
    $region29: #{tpu_custom_call.1} parent=1 // pred_fallthru
      _
    // Predicated region
    $region30: #{tpu_custom_call.1} parent=1 // pred_check
      _
    $region31: #{tpu_custom_call.1} parent=1 // pred_check_branch
      %35 = sbr.rel (0) target = $region33
    $region32: #{tpu_custom_call.1} parent=1 // pred_region
      _
    $region33: #{tpu_custom_call.1} parent=1 // pred_fallthru
      _
    // Predicated region
    $region34: #{tpu_custom_call.1} parent=1 // pred_check
      _
    $region35: #{tpu_custom_call.1} parent=1 // pred_check_branch
      %37 = sbr.rel (0) target = $region37
    $region36: #{tpu_custom_call.1} parent=1 // pred_region
      _
    $region37: #{tpu_custom_call.1} parent=1 // pred_fallthru
      _
    // Predicated region
    $region38: #{tpu_custom_call.1} parent=1 // pred_check
      _
    $region39: #{tpu_custom_call.1} parent=1 // pred_check_branch
      %39 = sbr.rel (0) target = $region41
    $region40: #{tpu_custom_call.1} parent=1 // pred_region
      _
    $region41: #{tpu_custom_call.1} parent=1 // pred_fallthru
      _
    // Predicated region
    $region42: #{tpu_custom_call.1} parent=1 // pred_check
      _
    $region43: #{tpu_custom_call.1} parent=1 // pred_check_branch
      %41 = sbr.rel (0) target = $region45
    $region44: #{tpu_custom_call.1} parent=1 // pred_region
      _
    $region45: #{tpu_custom_call.1} parent=1 // pred_fallthru
      _
    // Predicated region
    $region46: #{tpu_custom_call.1} parent=1 // pred_check
      _
    $region47: #{tpu_custom_call.1} parent=1 // pred_check_branch
      %43 = sbr.rel (0) target = $region49
    $region48: #{tpu_custom_call.1} parent=1 // pred_region
      _
    $region49: #{tpu_custom_call.1} parent=1 // pred_fallthru
      _
    // Predicated region
    $region50: #{tpu_custom_call.1} parent=1 // pred_check
      _
    $region51: #{tpu_custom_call.1} parent=1 // pred_check_branch
      %45 = sbr.rel (0) target = $region53
    $region52: #{tpu_custom_call.1} parent=1 // pred_region
      _
    $region53: #{tpu_custom_call.1} parent=1 // pred_fallthru
      _
    // Predicated region
    $region54: #{tpu_custom_call.1} parent=1 // pred_check
      _
    $region55: #{tpu_custom_call.1} parent=1 // pred_check_branch
      %47 = sbr.rel (0) target = $region57
    $region56: #{tpu_custom_call.1} parent=1 // pred_region
      _
    $region57: #{tpu_custom_call.1} parent=1 // pred_fallthru
      _
    %v48 = vld [vmem:[%s0] sm:$0xff]
    %v49 = vld [vmem:[%s0 + $0x8] sm:$0xff]
    %v50 = vld [vmem:[%s0 + $0x10] sm:$0xff]
    %v51 = vld [vmem:[%s0 + $0x18] sm:$0xff]
    %v52 = vld [vmem:[%s0 + $0x20] sm:$0xff]
    %v53 = vld [vmem:[%s0 + $0x28] sm:$0xff]
    %v54 = vld [vmem:[%s0 + $0x30] sm:$0xff]
    %v55 = vld [vmem:[%s0 + $0x38] sm:$0xff]
    %v56 = vld [vmem:[%s3] sm:$0xff]
    %v57 = vld [vmem:[%s3 + $0x8] sm:$0xff]
    %v58 = vld [vmem:[%s3 + $0x10] sm:$0xff]
    %v59 = vld [vmem:[%s3 + $0x18] sm:$0xff]
    %v60 = vld [vmem:[%s4] sm:$0x1]
    %v62 = vlaneseq
    %v63 = vshrl.u32 %v62, 7
    %v64 = vsub.s32 0, %v63
    %v65 = vrot.slane %v60, %v64
    %vm67 = vcmask 261120
    %v69 = vsel %vm67, %v48, 0
    %v72 = vsel %vm67, %v49, 0
    %v75 = vsel %vm67, %v50, 0
    %v78 = vsel %vm67, %v51, 0
    %v81 = vsel %vm67, %v52, 0
    %v84 = vsel %vm67, %v53, 0
    %v87 = vsel %vm67, %v54, 0
    %v90 = vsel %vm67, %v55, 0
    %92 = vmatprep.subr.mxu0 0.0
    %93 = vmatpush1.msra.mxu0 0.0
    %94 = vmatprep.subr.mxu0 0.0
    %95 = vmatpush1.msra.mxu0 0.0
    %96 = vmatprep.subr.mxu0 0.0
    %97 = vmatpush1.msra.mxu0 0.0
    %98 = vmatprep.subr.mxu0 0.0
    %99 = vmatpush1.msra.mxu0 0.0
    %100 = vmatprep.subr.mxu0 0.0
    %101 = vmatpush1.msra.mxu0 0.0
    %102 = vmatprep.subr.mxu0 0.0
    %103 = vmatpush1.msra.mxu0 0.0
    %104 = vmatprep.subr.mxu0 0.0
    %105 = vmatpush1.msra.mxu0 0.0
    %106 = vmatprep.subr.mxu0 0.0
    %107 = vmatpush1.msra.mxu0 0.0
    %108 = vmatprep.subr.mxu0 0.0
    %109 = vmatpush1.msra.mxu0 0.0
    %110 = vmatprep.subr.mxu0 0.0
    %111 = vmatpush1.msra.mxu0 0.0
    %112 = vmatprep.subr.mxu0 0.0
    %113 = vmatpush1.msra.mxu0 0.0
    %114 = vmatprep.subr.mxu0 0.0
    %115 = vmatpush1.msra.mxu0 0.0
    %116 = vmatprep.subr.mxu0 0.0
    %117 = vmatpush1.msra.mxu0 %v59
    %118 = vmatprep.subr.mxu0 0.0
    %119 = vmatpush1.msra.mxu0 %v58
    %120 = vmatprep.subr.mxu0 0.0
    %121 = vmatpush1.msra.mxu0 %v57
    %122 = vmatprep.subr.mxu0 0.0
    %123 = vmatpush1.msra.mxu0 %v56
    %124 = vmatprep.subr.mxu0 0.0
    %125 = vmatpush2.msra.mxu0 0.0
    %126 = vmatprep.subr.mxu0 0.0
    %127 = vmatpush2.msra.mxu0 0.0
    %128 = vmatprep.subr.mxu0 0.0
    %129 = vmatpush2.msra.mxu0 0.0
    %130 = vmatprep.subr.mxu0 0.0
    %131 = vmatpush2.msra.mxu0 0.0
    %132 = vmatprep.subr.mxu0 0.0
    %133 = vmatpush2.msra.mxu0 0.0
    %134 = vmatprep.subr.mxu0 0.0
    %135 = vmatpush2.msra.mxu0 0.0
    %136 = vmatprep.subr.mxu0 0.0
    %137 = vmatpush2.msra.mxu0 0.0
    %138 = vmatprep.subr.mxu0 0.0
    %139 = vmatpush2.msra.mxu0 0.0
    %140 = vmatprep.subr.mxu0 0.0
    %141 = vmatpush2.msra.mxu0 0.0
    %142 = vmatprep.subr.mxu0 0.0
    %143 = vmatpush2.msra.mxu0 0.0
    %144 = vmatprep.subr.mxu0 0.0
    %145 = vmatpush2.msra.mxu0 0.0
    %146 = vmatprep.subr.mxu0 0.0
    %147 = vmatpush2.msra.mxu0 0.0
    %148 = vmatprep.subr.mxu0 0.0
    %149 = vmatpush2.msra.mxu0 0.0
    %150 = vmatprep.subr.mxu0 0.0
    %151 = vmatpush2.msra.mxu0 0.0
    %152 = vmatprep.subr.mxu0 0.0
    %153 = vmatpush2.msra.mxu0 0.0
    %154 = vmatprep.subr.mxu0 0.0
    %155 = vmatpush2.msra.mxu0 0.0
    %156 = vmatprep.mubr.f32.mxu0 0.0
    %157 = vmatmul.mubr.f32.gmra.mxu0 %v69
    %v158 = vpop.f32.mrf.mxu0
    %v159 = vadd.f32 %v65, %v158
    %v160 = vpop.f32.mrf.mxu0
    %161 = vmatprep.mubr.f32.mxu0 0.0
    %162 = vmatmul.mubr.f32.gmra.mxu0 %v72
    %v163 = vpop.f32.mrf.mxu0
    %v164 = vadd.f32 %v65, %v163
    %v165 = vpop.f32.mrf.mxu0
    %166 = vmatprep.mubr.f32.mxu0 0.0
    %167 = vmatmul.mubr.f32.gmra.mxu0 %v75
    %v168 = vpop.f32.mrf.mxu0
    %v169 = vadd.f32 %v65, %v168
    %v170 = vpop.f32.mrf.mxu0
    %171 = vmatprep.mubr.f32.mxu0 0.0
    %172 = vmatmul.mubr.f32.gmra.mxu0 %v78
    %v173 = vpop.f32.mrf.mxu0
    %v174 = vadd.f32 %v65, %v173
    %v175 = vpop.f32.mrf.mxu0
    %176 = vmatprep.mubr.f32.mxu0 0.0
    %177 = vmatmul.mubr.f32.gmra.mxu0 %v81
    %v178 = vpop.f32.mrf.mxu0
    %v179 = vadd.f32 %v65, %v178
    %v180 = vpop.f32.mrf.mxu0
    %181 = vmatprep.mubr.f32.mxu0 0.0
    %182 = vmatmul.mubr.f32.gmra.mxu0 %v84
    %v183 = vpop.f32.mrf.mxu0
    %v184 = vadd.f32 %v65, %v183
    %v185 = vpop.f32.mrf.mxu0
    %186 = vmatprep.mubr.f32.mxu0 0.0
    %187 = vmatmul.mubr.f32.gmra.mxu0 %v87
    %v188 = vpop.f32.mrf.mxu0
    %v189 = vadd.f32 %v65, %v188
    %v190 = vpop.f32.mrf.mxu0
    %191 = vmatprep.mubr.f32.mxu0 0.0
    %192 = vmatmul.mubr.f32.gmra.mxu0 %v90
    %v193 = vpop.f32.mrf.mxu0
    %v194 = vadd.f32 %v65, %v193
    %v195 = vpop.f32.mrf.mxu0
    %196 = vdwg.mxu0
    %vm197 = vcmask 785408
    %198 = vst.msk [vmem:[#allocation2] sm:$0xff] %vm197, %v159
    %199 = vst.msk [vmem:[#allocation2 + $0x8] sm:$0xff] %vm197, %v164
    %200 = vst.msk [vmem:[#allocation2 + $0x10] sm:$0xff] %vm197, %v169
    %201 = vst.msk [vmem:[#allocation2 + $0x18] sm:$0xff] %vm197, %v174
    %202 = vst.msk [vmem:[#allocation2 + $0x20] sm:$0xff] %vm197, %v179
    %203 = vst.msk [vmem:[#allocation2 + $0x28] sm:$0xff] %vm197, %v184
    %204 = vst.msk [vmem:[#allocation2 + $0x30] sm:$0xff] %vm197, %v189
    %205 = vst.msk [vmem:[#allocation2 + $0x38] sm:$0xff] %vm197, %v194
    %v206 = vld [vmem:[%s1] sm:$0xff]
    %v207 = vlaneseq
    %v208 = vand.u32 %v207, 127
    %vm209 = vcmp.lt.s32.totalorder %v208, 16
    %v210 = vld [vmem:[%s5] sm:$0xff]
    %v211 = vld [vmem:[%s5 + $0x8] sm:$0xff]
    %v212 = vld [vmem:[%s5 + $0x10] sm:$0xff]
    %v213 = vld [vmem:[%s5 + $0x18] sm:$0xff]
    %v214 = vld [vmem:[%s6] sm:$0x1]
    %v215 = vld [vmem:[%s2] sm:$0xff]
    %v216 = vld [vmem:[#allocation2] sm:$0xff]
    %v217 = vld [vmem:[#allocation2 + $0x38] sm:$0xff]
    %v218 = vsel %vm209, %v216, %v217
    %220 = vrot.lane.b32.xlu0 %v216, 96
    %v221 = vpop.permute.xlu0 %220
    %224 = vrot.lane.b32.xlu0 %v217, 96
    %v225 = vpop.permute.xlu0 %224
    %v227 = vsel %vm209, %v221, %v225
    %228 = vrot.lane.b32.xlu0 %v216, 64
    %v229 = vpop.permute.xlu0 %228
    %231 = vrot.lane.b32.xlu0 %v217, 64
    %v232 = vpop.permute.xlu0 %231
    %v234 = vsel %vm209, %v229, %v232
    %v236 = vsel %vm67, %v215, 0
    %238 = vmatprep.subr.mxu0 0.0
    %239 = vmatpush1.msra.mxu0 0.0
    %240 = vmatprep.subr.mxu0 0.0
    %241 = vmatpush1.msra.mxu0 0.0
    %242 = vmatprep.subr.mxu0 0.0
    %243 = vmatpush1.msra.mxu0 0.0
    %244 = vmatprep.subr.mxu0 0.0
    %245 = vmatpush1.msra.mxu0 0.0
    %246 = vmatprep.subr.mxu0 0.0
    %247 = vmatpush1.msra.mxu0 0.0
    %248 = vmatprep.subr.mxu0 0.0
    %249 = vmatpush1.msra.mxu0 0.0
    %250 = vmatprep.subr.mxu0 0.0
    %251 = vmatpush1.msra.mxu0 0.0
    %252 = vmatprep.subr.mxu0 0.0
    %253 = vmatpush1.msra.mxu0 0.0
    %254 = vmatprep.subr.mxu0 0.0
    %255 = vmatpush1.msra.mxu0 0.0
    %256 = vmatprep.subr.mxu0 0.0
    %257 = vmatpush1.msra.mxu0 0.0
    %258 = vmatprep.subr.mxu0 0.0
    %259 = vmatpush1.msra.mxu0 0.0
    %260 = vmatprep.subr.mxu0 0.0
    %261 = vmatpush1.msra.mxu0 0.0
    %262 = vmatprep.subr.mxu0 0.0
    %263 = vmatpush1.msra.mxu0 %v213
    %264 = vmatprep.subr.mxu0 0.0
    %265 = vmatpush1.msra.mxu0 %v212
    %266 = vmatprep.subr.mxu0 0.0
    %267 = vmatpush1.msra.mxu0 %v211
    %268 = vmatprep.subr.mxu0 0.0
    %269 = vmatpush1.msra.mxu0 %v210
    %270 = vmatprep.subr.mxu0 0.0
    %271 = vmatpush2.msra.mxu0 0.0
    %272 = vmatprep.subr.mxu0 0.0
    %273 = vmatpush2.msra.mxu0 0.0
    %274 = vmatprep.subr.mxu0 0.0
    %275 = vmatpush2.msra.mxu0 0.0
    %276 = vmatprep.subr.mxu0 0.0
    %277 = vmatpush2.msra.mxu0 0.0
    %278 = vmatprep.subr.mxu0 0.0
    %279 = vmatpush2.msra.mxu0 0.0
    %280 = vmatprep.subr.mxu0 0.0
    %281 = vmatpush2.msra.mxu0 0.0
    %282 = vmatprep.subr.mxu0 0.0
    %283 = vmatpush2.msra.mxu0 0.0
    %284 = vmatprep.subr.mxu0 0.0
    %285 = vmatpush2.msra.mxu0 0.0
    %286 = vmatprep.subr.mxu0 0.0
    %287 = vmatpush2.msra.mxu0 0.0
    %288 = vmatprep.subr.mxu0 0.0
    %289 = vmatpush2.msra.mxu0 0.0
    %290 = vmatprep.subr.mxu0 0.0
    %291 = vmatpush2.msra.mxu0 0.0
    %292 = vmatprep.subr.mxu0 0.0
    %293 = vmatpush2.msra.mxu0 0.0
    %294 = vmatprep.subr.mxu0 0.0
    %295 = vmatpush2.msra.mxu0 0.0
    %296 = vmatprep.subr.mxu0 0.0
    %297 = vmatpush2.msra.mxu0 0.0
    %298 = vmatprep.subr.mxu0 0.0
    %299 = vmatpush2.msra.mxu0 0.0
    %300 = vmatprep.subr.mxu0 0.0
    %301 = vmatpush2.msra.mxu0 0.0
    %302 = vmatprep.mubr.f32.mxu0 0.0
    %303 = vmatmul.mubr.f32.gmra.mxu0 %v236
    %v304 = vpop.f32.mrf.mxu0
    %v305 = vadd.f32 0.0, %v304
    %v306 = vpop.f32.mrf.mxu0
    %307 = vdwg.mxu0
    %v308 = vadd.f32 %v218, %v305
    %v309 = vxor.u32 %v308, 2147483648
    %v310 = vmul.f32 %v309, 1.442695
    %v311 = vpow.pop %v310
    %v312 = vadd.f32 %v311, 1.0
    %v313 = vrcp.pop %v312
    %v314 = vmul.f32 1.0, %v313
    %316 = vrot.lane.b32.xlu0 %v305, 96
    %v317 = vpop.permute.xlu0 %316
    %v319 = vadd.f32 %v227, %v317
    %v320 = vxor.u32 %v319, 2147483648
    %v321 = vmul.f32 %v320, 1.442695
    %v322 = vpow.pop %v321
    %v323 = vadd.f32 %v322, 1.0
    %v324 = vrcp.pop %v323
    %v325 = vmul.f32 1.0, %v324
    %v327 = vlaneseq
    %v328 = vshrl.u32 %v327, 7
    %v329 = vsub.s32 0, %v328
    %v330 = vrot.slane %v214, %v329
    %331 = vrot.lane.b32.xlu0 %v330, 64
    %v332 = vpop.permute.xlu0 %331
    %v334 = vadd.f32 %v305, %v332
    %336 = vrot.lane.b32.xlu0 %v334, 64
    %v337 = vpop.permute.xlu0 %336
    %v339 = vmul.f32 %v314, %v337
    %v340 = vadd.f32 %v234, %v339
    %v341 = vtanh.pop %v340
    %v342 = vsub.f32 %v215, %v341
    %v343 = vmul.f32 %v325, %v342
    %v344 = vadd.f32 %v341, %v343
    %v345 = vsel %vm209, 0, 7
    %346 = vset.pattern.permute.xlu0 0
    %347 = vperm.xlu0 %346, %v206
    %v348 = vpop.permute.xlu0 %347
    %vm349 = vcmp.gt.s32.totalorder %v348, %v345
    %v350 = vsel %vm349, %v344, %v215
    %v351 = vld [vmem:[#allocation2 + $0x8] sm:$0xff]
    %v352 = vld [vmem:[#allocation2 + $0x30] sm:$0xff]
    %v353 = vsel %vm209, %v351, %v352
    %355 = vrot.lane.b32.xlu0 %v351, 96
    %v356 = vpop.permute.xlu0 %355
    %359 = vrot.lane.b32.xlu0 %v352, 96
    %v360 = vpop.permute.xlu0 %359
    %v362 = vsel %vm209, %v356, %v360
    %363 = vrot.lane.b32.xlu0 %v351, 64
    %v364 = vpop.permute.xlu0 %363
    %366 = vrot.lane.b32.xlu0 %v352, 64
    %v367 = vpop.permute.xlu0 %366
    %v369 = vsel %vm209, %v364, %v367
    %v371 = vsel %vm67, %v350, 0
    %373 = vmatprep.subr.mxu0 0.0
    %374 = vmatpush1.msra.mxu0 0.0
    %375 = vmatprep.subr.mxu0 0.0
    %376 = vmatpush1.msra.mxu0 0.0
    %377 = vmatprep.subr.mxu0 0.0
    %378 = vmatpush1.msra.mxu0 0.0
    %379 = vmatprep.subr.mxu0 0.0
    %380 = vmatpush1.msra.mxu0 0.0
    %381 = vmatprep.subr.mxu0 0.0
    %382 = vmatpush1.msra.mxu0 0.0
    %383 = vmatprep.subr.mxu0 0.0
    %384 = vmatpush1.msra.mxu0 0.0
    %385 = vmatprep.subr.mxu0 0.0
    %386 = vmatpush1.msra.mxu0 0.0
    %387 = vmatprep.subr.mxu0 0.0
    %388 = vmatpush1.msra.mxu0 0.0
    %389 = vmatprep.subr.mxu0 0.0
    %390 = vmatpush1.msra.mxu0 0.0
    %391 = vmatprep.subr.mxu0 0.0
    %392 = vmatpush1.msra.mxu0 0.0
    %393 = vmatprep.subr.mxu0 0.0
    %394 = vmatpush1.msra.mxu0 0.0
    %395 = vmatprep.subr.mxu0 0.0
    %396 = vmatpush1.msra.mxu0 0.0
    %397 = vmatprep.subr.mxu0 0.0
    %398 = vmatpush1.msra.mxu0 %v213
    %399 = vmatprep.subr.mxu0 0.0
    %400 = vmatpush1.msra.mxu0 %v212
    %401 = vmatprep.subr.mxu0 0.0
    %402 = vmatpush1.msra.mxu0 %v211
    %403 = vmatprep.subr.mxu0 0.0
    %404 = vmatpush1.msra.mxu0 %v210
    %405 = vmatprep.subr.mxu0 0.0
    %406 = vmatpush2.msra.mxu0 0.0
    %407 = vmatprep.subr.mxu0 0.0
    %408 = vmatpush2.msra.mxu0 0.0
    %409 = vmatprep.subr.mxu0 0.0
    %410 = vmatpush2.msra.mxu0 0.0
    %411 = vmatprep.subr.mxu0 0.0
    %412 = vmatpush2.msra.mxu0 0.0
    %413 = vmatprep.subr.mxu0 0.0
    %414 = vmatpush2.msra.mxu0 0.0
    %415 = vmatprep.subr.mxu0 0.0
    %416 = vmatpush2.msra.mxu0 0.0
    %417 = vmatprep.subr.mxu0 0.0
    %418 = vmatpush2.msra.mxu0 0.0
    %419 = vmatprep.subr.mxu0 0.0
    %420 = vmatpush2.msra.mxu0 0.0
    %421 = vmatprep.subr.mxu0 0.0
    %422 = vmatpush2.msra.mxu0 0.0
    %423 = vmatprep.subr.mxu0 0.0
    %424 = vmatpush2.msra.mxu0 0.0
    %425 = vmatprep.subr.mxu0 0.0
    %426 = vmatpush2.msra.mxu0 0.0
    %427 = vmatprep.subr.mxu0 0.0
    %428 = vmatpush2.msra.mxu0 0.0
    %429 = vmatprep.subr.mxu0 0.0
    %430 = vmatpush2.msra.mxu0 0.0
    %431 = vmatprep.subr.mxu0 0.0
    %432 = vmatpush2.msra.mxu0 0.0
    %433 = vmatprep.subr.mxu0 0.0
    %434 = vmatpush2.msra.mxu0 0.0
    %435 = vmatprep.subr.mxu0 0.0
    %436 = vmatpush2.msra.mxu0 0.0
    %437 = vmatprep.mubr.f32.mxu0 0.0
    %438 = vmatmul.mubr.f32.gmra.mxu0 %v371
    %v439 = vpop.f32.mrf.mxu0
    %v440 = vadd.f32 0.0, %v439
    %v441 = vpop.f32.mrf.mxu0
    %442 = vdwg.mxu0
    %v443 = vadd.f32 %v353, %v440
    %v444 = vxor.u32 %v443, 2147483648
    %v445 = vmul.f32 %v444, 1.442695
    %v446 = vpow.pop %v445
    %v447 = vadd.f32 %v446, 1.0
    %v448 = vrcp.pop %v447
    %v449 = vmul.f32 1.0, %v448
    %451 = vrot.lane.b32.xlu0 %v440, 96
    %v452 = vpop.permute.xlu0 %451
    %v454 = vadd.f32 %v362, %v452
    %v455 = vxor.u32 %v454, 2147483648
    %v456 = vmul.f32 %v455, 1.442695
    %v457 = vpow.pop %v456
    %v458 = vadd.f32 %v457, 1.0
    %v459 = vrcp.pop %v458
    %v460 = vmul.f32 1.0, %v459
    %v461 = vadd.f32 %v440, %v332
    %463 = vrot.lane.b32.xlu0 %v461, 64
    %v464 = vpop.permute.xlu0 %463
    %v466 = vmul.f32 %v449, %v464
    %v467 = vadd.f32 %v369, %v466
    %v468 = vtanh.pop %v467
    %v469 = vsub.f32 %v350, %v468
    %v470 = vmul.f32 %v460, %v469
    %v471 = vadd.f32 %v468, %v470
    %v472 = vsel %vm209, 1, 6
    %vm473 = vcmp.gt.s32.totalorder %v348, %v472
    %v474 = vsel %vm473, %v471, %v350
    %v475 = vld [vmem:[#allocation2 + $0x10] sm:$0xff]
    %v476 = vld [vmem:[#allocation2 + $0x28] sm:$0xff]
    %v477 = vsel %vm209, %v475, %v476
    %479 = vrot.lane.b32.xlu0 %v475, 96
    %v480 = vpop.permute.xlu0 %479
    %483 = vrot.lane.b32.xlu0 %v476, 96
    %v484 = vpop.permute.xlu0 %483
    %v486 = vsel %vm209, %v480, %v484
    %487 = vrot.lane.b32.xlu0 %v475, 64
    %v488 = vpop.permute.xlu0 %487
    %490 = vrot.lane.b32.xlu0 %v476, 64
    %v491 = vpop.permute.xlu0 %490
    %v493 = vsel %vm209, %v488, %v491
    %v495 = vsel %vm67, %v474, 0
    %497 = vmatprep.subr.mxu0 0.0
    %498 = vmatpush1.msra.mxu0 0.0
    %499 = vmatprep.subr.mxu0 0.0
    %500 = vmatpush1.msra.mxu0 0.0
    %501 = vmatprep.subr.mxu0 0.0
    %502 = vmatpush1.msra.mxu0 0.0
    %503 = vmatprep.subr.mxu0 0.0
    %504 = vmatpush1.msra.mxu0 0.0
    %505 = vmatprep.subr.mxu0 0.0
    %506 = vmatpush1.msra.mxu0 0.0
    %507 = vmatprep.subr.mxu0 0.0
    %508 = vmatpush1.msra.mxu0 0.0
    %509 = vmatprep.subr.mxu0 0.0
    %510 = vmatpush1.msra.mxu0 0.0
    %511 = vmatprep.subr.mxu0 0.0
    %512 = vmatpush1.msra.mxu0 0.0
    %513 = vmatprep.subr.mxu0 0.0
    %514 = vmatpush1.msra.mxu0 0.0
    %515 = vmatprep.subr.mxu0 0.0
    %516 = vmatpush1.msra.mxu0 0.0
    %517 = vmatprep.subr.mxu0 0.0
    %518 = vmatpush1.msra.mxu0 0.0
    %519 = vmatprep.subr.mxu0 0.0
    %520 = vmatpush1.msra.mxu0 0.0
    %521 = vmatprep.subr.mxu0 0.0
    %522 = vmatpush1.msra.mxu0 %v213
    %523 = vmatprep.subr.mxu0 0.0
    %524 = vmatpush1.msra.mxu0 %v212
    %525 = vmatprep.subr.mxu0 0.0
    %526 = vmatpush1.msra.mxu0 %v211
    %527 = vmatprep.subr.mxu0 0.0
    %528 = vmatpush1.msra.mxu0 %v210
    %529 = vmatprep.subr.mxu0 0.0
    %530 = vmatpush2.msra.mxu0 0.0
    %531 = vmatprep.subr.mxu0 0.0
    %532 = vmatpush2.msra.mxu0 0.0
    %533 = vmatprep.subr.mxu0 0.0
    %534 = vmatpush2.msra.mxu0 0.0
    %535 = vmatprep.subr.mxu0 0.0
    %536 = vmatpush2.msra.mxu0 0.0
    %537 = vmatprep.subr.mxu0 0.0
    %538 = vmatpush2.msra.mxu0 0.0
    %539 = vmatprep.subr.mxu0 0.0
    %540 = vmatpush2.msra.mxu0 0.0
    %541 = vmatprep.subr.mxu0 0.0
    %542 = vmatpush2.msra.mxu0 0.0
    %543 = vmatprep.subr.mxu0 0.0
    %544 = vmatpush2.msra.mxu0 0.0
    %545 = vmatprep.subr.mxu0 0.0
    %546 = vmatpush2.msra.mxu0 0.0
    %547 = vmatprep.subr.mxu0 0.0
    %548 = vmatpush2.msra.mxu0 0.0
    %549 = vmatprep.subr.mxu0 0.0
    %550 = vmatpush2.msra.mxu0 0.0
    %551 = vmatprep.subr.mxu0 0.0
    %552 = vmatpush2.msra.mxu0 0.0
    %553 = vmatprep.subr.mxu0 0.0
    %554 = vmatpush2.msra.mxu0 0.0
    %555 = vmatprep.subr.mxu0 0.0
    %556 = vmatpush2.msra.mxu0 0.0
    %557 = vmatprep.subr.mxu0 0.0
    %558 = vmatpush2.msra.mxu0 0.0
    %559 = vmatprep.subr.mxu0 0.0
    %560 = vmatpush2.msra.mxu0 0.0
    %561 = vmatprep.mubr.f32.mxu0 0.0
    %562 = vmatmul.mubr.f32.gmra.mxu0 %v495
    %v563 = vpop.f32.mrf.mxu0
    %v564 = vadd.f32 0.0, %v563
    %v565 = vpop.f32.mrf.mxu0
    %566 = vdwg.mxu0
    %v567 = vadd.f32 %v477, %v564
    %v568 = vxor.u32 %v567, 2147483648
    %v569 = vmul.f32 %v568, 1.442695
    %v570 = vpow.pop %v569
    %v571 = vadd.f32 %v570, 1.0
    %v572 = vrcp.pop %v571
    %v573 = vmul.f32 1.0, %v572
    %575 = vrot.lane.b32.xlu0 %v564, 96
    %v576 = vpop.permute.xlu0 %575
    %v578 = vadd.f32 %v486, %v576
    %v579 = vxor.u32 %v578, 2147483648
    %v580 = vmul.f32 %v579, 1.442695
    %v581 = vpow.pop %v580
    %v582 = vadd.f32 %v581, 1.0
    %v583 = vrcp.pop %v582
    %v584 = vmul.f32 1.0, %v583
    %v585 = vadd.f32 %v564, %v332
    %587 = vrot.lane.b32.xlu0 %v585, 64
    %v588 = vpop.permute.xlu0 %587
    %v590 = vmul.f32 %v573, %v588
    %v591 = vadd.f32 %v493, %v590
    %v592 = vtanh.pop %v591
    %v593 = vsub.f32 %v474, %v592
    %v594 = vmul.f32 %v584, %v593
    %v595 = vadd.f32 %v592, %v594
    %v596 = vsel %vm209, 2, 5
    %vm597 = vcmp.gt.s32.totalorder %v348, %v596
    %v598 = vsel %vm597, %v595, %v474
    %v599 = vld [vmem:[#allocation2 + $0x18] sm:$0xff]
    %v600 = vld [vmem:[#allocation2 + $0x20] sm:$0xff]
    %v601 = vsel %vm209, %v599, %v600
    %603 = vrot.lane.b32.xlu0 %v599, 96
    %v604 = vpop.permute.xlu0 %603
    %607 = vrot.lane.b32.xlu0 %v600, 96
    %v608 = vpop.permute.xlu0 %607
    %v610 = vsel %vm209, %v604, %v608
    %611 = vrot.lane.b32.xlu0 %v599, 64
    %v612 = vpop.permute.xlu0 %611
    %614 = vrot.lane.b32.xlu0 %v600, 64
    %v615 = vpop.permute.xlu0 %614
    %v617 = vsel %vm209, %v612, %v615
    %v619 = vsel %vm67, %v598, 0
    %621 = vmatprep.subr.mxu0 0.0
    %622 = vmatpush1.msra.mxu0 0.0
    %623 = vmatprep.subr.mxu0 0.0
    %624 = vmatpush1.msra.mxu0 0.0
    %625 = vmatprep.subr.mxu0 0.0
    %626 = vmatpush1.msra.mxu0 0.0
    %627 = vmatprep.subr.mxu0 0.0
    %628 = vmatpush1.msra.mxu0 0.0
    %629 = vmatprep.subr.mxu0 0.0
    %630 = vmatpush1.msra.mxu0 0.0
    %631 = vmatprep.subr.mxu0 0.0
    %632 = vmatpush1.msra.mxu0 0.0
    %633 = vmatprep.subr.mxu0 0.0
    %634 = vmatpush1.msra.mxu0 0.0
    %635 = vmatprep.subr.mxu0 0.0
    %636 = vmatpush1.msra.mxu0 0.0
    %637 = vmatprep.subr.mxu0 0.0
    %638 = vmatpush1.msra.mxu0 0.0
    %639 = vmatprep.subr.mxu0 0.0
    %640 = vmatpush1.msra.mxu0 0.0
    %641 = vmatprep.subr.mxu0 0.0
    %642 = vmatpush1.msra.mxu0 0.0
    %643 = vmatprep.subr.mxu0 0.0
    %644 = vmatpush1.msra.mxu0 0.0
    %645 = vmatprep.subr.mxu0 0.0
    %646 = vmatpush1.msra.mxu0 %v213
    %647 = vmatprep.subr.mxu0 0.0
    %648 = vmatpush1.msra.mxu0 %v212
    %649 = vmatprep.subr.mxu0 0.0
    %650 = vmatpush1.msra.mxu0 %v211
    %651 = vmatprep.subr.mxu0 0.0
    %652 = vmatpush1.msra.mxu0 %v210
    %653 = vmatprep.subr.mxu0 0.0
    %654 = vmatpush2.msra.mxu0 0.0
    %655 = vmatprep.subr.mxu0 0.0
    %656 = vmatpush2.msra.mxu0 0.0
    %657 = vmatprep.subr.mxu0 0.0
    %658 = vmatpush2.msra.mxu0 0.0
    %659 = vmatprep.subr.mxu0 0.0
    %660 = vmatpush2.msra.mxu0 0.0
    %661 = vmatprep.subr.mxu0 0.0
    %662 = vmatpush2.msra.mxu0 0.0
    %663 = vmatprep.subr.mxu0 0.0
    %664 = vmatpush2.msra.mxu0 0.0
    %665 = vmatprep.subr.mxu0 0.0
    %666 = vmatpush2.msra.mxu0 0.0
    %667 = vmatprep.subr.mxu0 0.0
    %668 = vmatpush2.msra.mxu0 0.0
    %669 = vmatprep.subr.mxu0 0.0
    %670 = vmatpush2.msra.mxu0 0.0
    %671 = vmatprep.subr.mxu0 0.0
    %672 = vmatpush2.msra.mxu0 0.0
    %673 = vmatprep.subr.mxu0 0.0
    %674 = vmatpush2.msra.mxu0 0.0
    %675 = vmatprep.subr.mxu0 0.0
    %676 = vmatpush2.msra.mxu0 0.0
    %677 = vmatprep.subr.mxu0 0.0
    %678 = vmatpush2.msra.mxu0 0.0
    %679 = vmatprep.subr.mxu0 0.0
    %680 = vmatpush2.msra.mxu0 0.0
    %681 = vmatprep.subr.mxu0 0.0
    %682 = vmatpush2.msra.mxu0 0.0
    %683 = vmatprep.subr.mxu0 0.0
    %684 = vmatpush2.msra.mxu0 0.0
    %685 = vmatprep.mubr.f32.mxu0 0.0
    %686 = vmatmul.mubr.f32.gmra.mxu0 %v619
    %v687 = vpop.f32.mrf.mxu0
    %v688 = vadd.f32 0.0, %v687
    %v689 = vpop.f32.mrf.mxu0
    %690 = vdwg.mxu0
    %v691 = vadd.f32 %v601, %v688
    %v692 = vxor.u32 %v691, 2147483648
    %v693 = vmul.f32 %v692, 1.442695
    %v694 = vpow.pop %v693
    %v695 = vadd.f32 %v694, 1.0
    %v696 = vrcp.pop %v695
    %v697 = vmul.f32 1.0, %v696
    %699 = vrot.lane.b32.xlu0 %v688, 96
    %v700 = vpop.permute.xlu0 %699
    %v702 = vadd.f32 %v610, %v700
    %v703 = vxor.u32 %v702, 2147483648
    %v704 = vmul.f32 %v703, 1.442695
    %v705 = vpow.pop %v704
    %v706 = vadd.f32 %v705, 1.0
    %v707 = vrcp.pop %v706
    %v708 = vmul.f32 1.0, %v707
    %v709 = vadd.f32 %v688, %v332
    %711 = vrot.lane.b32.xlu0 %v709, 64
    %v712 = vpop.permute.xlu0 %711
    %v714 = vmul.f32 %v697, %v712
    %v715 = vadd.f32 %v617, %v714
    %v716 = vtanh.pop %v715
    %v717 = vsub.f32 %v598, %v716
    %v718 = vmul.f32 %v708, %v717
    %v719 = vadd.f32 %v716, %v718
    %v720 = vsel %vm209, 3, 4
    %vm721 = vcmp.gt.s32.totalorder %v348, %v720
    %v722 = vsel %vm721, %v719, %v598
    %v723 = vsel %vm209, %v600, %v599
    %v724 = vsel %vm209, %v608, %v604
    %v725 = vsel %vm209, %v615, %v612
    %v727 = vsel %vm67, %v722, 0
    %729 = vmatprep.subr.mxu0 0.0
    %730 = vmatpush1.msra.mxu0 0.0
    %731 = vmatprep.subr.mxu0 0.0
    %732 = vmatpush1.msra.mxu0 0.0
    %733 = vmatprep.subr.mxu0 0.0
    %734 = vmatpush1.msra.mxu0 0.0
    %735 = vmatprep.subr.mxu0 0.0
    %736 = vmatpush1.msra.mxu0 0.0
    %737 = vmatprep.subr.mxu0 0.0
    %738 = vmatpush1.msra.mxu0 0.0
    %739 = vmatprep.subr.mxu0 0.0
    %740 = vmatpush1.msra.mxu0 0.0
    %741 = vmatprep.subr.mxu0 0.0
    %742 = vmatpush1.msra.mxu0 0.0
    %743 = vmatprep.subr.mxu0 0.0
    %744 = vmatpush1.msra.mxu0 0.0
    %745 = vmatprep.subr.mxu0 0.0
    %746 = vmatpush1.msra.mxu0 0.0
    %747 = vmatprep.subr.mxu0 0.0
    %748 = vmatpush1.msra.mxu0 0.0
    %749 = vmatprep.subr.mxu0 0.0
    %750 = vmatpush1.msra.mxu0 0.0
    %751 = vmatprep.subr.mxu0 0.0
    %752 = vmatpush1.msra.mxu0 0.0
    %753 = vmatprep.subr.mxu0 0.0
    %754 = vmatpush1.msra.mxu0 %v213
    %755 = vmatprep.subr.mxu0 0.0
    %756 = vmatpush1.msra.mxu0 %v212
    %757 = vmatprep.subr.mxu0 0.0
    %758 = vmatpush1.msra.mxu0 %v211
    %759 = vmatprep.subr.mxu0 0.0
    %760 = vmatpush1.msra.mxu0 %v210
    %761 = vmatprep.subr.mxu0 0.0
    %762 = vmatpush2.msra.mxu0 0.0
    %763 = vmatprep.subr.mxu0 0.0
    %764 = vmatpush2.msra.mxu0 0.0
    %765 = vmatprep.subr.mxu0 0.0
    %766 = vmatpush2.msra.mxu0 0.0
    %767 = vmatprep.subr.mxu0 0.0
    %768 = vmatpush2.msra.mxu0 0.0
    %769 = vmatprep.subr.mxu0 0.0
    %770 = vmatpush2.msra.mxu0 0.0
    %771 = vmatprep.subr.mxu0 0.0
    %772 = vmatpush2.msra.mxu0 0.0
    %773 = vmatprep.subr.mxu0 0.0
    %774 = vmatpush2.msra.mxu0 0.0
    %775 = vmatprep.subr.mxu0 0.0
    %776 = vmatpush2.msra.mxu0 0.0
    %777 = vmatprep.subr.mxu0 0.0
    %778 = vmatpush2.msra.mxu0 0.0
    %779 = vmatprep.subr.mxu0 0.0
    %780 = vmatpush2.msra.mxu0 0.0
    %781 = vmatprep.subr.mxu0 0.0
    %782 = vmatpush2.msra.mxu0 0.0
    %783 = vmatprep.subr.mxu0 0.0
    %784 = vmatpush2.msra.mxu0 0.0
    %785 = vmatprep.subr.mxu0 0.0
    %786 = vmatpush2.msra.mxu0 0.0
    %787 = vmatprep.subr.mxu0 0.0
    %788 = vmatpush2.msra.mxu0 0.0
    %789 = vmatprep.subr.mxu0 0.0
    %790 = vmatpush2.msra.mxu0 0.0
    %791 = vmatprep.subr.mxu0 0.0
    %792 = vmatpush2.msra.mxu0 0.0
    %793 = vmatprep.mubr.f32.mxu0 0.0
    %794 = vmatmul.mubr.f32.gmra.mxu0 %v727
    %v795 = vpop.f32.mrf.mxu0
    %v796 = vadd.f32 0.0, %v795
    %v797 = vpop.f32.mrf.mxu0
    %798 = vdwg.mxu0
    %v799 = vadd.f32 %v723, %v796
    %v800 = vxor.u32 %v799, 2147483648
    %v801 = vmul.f32 %v800, 1.442695
    %v802 = vpow.pop %v801
    %v803 = vadd.f32 %v802, 1.0
    %v804 = vrcp.pop %v803
    %v805 = vmul.f32 1.0, %v804
    %807 = vrot.lane.b32.xlu0 %v796, 96
    %v808 = vpop.permute.xlu0 %807
    %v810 = vadd.f32 %v724, %v808
    %v811 = vxor.u32 %v810, 2147483648
    %v812 = vmul.f32 %v811, 1.442695
    %v813 = vpow.pop %v812
    %v814 = vadd.f32 %v813, 1.0
    %v815 = vrcp.pop %v814
    %v816 = vmul.f32 1.0, %v815
    %v817 = vadd.f32 %v796, %v332
    %819 = vrot.lane.b32.xlu0 %v817, 64
    %v820 = vpop.permute.xlu0 %819
    %v822 = vmul.f32 %v805, %v820
    %v823 = vadd.f32 %v725, %v822
    %v824 = vtanh.pop %v823
    %v825 = vsub.f32 %v722, %v824
    %v826 = vmul.f32 %v816, %v825
    %v827 = vadd.f32 %v824, %v826
    %v828 = vsel %vm209, 4, 3
    %vm829 = vcmp.gt.s32.totalorder %v348, %v828
    %v830 = vsel %vm829, %v827, %v722
    %v831 = vsel %vm209, %v476, %v475
    %v832 = vsel %vm209, %v484, %v480
    %v833 = vsel %vm209, %v491, %v488
    %v835 = vsel %vm67, %v830, 0
    %837 = vmatprep.subr.mxu0 0.0
    %838 = vmatpush1.msra.mxu0 0.0
    %839 = vmatprep.subr.mxu0 0.0
    %840 = vmatpush1.msra.mxu0 0.0
    %841 = vmatprep.subr.mxu0 0.0
    %842 = vmatpush1.msra.mxu0 0.0
    %843 = vmatprep.subr.mxu0 0.0
    %844 = vmatpush1.msra.mxu0 0.0
    %845 = vmatprep.subr.mxu0 0.0
    %846 = vmatpush1.msra.mxu0 0.0
    %847 = vmatprep.subr.mxu0 0.0
    %848 = vmatpush1.msra.mxu0 0.0
    %849 = vmatprep.subr.mxu0 0.0
    %850 = vmatpush1.msra.mxu0 0.0
    %851 = vmatprep.subr.mxu0 0.0
    %852 = vmatpush1.msra.mxu0 0.0
    %853 = vmatprep.subr.mxu0 0.0
    %854 = vmatpush1.msra.mxu0 0.0
    %855 = vmatprep.subr.mxu0 0.0
    %856 = vmatpush1.msra.mxu0 0.0
    %857 = vmatprep.subr.mxu0 0.0
    %858 = vmatpush1.msra.mxu0 0.0
    %859 = vmatprep.subr.mxu0 0.0
    %860 = vmatpush1.msra.mxu0 0.0
    %861 = vmatprep.subr.mxu0 0.0
    %862 = vmatpush1.msra.mxu0 %v213
    %863 = vmatprep.subr.mxu0 0.0
    %864 = vmatpush1.msra.mxu0 %v212
    %865 = vmatprep.subr.mxu0 0.0
    %866 = vmatpush1.msra.mxu0 %v211
    %867 = vmatprep.subr.mxu0 0.0
    %868 = vmatpush1.msra.mxu0 %v210
    %869 = vmatprep.subr.mxu0 0.0
    %870 = vmatpush2.msra.mxu0 0.0
    %871 = vmatprep.subr.mxu0 0.0
    %872 = vmatpush2.msra.mxu0 0.0
    %873 = vmatprep.subr.mxu0 0.0
    %874 = vmatpush2.msra.mxu0 0.0
    %875 = vmatprep.subr.mxu0 0.0
    %876 = vmatpush2.msra.mxu0 0.0
    %877 = vmatprep.subr.mxu0 0.0
    %878 = vmatpush2.msra.mxu0 0.0
    %879 = vmatprep.subr.mxu0 0.0
    %880 = vmatpush2.msra.mxu0 0.0
    %881 = vmatprep.subr.mxu0 0.0
    %882 = vmatpush2.msra.mxu0 0.0
    %883 = vmatprep.subr.mxu0 0.0
    %884 = vmatpush2.msra.mxu0 0.0
    %885 = vmatprep.subr.mxu0 0.0
    %886 = vmatpush2.msra.mxu0 0.0
    %887 = vmatprep.subr.mxu0 0.0
    %888 = vmatpush2.msra.mxu0 0.0
    %889 = vmatprep.subr.mxu0 0.0
    %890 = vmatpush2.msra.mxu0 0.0
    %891 = vmatprep.subr.mxu0 0.0
    %892 = vmatpush2.msra.mxu0 0.0
    %893 = vmatprep.subr.mxu0 0.0
    %894 = vmatpush2.msra.mxu0 0.0
    %895 = vmatprep.subr.mxu0 0.0
    %896 = vmatpush2.msra.mxu0 0.0
    %897 = vmatprep.subr.mxu0 0.0
    %898 = vmatpush2.msra.mxu0 0.0
    %899 = vmatprep.subr.mxu0 0.0
    %900 = vmatpush2.msra.mxu0 0.0
    %901 = vmatprep.mubr.f32.mxu0 0.0
    %902 = vmatmul.mubr.f32.gmra.mxu0 %v835
    %v903 = vpop.f32.mrf.mxu0
    %v904 = vadd.f32 0.0, %v903
    %v905 = vpop.f32.mrf.mxu0
    %906 = vdwg.mxu0
    %v907 = vadd.f32 %v831, %v904
    %v908 = vxor.u32 %v907, 2147483648
    %v909 = vmul.f32 %v908, 1.442695
    %v910 = vpow.pop %v909
    %v911 = vadd.f32 %v910, 1.0
    %v912 = vrcp.pop %v911
    %v913 = vmul.f32 1.0, %v912
    %915 = vrot.lane.b32.xlu0 %v904, 96
    %v916 = vpop.permute.xlu0 %915
    %v918 = vadd.f32 %v832, %v916
    %v919 = vxor.u32 %v918, 2147483648
    %v920 = vmul.f32 %v919, 1.442695
    %v921 = vpow.pop %v920
    %v922 = vadd.f32 %v921, 1.0
    %v923 = vrcp.pop %v922
    %v924 = vmul.f32 1.0, %v923
    %v925 = vadd.f32 %v904, %v332
    %927 = vrot.lane.b32.xlu0 %v925, 64
    %v928 = vpop.permute.xlu0 %927
    %v930 = vmul.f32 %v913, %v928
    %v931 = vadd.f32 %v833, %v930
    %v932 = vtanh.pop %v931
    %v933 = vsub.f32 %v830, %v932
    %v934 = vmul.f32 %v924, %v933
    %v935 = vadd.f32 %v932, %v934
    %v936 = vsel %vm209, 5, 2
    %vm937 = vcmp.gt.s32.totalorder %v348, %v936
    %v938 = vsel %vm937, %v935, %v830
    %v939 = vsel %vm209, %v352, %v351
    %v940 = vsel %vm209, %v360, %v356
    %v941 = vsel %vm209, %v367, %v364
    %v943 = vsel %vm67, %v938, 0
    %945 = vmatprep.subr.mxu0 0.0
    %946 = vmatpush1.msra.mxu0 0.0
    %947 = vmatprep.subr.mxu0 0.0
    %948 = vmatpush1.msra.mxu0 0.0
    %949 = vmatprep.subr.mxu0 0.0
    %950 = vmatpush1.msra.mxu0 0.0
    %951 = vmatprep.subr.mxu0 0.0
    %952 = vmatpush1.msra.mxu0 0.0
    %953 = vmatprep.subr.mxu0 0.0
    %954 = vmatpush1.msra.mxu0 0.0
    %955 = vmatprep.subr.mxu0 0.0
    %956 = vmatpush1.msra.mxu0 0.0
    %957 = vmatprep.subr.mxu0 0.0
    %958 = vmatpush1.msra.mxu0 0.0
    %959 = vmatprep.subr.mxu0 0.0
    %960 = vmatpush1.msra.mxu0 0.0
    %961 = vmatprep.subr.mxu0 0.0
    %962 = vmatpush1.msra.mxu0 0.0
    %963 = vmatprep.subr.mxu0 0.0
    %964 = vmatpush1.msra.mxu0 0.0
    %965 = vmatprep.subr.mxu0 0.0
    %966 = vmatpush1.msra.mxu0 0.0
    %967 = vmatprep.subr.mxu0 0.0
    %968 = vmatpush1.msra.mxu0 0.0
    %969 = vmatprep.subr.mxu0 0.0
    %970 = vmatpush1.msra.mxu0 %v213
    %971 = vmatprep.subr.mxu0 0.0
    %972 = vmatpush1.msra.mxu0 %v212
    %973 = vmatprep.subr.mxu0 0.0
    %974 = vmatpush1.msra.mxu0 %v211
    %975 = vmatprep.subr.mxu0 0.0
    %976 = vmatpush1.msra.mxu0 %v210
    %977 = vmatprep.subr.mxu0 0.0
    %978 = vmatpush2.msra.mxu0 0.0
    %979 = vmatprep.subr.mxu0 0.0
    %980 = vmatpush2.msra.mxu0 0.0
    %981 = vmatprep.subr.mxu0 0.0
    %982 = vmatpush2.msra.mxu0 0.0
    %983 = vmatprep.subr.mxu0 0.0
    %984 = vmatpush2.msra.mxu0 0.0
    %985 = vmatprep.subr.mxu0 0.0
    %986 = vmatpush2.msra.mxu0 0.0
    %987 = vmatprep.subr.mxu0 0.0
    %988 = vmatpush2.msra.mxu0 0.0
    %989 = vmatprep.subr.mxu0 0.0
    %990 = vmatpush2.msra.mxu0 0.0
    %991 = vmatprep.subr.mxu0 0.0
    %992 = vmatpush2.msra.mxu0 0.0
    %993 = vmatprep.subr.mxu0 0.0
    %994 = vmatpush2.msra.mxu0 0.0
    %995 = vmatprep.subr.mxu0 0.0
    %996 = vmatpush2.msra.mxu0 0.0
    %997 = vmatprep.subr.mxu0 0.0
    %998 = vmatpush2.msra.mxu0 0.0
    %999 = vmatprep.subr.mxu0 0.0
    %1000 = vmatpush2.msra.mxu0 0.0
    %1001 = vmatprep.subr.mxu0 0.0
    %1002 = vmatpush2.msra.mxu0 0.0
    %1003 = vmatprep.subr.mxu0 0.0
    %1004 = vmatpush2.msra.mxu0 0.0
    %1005 = vmatprep.subr.mxu0 0.0
    %1006 = vmatpush2.msra.mxu0 0.0
    %1007 = vmatprep.subr.mxu0 0.0
    %1008 = vmatpush2.msra.mxu0 0.0
    %1009 = vmatprep.mubr.f32.mxu0 0.0
    %1010 = vmatmul.mubr.f32.gmra.mxu0 %v943
    %v1011 = vpop.f32.mrf.mxu0
    %v1012 = vadd.f32 0.0, %v1011
    %v1013 = vpop.f32.mrf.mxu0
    %1014 = vdwg.mxu0
    %v1015 = vadd.f32 %v939, %v1012
    %v1016 = vxor.u32 %v1015, 2147483648
    %v1017 = vmul.f32 %v1016, 1.442695
    %v1018 = vpow.pop %v1017
    %v1019 = vadd.f32 %v1018, 1.0
    %v1020 = vrcp.pop %v1019
    %v1021 = vmul.f32 1.0, %v1020
    %1023 = vrot.lane.b32.xlu0 %v1012, 96
    %v1024 = vpop.permute.xlu0 %1023
    %v1026 = vadd.f32 %v940, %v1024
    %v1027 = vxor.u32 %v1026, 2147483648
    %v1028 = vmul.f32 %v1027, 1.442695
    %v1029 = vpow.pop %v1028
    %v1030 = vadd.f32 %v1029, 1.0
    %v1031 = vrcp.pop %v1030
    %v1032 = vmul.f32 1.0, %v1031
    %v1033 = vadd.f32 %v1012, %v332
    %1035 = vrot.lane.b32.xlu0 %v1033, 64
    %v1036 = vpop.permute.xlu0 %1035
    %v1038 = vmul.f32 %v1021, %v1036
    %v1039 = vadd.f32 %v941, %v1038
    %v1040 = vtanh.pop %v1039
    %v1041 = vsub.f32 %v938, %v1040
    %v1042 = vmul.f32 %v1032, %v1041
    %v1043 = vadd.f32 %v1040, %v1042
    %v1044 = vsel %vm209, 6, 1
    %vm1045 = vcmp.gt.s32.totalorder %v348, %v1044
    %v1046 = vsel %vm1045, %v1043, %v938
    %v1047 = vsel %vm209, %v217, %v216
    %v1048 = vsel %vm209, %v225, %v221
    %v1049 = vsel %vm209, %v232, %v229
    %v1051 = vsel %vm67, %v1046, 0
    %1053 = vmatprep.subr.mxu0 0.0
    %1054 = vmatpush1.msra.mxu0 0.0
    %1055 = vmatprep.subr.mxu0 0.0
    %1056 = vmatpush1.msra.mxu0 0.0
    %1057 = vmatprep.subr.mxu0 0.0
    %1058 = vmatpush1.msra.mxu0 0.0
    %1059 = vmatprep.subr.mxu0 0.0
    %1060 = vmatpush1.msra.mxu0 0.0
    %1061 = vmatprep.subr.mxu0 0.0
    %1062 = vmatpush1.msra.mxu0 0.0
    %1063 = vmatprep.subr.mxu0 0.0
    %1064 = vmatpush1.msra.mxu0 0.0
    %1065 = vmatprep.subr.mxu0 0.0
    %1066 = vmatpush1.msra.mxu0 0.0
    %1067 = vmatprep.subr.mxu0 0.0
    %1068 = vmatpush1.msra.mxu0 0.0
    %1069 = vmatprep.subr.mxu0 0.0
    %1070 = vmatpush1.msra.mxu0 0.0
    %1071 = vmatprep.subr.mxu0 0.0
    %1072 = vmatpush1.msra.mxu0 0.0
    %1073 = vmatprep.subr.mxu0 0.0
    %1074 = vmatpush1.msra.mxu0 0.0
    %1075 = vmatprep.subr.mxu0 0.0
    %1076 = vmatpush1.msra.mxu0 0.0
    %1077 = vmatprep.subr.mxu0 0.0
    %1078 = vmatpush1.msra.mxu0 %v213
    %1079 = vmatprep.subr.mxu0 0.0
    %1080 = vmatpush1.msra.mxu0 %v212
    %1081 = vmatprep.subr.mxu0 0.0
    %1082 = vmatpush1.msra.mxu0 %v211
    %1083 = vmatprep.subr.mxu0 0.0
    %1084 = vmatpush1.msra.mxu0 %v210
    %1085 = vmatprep.subr.mxu0 0.0
    %1086 = vmatpush2.msra.mxu0 0.0
    %1087 = vmatprep.subr.mxu0 0.0
    %1088 = vmatpush2.msra.mxu0 0.0
    %1089 = vmatprep.subr.mxu0 0.0
    %1090 = vmatpush2.msra.mxu0 0.0
    %1091 = vmatprep.subr.mxu0 0.0
    %1092 = vmatpush2.msra.mxu0 0.0
    %1093 = vmatprep.subr.mxu0 0.0
    %1094 = vmatpush2.msra.mxu0 0.0
    %1095 = vmatprep.subr.mxu0 0.0
    %1096 = vmatpush2.msra.mxu0 0.0
    %1097 = vmatprep.subr.mxu0 0.0
    %1098 = vmatpush2.msra.mxu0 0.0
    %1099 = vmatprep.subr.mxu0 0.0
    %1100 = vmatpush2.msra.mxu0 0.0
    %1101 = vmatprep.subr.mxu0 0.0
    %1102 = vmatpush2.msra.mxu0 0.0
    %1103 = vmatprep.subr.mxu0 0.0
    %1104 = vmatpush2.msra.mxu0 0.0
    %1105 = vmatprep.subr.mxu0 0.0
    %1106 = vmatpush2.msra.mxu0 0.0
    %1107 = vmatprep.subr.mxu0 0.0
    %1108 = vmatpush2.msra.mxu0 0.0
    %1109 = vmatprep.subr.mxu0 0.0
    %1110 = vmatpush2.msra.mxu0 0.0
    %1111 = vmatprep.subr.mxu0 0.0
    %1112 = vmatpush2.msra.mxu0 0.0
    %1113 = vmatprep.subr.mxu0 0.0
    %1114 = vmatpush2.msra.mxu0 0.0
    %1115 = vmatprep.subr.mxu0 0.0
    %1116 = vmatpush2.msra.mxu0 0.0
    %1117 = vmatprep.mubr.f32.mxu0 0.0
    %1118 = vmatmul.mubr.f32.gmra.mxu0 %v1051
    %v1119 = vpop.f32.mrf.mxu0
    %v1120 = vadd.f32 0.0, %v1119
    %v1121 = vpop.f32.mrf.mxu0
    %1122 = vdwg.mxu0
    %v1123 = vadd.f32 %v1047, %v1120
    %v1124 = vxor.u32 %v1123, 2147483648
    %v1125 = vmul.f32 %v1124, 1.442695
    %v1126 = vpow.pop %v1125
    %v1127 = vadd.f32 %v1126, 1.0
    %v1128 = vrcp.pop %v1127
    %v1129 = vmul.f32 1.0, %v1128
    %1131 = vrot.lane.b32.xlu0 %v1120, 96
    %v1132 = vpop.permute.xlu0 %1131
    %v1134 = vadd.f32 %v1048, %v1132
    %v1135 = vxor.u32 %v1134, 2147483648
    %v1136 = vmul.f32 %v1135, 1.442695
    %v1137 = vpow.pop %v1136
    %v1138 = vadd.f32 %v1137, 1.0
    %v1139 = vrcp.pop %v1138
    %v1140 = vmul.f32 1.0, %v1139
    %v1141 = vadd.f32 %v1120, %v332
    %1143 = vrot.lane.b32.xlu0 %v1141, 64
    %v1144 = vpop.permute.xlu0 %1143
    %v1146 = vmul.f32 %v1129, %v1144
    %v1147 = vadd.f32 %v1049, %v1146
    %v1148 = vtanh.pop %v1147
    %v1149 = vsub.f32 %v1046, %v1148
    %v1150 = vmul.f32 %v1140, %v1149
    %v1151 = vadd.f32 %v1148, %v1150
    %v1152 = vsel %vm209, %v344, %v1151
    %vm1153 = vcmp.gt.s32.totalorder %v206, 0
    %v1154 = vsel %vm1153, 1, 0
    %1155 = vset.pattern.permute.xlu0 0
    %1156 = vperm.xlu0 %1155, %v1154
    %v1157 = vpop.permute.xlu0 %1156
    %vm1158 = vcmp.eq.s32.totalorder %v1157, 1
    %v1159 = vsel %vm1158, %v1152, 0.0
    %1160 = vst.msk [vmem:[#allocation3] sm:$0xff] %vm67, %v1159
    %v1161 = vsel %vm209, %v471, %v1043
    %vm1162 = vcmp.gt.s32.totalorder %v206, 1
    %v1163 = vsel %vm1162, 1, 0
    %1164 = vset.pattern.permute.xlu0 0
    %1165 = vperm.xlu0 %1164, %v1163
    %v1166 = vpop.permute.xlu0 %1165
    %vm1167 = vcmp.eq.s32.totalorder %v1166, 1
    %v1168 = vsel %vm1167, %v1161, 0.0
    %1169 = vst.msk [vmem:[#allocation3 + $0x8] sm:$0xff] %vm67, %v1168
    %v1170 = vsel %vm209, %v595, %v935
    %vm1171 = vcmp.gt.s32.totalorder %v206, 2
    %v1172 = vsel %vm1171, 1, 0
    %1173 = vset.pattern.permute.xlu0 0
    %1174 = vperm.xlu0 %1173, %v1172
    %v1175 = vpop.permute.xlu0 %1174
    %vm1176 = vcmp.eq.s32.totalorder %v1175, 1
    %v1177 = vsel %vm1176, %v1170, 0.0
    %1178 = vst.msk [vmem:[#allocation3 + $0x10] sm:$0xff] %vm67, %v1177
    %v1179 = vsel %vm209, %v719, %v827
    %vm1180 = vcmp.gt.s32.totalorder %v206, 3
    %v1181 = vsel %vm1180, 1, 0
    %1182 = vset.pattern.permute.xlu0 0
    %1183 = vperm.xlu0 %1182, %v1181
    %v1184 = vpop.permute.xlu0 %1183
    %vm1185 = vcmp.eq.s32.totalorder %v1184, 1
    %v1186 = vsel %vm1185, %v1179, 0.0
    %1187 = vst.msk [vmem:[#allocation3 + $0x18] sm:$0xff] %vm67, %v1186
    %v1188 = vsel %vm209, %v827, %v719
    %vm1189 = vcmp.gt.s32.totalorder %v206, 4
    %v1190 = vsel %vm1189, 1, 0
    %1191 = vset.pattern.permute.xlu0 0
    %1192 = vperm.xlu0 %1191, %v1190
    %v1193 = vpop.permute.xlu0 %1192
    %vm1194 = vcmp.eq.s32.totalorder %v1193, 1
    %v1195 = vsel %vm1194, %v1188, 0.0
    %1196 = vst.msk [vmem:[#allocation3 + $0x20] sm:$0xff] %vm67, %v1195
    %v1197 = vsel %vm209, %v935, %v595
    %vm1198 = vcmp.gt.s32.totalorder %v206, 5
    %v1199 = vsel %vm1198, 1, 0
    %1200 = vset.pattern.permute.xlu0 0
    %1201 = vperm.xlu0 %1200, %v1199
    %v1202 = vpop.permute.xlu0 %1201
    %vm1203 = vcmp.eq.s32.totalorder %v1202, 1
    %v1204 = vsel %vm1203, %v1197, 0.0
    %1205 = vst.msk [vmem:[#allocation3 + $0x28] sm:$0xff] %vm67, %v1204
    %v1206 = vsel %vm209, %v1043, %v471
    %vm1207 = vcmp.gt.s32.totalorder %v206, 6
    %v1208 = vsel %vm1207, 1, 0
    %1209 = vset.pattern.permute.xlu0 0
    %1210 = vperm.xlu0 %1209, %v1208
    %v1211 = vpop.permute.xlu0 %1210
    %vm1212 = vcmp.eq.s32.totalorder %v1211, 1
    %v1213 = vsel %vm1212, %v1206, 0.0
    %1214 = vst.msk [vmem:[#allocation3 + $0x30] sm:$0xff] %vm67, %v1213
    %v1215 = vsel %vm209, %v1151, %v344
    %vm1216 = vcmp.gt.s32.totalorder %v206, 7
    %v1217 = vsel %vm1216, 1, 0
    %1218 = vset.pattern.permute.xlu0 0
    %1219 = vperm.xlu0 %1218, %v1217
    %v1220 = vpop.permute.xlu0 %1219
    %vm1221 = vcmp.eq.s32.totalorder %v1220, 1
    %v1222 = vsel %vm1221, %v1215, 0.0
    %1223 = vst.msk [vmem:[#allocation3 + $0x38] sm:$0xff] %vm67, %v1222
    %v1224 = vld [vmem:[#allocation3] sm:$0xff]
    %v1225 = vld [vmem:[#allocation3 + $0x8] sm:$0xff]
    %v1226 = vld [vmem:[#allocation3 + $0x10] sm:$0xff]
    %v1227 = vld [vmem:[#allocation3 + $0x18] sm:$0xff]
    %v1228 = vld [vmem:[#allocation3 + $0x20] sm:$0xff]
    %v1229 = vld [vmem:[#allocation3 + $0x28] sm:$0xff]
    %v1230 = vld [vmem:[#allocation3 + $0x30] sm:$0xff]
    %v1231 = vld [vmem:[#allocation3 + $0x38] sm:$0xff]
    %v1232 = vld [vmem:[%s7] sm:$0xff]
    %v1233 = vld [vmem:[%s7 + $0x8] sm:$0xff]
    %v1234 = vld [vmem:[%s7 + $0x10] sm:$0xff]
    %v1235 = vld [vmem:[%s7 + $0x18] sm:$0xff]
    %v1236 = vld [vmem:[%s8] sm:$0x1]
    %v1238 = vlaneseq
    %v1239 = vshrl.u32 %v1238, 7
    %v1240 = vsub.s32 0, %v1239
    %v1241 = vrot.slane %v1236, %v1240
    %v1244 = vsel %vm67, %v1224, 0
    %v1247 = vsel %vm67, %v1225, 0
    %v1250 = vsel %vm67, %v1226, 0
    %v1253 = vsel %vm67, %v1227, 0
    %v1256 = vsel %vm67, %v1228, 0
    %v1259 = vsel %vm67, %v1229, 0
    %v1262 = vsel %vm67, %v1230, 0
    %v1265 = vsel %vm67, %v1231, 0
    %1267 = vmatprep.subr.mxu0 0.0
    %1268 = vmatpush1.msra.mxu0 0.0
    %1269 = vmatprep.subr.mxu0 0.0
    %1270 = vmatpush1.msra.mxu0 0.0
    %1271 = vmatprep.subr.mxu0 0.0
    %1272 = vmatpush1.msra.mxu0 0.0
    %1273 = vmatprep.subr.mxu0 0.0
    %1274 = vmatpush1.msra.mxu0 0.0
    %1275 = vmatprep.subr.mxu0 0.0
    %1276 = vmatpush1.msra.mxu0 0.0
    %1277 = vmatprep.subr.mxu0 0.0
    %1278 = vmatpush1.msra.mxu0 0.0
    %1279 = vmatprep.subr.mxu0 0.0
    %1280 = vmatpush1.msra.mxu0 0.0
    %1281 = vmatprep.subr.mxu0 0.0
    %1282 = vmatpush1.msra.mxu0 0.0
    %1283 = vmatprep.subr.mxu0 0.0
    %1284 = vmatpush1.msra.mxu0 0.0
    %1285 = vmatprep.subr.mxu0 0.0
    %1286 = vmatpush1.msra.mxu0 0.0
    %1287 = vmatprep.subr.mxu0 0.0
    %1288 = vmatpush1.msra.mxu0 0.0
    %1289 = vmatprep.subr.mxu0 0.0
    %1290 = vmatpush1.msra.mxu0 0.0
    %1291 = vmatprep.subr.mxu0 0.0
    %1292 = vmatpush1.msra.mxu0 %v1235
    %1293 = vmatprep.subr.mxu0 0.0
    %1294 = vmatpush1.msra.mxu0 %v1234
    %1295 = vmatprep.subr.mxu0 0.0
    %1296 = vmatpush1.msra.mxu0 %v1233
    %1297 = vmatprep.subr.mxu0 0.0
    %1298 = vmatpush1.msra.mxu0 %v1232
    %1299 = vmatprep.subr.mxu0 0.0
    %1300 = vmatpush2.msra.mxu0 0.0
    %1301 = vmatprep.subr.mxu0 0.0
    %1302 = vmatpush2.msra.mxu0 0.0
    %1303 = vmatprep.subr.mxu0 0.0
    %1304 = vmatpush2.msra.mxu0 0.0
    %1305 = vmatprep.subr.mxu0 0.0
    %1306 = vmatpush2.msra.mxu0 0.0
    %1307 = vmatprep.subr.mxu0 0.0
    %1308 = vmatpush2.msra.mxu0 0.0
    %1309 = vmatprep.subr.mxu0 0.0
    %1310 = vmatpush2.msra.mxu0 0.0
    %1311 = vmatprep.subr.mxu0 0.0
    %1312 = vmatpush2.msra.mxu0 0.0
    %1313 = vmatprep.subr.mxu0 0.0
    %1314 = vmatpush2.msra.mxu0 0.0
    %1315 = vmatprep.subr.mxu0 0.0
    %1316 = vmatpush2.msra.mxu0 0.0
    %1317 = vmatprep.subr.mxu0 0.0
    %1318 = vmatpush2.msra.mxu0 0.0
    %1319 = vmatprep.subr.mxu0 0.0
    %1320 = vmatpush2.msra.mxu0 0.0
    %1321 = vmatprep.subr.mxu0 0.0
    %1322 = vmatpush2.msra.mxu0 0.0
    %1323 = vmatprep.subr.mxu0 0.0
    %1324 = vmatpush2.msra.mxu0 0.0
    %1325 = vmatprep.subr.mxu0 0.0
    %1326 = vmatpush2.msra.mxu0 0.0
    %1327 = vmatprep.subr.mxu0 0.0
    %1328 = vmatpush2.msra.mxu0 0.0
    %1329 = vmatprep.subr.mxu0 0.0
    %1330 = vmatpush2.msra.mxu0 0.0
    %1331 = vmatprep.mubr.f32.mxu0 0.0
    %1332 = vmatmul.mubr.f32.gmra.mxu0 %v1244
    %v1333 = vpop.f32.mrf.mxu0
    %v1334 = vadd.f32 %v1241, %v1333
    %v1335 = vpop.f32.mrf.mxu0
    %1336 = vmatprep.mubr.f32.mxu0 0.0
    %1337 = vmatmul.mubr.f32.gmra.mxu0 %v1247
    %v1338 = vpop.f32.mrf.mxu0
    %v1339 = vadd.f32 %v1241, %v1338
    %v1340 = vpop.f32.mrf.mxu0
    %1341 = vmatprep.mubr.f32.mxu0 0.0
    %1342 = vmatmul.mubr.f32.gmra.mxu0 %v1250
    %v1343 = vpop.f32.mrf.mxu0
    %v1344 = vadd.f32 %v1241, %v1343
    %v1345 = vpop.f32.mrf.mxu0
    %1346 = vmatprep.mubr.f32.mxu0 0.0
    %1347 = vmatmul.mubr.f32.gmra.mxu0 %v1253
    %v1348 = vpop.f32.mrf.mxu0
    %v1349 = vadd.f32 %v1241, %v1348
    %v1350 = vpop.f32.mrf.mxu0
    %1351 = vmatprep.mubr.f32.mxu0 0.0
    %1352 = vmatmul.mubr.f32.gmra.mxu0 %v1256
    %v1353 = vpop.f32.mrf.mxu0
    %v1354 = vadd.f32 %v1241, %v1353
    %v1355 = vpop.f32.mrf.mxu0
    %1356 = vmatprep.mubr.f32.mxu0 0.0
    %1357 = vmatmul.mubr.f32.gmra.mxu0 %v1259
    %v1358 = vpop.f32.mrf.mxu0
    %v1359 = vadd.f32 %v1241, %v1358
    %v1360 = vpop.f32.mrf.mxu0
    %1361 = vmatprep.mubr.f32.mxu0 0.0
    %1362 = vmatmul.mubr.f32.gmra.mxu0 %v1262
    %v1363 = vpop.f32.mrf.mxu0
    %v1364 = vadd.f32 %v1241, %v1363
    %v1365 = vpop.f32.mrf.mxu0
    %1366 = vmatprep.mubr.f32.mxu0 0.0
    %1367 = vmatmul.mubr.f32.gmra.mxu0 %v1265
    %v1368 = vpop.f32.mrf.mxu0
    %v1369 = vadd.f32 %v1241, %v1368
    %v1370 = vpop.f32.mrf.mxu0
    %1371 = vdwg.mxu0
    %v1372 = vsel %vm67, %v1334, 0.0
    %1373 = vadd.xlane.f32.xlu0 %v1372
    %v1374 = vpop.xlane.xlu0 %1373
    %v1375 = vsel %vm67, %v1339, 0.0
    %1376 = vadd.xlane.f32.xlu0 %v1375
    %v1377 = vpop.xlane.xlu0 %1376
    %v1378 = vsel %vm67, %v1344, 0.0
    %1379 = vadd.xlane.f32.xlu0 %v1378
    %v1380 = vpop.xlane.xlu0 %1379
    %v1381 = vsel %vm67, %v1349, 0.0
    %1382 = vadd.xlane.f32.xlu0 %v1381
    %v1383 = vpop.xlane.xlu0 %1382
    %v1384 = vsel %vm67, %v1354, 0.0
    %1385 = vadd.xlane.f32.xlu0 %v1384
    %v1386 = vpop.xlane.xlu0 %1385
    %v1387 = vsel %vm67, %v1359, 0.0
    %1388 = vadd.xlane.f32.xlu0 %v1387
    %v1389 = vpop.xlane.xlu0 %1388
    %v1390 = vsel %vm67, %v1364, 0.0
    %1391 = vadd.xlane.f32.xlu0 %v1390
    %v1392 = vpop.xlane.xlu0 %1391
    %v1393 = vsel %vm67, %v1369, 0.0
    %1394 = vadd.xlane.f32.xlu0 %v1393
    %v1395 = vpop.xlane.xlu0 %1394
    %v1396 = vmul.f32 %v1334, %v1334
    %v1397 = vmul.f32 %v1339, %v1339
    %v1398 = vmul.f32 %v1344, %v1344
    %v1399 = vmul.f32 %v1349, %v1349
    %v1400 = vmul.f32 %v1354, %v1354
    %v1401 = vmul.f32 %v1359, %v1359
    %v1402 = vmul.f32 %v1364, %v1364
    %v1403 = vmul.f32 %v1369, %v1369
    %v1404 = vsel %vm67, %v1396, 0.0
    %1405 = vadd.xlane.f32.xlu0 %v1404
    %v1406 = vpop.xlane.xlu0 %1405
    %v1407 = vsel %vm67, %v1397, 0.0
    %1408 = vadd.xlane.f32.xlu0 %v1407
    %v1409 = vpop.xlane.xlu0 %1408
    %v1410 = vsel %vm67, %v1398, 0.0
    %1411 = vadd.xlane.f32.xlu0 %v1410
    %v1412 = vpop.xlane.xlu0 %1411
    %v1413 = vsel %vm67, %v1399, 0.0
    %1414 = vadd.xlane.f32.xlu0 %v1413
    %v1415 = vpop.xlane.xlu0 %1414
    %v1416 = vsel %vm67, %v1400, 0.0
    %1417 = vadd.xlane.f32.xlu0 %v1416
    %v1418 = vpop.xlane.xlu0 %1417
    %v1419 = vsel %vm67, %v1401, 0.0
    %1420 = vadd.xlane.f32.xlu0 %v1419
    %v1421 = vpop.xlane.xlu0 %1420
    %v1422 = vsel %vm67, %v1402, 0.0
    %1423 = vadd.xlane.f32.xlu0 %v1422
    %v1424 = vpop.xlane.xlu0 %1423
    %v1425 = vsel %vm67, %v1403, 0.0
    %1426 = vadd.xlane.f32.xlu0 %v1425
    %v1427 = vpop.xlane.xlu0 %1426
    %v1428 = vld [vmem:[%s12] sm:$0xff]
    %vm1429 = vcmask 523264
    %v1431 = vsel %vm1429, %v1428, 0
    %1433 = vmatprep.subr.mxu0 0.0
    %1434 = vmatpush1.msra.mxu0 0.0
    %1435 = vmatprep.subr.mxu0 0.0
    %1436 = vmatpush1.msra.mxu0 0.0
    %1437 = vmatprep.subr.mxu0 0.0
    %1438 = vmatpush1.msra.mxu0 0.0
    %1439 = vmatprep.subr.mxu0 0.0
    %1440 = vmatpush1.msra.mxu0 0.0
    %1441 = vmatprep.subr.mxu0 0.0
    %1442 = vmatpush1.msra.mxu0 0.0
    %1443 = vmatprep.subr.mxu0 0.0
    %1444 = vmatpush1.msra.mxu0 0.0
    %1445 = vmatprep.subr.mxu0 0.0
    %1446 = vmatpush1.msra.mxu0 0.0
    %1447 = vmatprep.subr.mxu0 0.0
    %1448 = vmatpush1.msra.mxu0 0.0
    %1449 = vmatprep.subr.mxu0 0.0
    %1450 = vmatpush1.msra.mxu0 %v1395
    %1451 = vmatprep.subr.mxu0 0.0
    %1452 = vmatpush1.msra.mxu0 %v1392
    %1453 = vmatprep.subr.mxu0 0.0
    %1454 = vmatpush1.msra.mxu0 %v1389
    %1455 = vmatprep.subr.mxu0 0.0
    %1456 = vmatpush1.msra.mxu0 %v1386
    %1457 = vmatprep.subr.mxu0 0.0
    %1458 = vmatpush1.msra.mxu0 %v1383
    %1459 = vmatprep.subr.mxu0 0.0
    %1460 = vmatpush1.msra.mxu0 %v1380
    %1461 = vmatprep.subr.mxu0 0.0
    %1462 = vmatpush1.msra.mxu0 %v1377
    %1463 = vmatprep.subr.mxu0 0.0
    %1464 = vmatpush1.msra.mxu0 %v1374
    %1465 = vmatprep.subr.mxu0 0.0
    %1466 = vmatpush2.msra.mxu0 0.0
    %1467 = vmatprep.subr.mxu0 0.0
    %1468 = vmatpush2.msra.mxu0 0.0
    %1469 = vmatprep.subr.mxu0 0.0
    %1470 = vmatpush2.msra.mxu0 0.0
    %1471 = vmatprep.subr.mxu0 0.0
    %1472 = vmatpush2.msra.mxu0 0.0
    %1473 = vmatprep.subr.mxu0 0.0
    %1474 = vmatpush2.msra.mxu0 0.0
    %1475 = vmatprep.subr.mxu0 0.0
    %1476 = vmatpush2.msra.mxu0 0.0
    %1477 = vmatprep.subr.mxu0 0.0
    %1478 = vmatpush2.msra.mxu0 0.0
    %1479 = vmatprep.subr.mxu0 0.0
    %1480 = vmatpush2.msra.mxu0 0.0
    %1481 = vmatprep.subr.mxu0 0.0
    %1482 = vmatpush2.msra.mxu0 0.0
    %1483 = vmatprep.subr.mxu0 0.0
    %1484 = vmatpush2.msra.mxu0 0.0
    %1485 = vmatprep.subr.mxu0 0.0
    %1486 = vmatpush2.msra.mxu0 0.0
    %1487 = vmatprep.subr.mxu0 0.0
    %1488 = vmatpush2.msra.mxu0 0.0
    %1489 = vmatprep.subr.mxu0 0.0
    %1490 = vmatpush2.msra.mxu0 0.0
    %1491 = vmatprep.subr.mxu0 0.0
    %1492 = vmatpush2.msra.mxu0 0.0
    %1493 = vmatprep.subr.mxu0 0.0
    %1494 = vmatpush2.msra.mxu0 0.0
    %1495 = vmatprep.subr.mxu0 0.0
    %1496 = vmatpush2.msra.mxu0 0.0
    %1497 = vmatprep.mubr.f32.mxu0 0.0
    %1498 = vmatmul.mubr.f32.gmra.mxu0 %v1431
    %v1499 = vpop.f32.mrf.mxu0
    %v1500 = vadd.f32 0.0, %v1499
    %v1501 = vpop.f32.mrf.mxu0
    %1502 = vdwg.mxu0
    %1503 = vmatprep.subr.mxu0 0.0
    %1504 = vmatpush1.msra.mxu0 0.0
    %1505 = vmatprep.subr.mxu0 0.0
    %1506 = vmatpush1.msra.mxu0 0.0
    %1507 = vmatprep.subr.mxu0 0.0
    %1508 = vmatpush1.msra.mxu0 0.0
    %1509 = vmatprep.subr.mxu0 0.0
    %1510 = vmatpush1.msra.mxu0 0.0
    %1511 = vmatprep.subr.mxu0 0.0
    %1512 = vmatpush1.msra.mxu0 0.0
    %1513 = vmatprep.subr.mxu0 0.0
    %1514 = vmatpush1.msra.mxu0 0.0
    %1515 = vmatprep.subr.mxu0 0.0
    %1516 = vmatpush1.msra.mxu0 0.0
    %1517 = vmatprep.subr.mxu0 0.0
    %1518 = vmatpush1.msra.mxu0 0.0
    %1519 = vmatprep.subr.mxu0 0.0
    %1520 = vmatpush1.msra.mxu0 %v1427
    %1521 = vmatprep.subr.mxu0 0.0
    %1522 = vmatpush1.msra.mxu0 %v1424
    %1523 = vmatprep.subr.mxu0 0.0
    %1524 = vmatpush1.msra.mxu0 %v1421
    %1525 = vmatprep.subr.mxu0 0.0
    %1526 = vmatpush1.msra.mxu0 %v1418
    %1527 = vmatprep.subr.mxu0 0.0
    %1528 = vmatpush1.msra.mxu0 %v1415
    %1529 = vmatprep.subr.mxu0 0.0
    %1530 = vmatpush1.msra.mxu0 %v1412
    %1531 = vmatprep.subr.mxu0 0.0
    %1532 = vmatpush1.msra.mxu0 %v1409
    %1533 = vmatprep.subr.mxu0 0.0
    %1534 = vmatpush1.msra.mxu0 %v1406
    %1535 = vmatprep.subr.mxu0 0.0
    %1536 = vmatpush2.msra.mxu0 0.0
    %1537 = vmatprep.subr.mxu0 0.0
    %1538 = vmatpush2.msra.mxu0 0.0
    %1539 = vmatprep.subr.mxu0 0.0
    %1540 = vmatpush2.msra.mxu0 0.0
    %1541 = vmatprep.subr.mxu0 0.0
    %1542 = vmatpush2.msra.mxu0 0.0
    %1543 = vmatprep.subr.mxu0 0.0
    %1544 = vmatpush2.msra.mxu0 0.0
    %1545 = vmatprep.subr.mxu0 0.0
    %1546 = vmatpush2.msra.mxu0 0.0
    %1547 = vmatprep.subr.mxu0 0.0
    %1548 = vmatpush2.msra.mxu0 0.0
    %1549 = vmatprep.subr.mxu0 0.0
    %1550 = vmatpush2.msra.mxu0 0.0
    %1551 = vmatprep.subr.mxu0 0.0
    %1552 = vmatpush2.msra.mxu0 0.0
    %1553 = vmatprep.subr.mxu0 0.0
    %1554 = vmatpush2.msra.mxu0 0.0
    %1555 = vmatprep.subr.mxu0 0.0
    %1556 = vmatpush2.msra.mxu0 0.0
    %1557 = vmatprep.subr.mxu0 0.0
    %1558 = vmatpush2.msra.mxu0 0.0
    %1559 = vmatprep.subr.mxu0 0.0
    %1560 = vmatpush2.msra.mxu0 0.0
    %1561 = vmatprep.subr.mxu0 0.0
    %1562 = vmatpush2.msra.mxu0 0.0
    %1563 = vmatprep.subr.mxu0 0.0
    %1564 = vmatpush2.msra.mxu0 0.0
    %1565 = vmatprep.subr.mxu0 0.0
    %1566 = vmatpush2.msra.mxu0 0.0
    %1567 = vmatprep.mubr.f32.mxu0 0.0
    %1568 = vmatmul.mubr.f32.gmra.mxu0 %v1431
    %v1569 = vpop.f32.mrf.mxu0
    %v1570 = vadd.f32 0.0, %v1569
    %v1571 = vpop.f32.mrf.mxu0
    %1572 = vdwg.mxu0
    %v1573 = vmul.f32 %v1500, %v1500
    %v1574 = vsub.f32 %v1570, %v1573
    %v1575 = vadd.f32 %v1574, 1e-05
    %v1576 = vrsqrt.pop %v1575
    %v1577 = vld [vmem:[%s10] sm:$0xff]
    %v1578 = vmul.f32 %v1577, %v1576
    %v1579 = vld [vmem:[%s11] sm:$0xff]
    %v1580 = vmul.f32 %v1500, %v1578
    %v1581 = vsub.f32 %v1579, %v1580
    %v1582 = vld [vmem:[%s13] sm:$0xff]
    %v1583 = vld [vmem:[%s13 + $0x8] sm:$0xff]
    %v1584 = vld [vmem:[%s13 + $0x10] sm:$0xff]
    %v1585 = vld [vmem:[%s13 + $0x18] sm:$0xff]
    %v1586 = vld [vmem:[%s13 + $0x20] sm:$0xff]
    %v1587 = vld [vmem:[%s13 + $0x28] sm:$0xff]
    %v1588 = vld [vmem:[%s13 + $0x30] sm:$0xff]
    %v1589 = vld [vmem:[%s13 + $0x38] sm:$0xff]
    %vm1590 = vcmask 64512
    %v1592 = vsel %vm1590, %v1582, 0
    %v1595 = vsel %vm1590, %v1583, 0
    %v1598 = vsel %vm1590, %v1584, 0
    %v1601 = vsel %vm1590, %v1585, 0
    %v1604 = vsel %vm1590, %v1586, 0
    %v1607 = vsel %vm1590, %v1587, 0
    %v1610 = vsel %vm1590, %v1588, 0
    %v1613 = vsel %vm1590, %v1589, 0
    %1615 = vmatprep.subr.mxu0 0.0
    %1616 = vmatpush1.msra.mxu0 0.0
    %1617 = vmatprep.subr.mxu0 0.0
    %1618 = vmatpush1.msra.mxu0 0.0
    %1619 = vmatprep.subr.mxu0 0.0
    %1620 = vmatpush1.msra.mxu0 0.0
    %1621 = vmatprep.subr.mxu0 0.0
    %1622 = vmatpush1.msra.mxu0 0.0
    %1623 = vmatprep.subr.mxu0 0.0
    %1624 = vmatpush1.msra.mxu0 0.0
    %1625 = vmatprep.subr.mxu0 0.0
    %1626 = vmatpush1.msra.mxu0 0.0
    %1627 = vmatprep.subr.mxu0 0.0
    %1628 = vmatpush1.msra.mxu0 0.0
    %1629 = vmatprep.subr.mxu0 0.0
    %1630 = vmatpush1.msra.mxu0 0.0
    %1631 = vmatprep.subr.mxu0 0.0
    %1632 = vmatpush1.msra.mxu0 0.0
    %1633 = vmatprep.subr.mxu0 0.0
    %1634 = vmatpush1.msra.mxu0 0.0
    %1635 = vmatprep.subr.mxu0 0.0
    %1636 = vmatpush1.msra.mxu0 0.0
    %1637 = vmatprep.subr.mxu0 0.0
    %1638 = vmatpush1.msra.mxu0 0.0
    %1639 = vmatprep.subr.mxu0 0.0
    %1640 = vmatpush1.msra.mxu0 0.0
    %1641 = vmatprep.subr.mxu0 0.0
    %1642 = vmatpush1.msra.mxu0 0.0
    %1643 = vmatprep.subr.mxu0 0.0
    %1644 = vmatpush1.msra.mxu0 0.0
    %1645 = vmatprep.subr.mxu0 0.0
    %1646 = vmatpush1.msra.mxu0 %v1578
    %1647 = vmatprep.subr.mxu0 0.0
    %1648 = vmatpush2.msra.mxu0 0.0
    %1649 = vmatprep.subr.mxu0 0.0
    %1650 = vmatpush2.msra.mxu0 0.0
    %1651 = vmatprep.subr.mxu0 0.0
    %1652 = vmatpush2.msra.mxu0 0.0
    %1653 = vmatprep.subr.mxu0 0.0
    %1654 = vmatpush2.msra.mxu0 0.0
    %1655 = vmatprep.subr.mxu0 0.0
    %1656 = vmatpush2.msra.mxu0 0.0
    %1657 = vmatprep.subr.mxu0 0.0
    %1658 = vmatpush2.msra.mxu0 0.0
    %1659 = vmatprep.subr.mxu0 0.0
    %1660 = vmatpush2.msra.mxu0 0.0
    %1661 = vmatprep.subr.mxu0 0.0
    %1662 = vmatpush2.msra.mxu0 0.0
    %1663 = vmatprep.subr.mxu0 0.0
    %1664 = vmatpush2.msra.mxu0 0.0
    %1665 = vmatprep.subr.mxu0 0.0
    %1666 = vmatpush2.msra.mxu0 0.0
    %1667 = vmatprep.subr.mxu0 0.0
    %1668 = vmatpush2.msra.mxu0 0.0
    %1669 = vmatprep.subr.mxu0 0.0
    %1670 = vmatpush2.msra.mxu0 0.0
    %1671 = vmatprep.subr.mxu0 0.0
    %1672 = vmatpush2.msra.mxu0 0.0
    %1673 = vmatprep.subr.mxu0 0.0
    %1674 = vmatpush2.msra.mxu0 0.0
    %1675 = vmatprep.subr.mxu0 0.0
    %1676 = vmatpush2.msra.mxu0 0.0
    %1677 = vmatprep.subr.mxu0 0.0
    %1678 = vmatpush2.msra.mxu0 0.0
    %1679 = vmatprep.mubr.f32.mxu0 0.0
    %1680 = vmatmul.mubr.f32.gmra.mxu0 %v1592
    %v1681 = vpop.f32.mrf.mxu0
    %v1682 = vadd.f32 0.0, %v1681
    %v1683 = vpop.f32.mrf.mxu0
    %1684 = vmatprep.mubr.f32.mxu0 0.0
    %1685 = vmatmul.mubr.f32.gmra.mxu0 %v1595
    %v1686 = vpop.f32.mrf.mxu0
    %v1687 = vadd.f32 0.0, %v1686
    %v1688 = vpop.f32.mrf.mxu0
    %1689 = vmatprep.mubr.f32.mxu0 0.0
    %1690 = vmatmul.mubr.f32.gmra.mxu0 %v1598
    %v1691 = vpop.f32.mrf.mxu0
    %v1692 = vadd.f32 0.0, %v1691
    %v1693 = vpop.f32.mrf.mxu0
    %1694 = vmatprep.mubr.f32.mxu0 0.0
    %1695 = vmatmul.mubr.f32.gmra.mxu0 %v1601
    %v1696 = vpop.f32.mrf.mxu0
    %v1697 = vadd.f32 0.0, %v1696
    %v1698 = vpop.f32.mrf.mxu0
    %1699 = vmatprep.mubr.f32.mxu0 0.0
    %1700 = vmatmul.mubr.f32.gmra.mxu0 %v1604
    %v1701 = vpop.f32.mrf.mxu0
    %v1702 = vadd.f32 0.0, %v1701
    %v1703 = vpop.f32.mrf.mxu0
    %1704 = vmatprep.mubr.f32.mxu0 0.0
    %1705 = vmatmul.mubr.f32.gmra.mxu0 %v1607
    %v1706 = vpop.f32.mrf.mxu0
    %v1707 = vadd.f32 0.0, %v1706
    %v1708 = vpop.f32.mrf.mxu0
    %1709 = vmatprep.mubr.f32.mxu0 0.0
    %1710 = vmatmul.mubr.f32.gmra.mxu0 %v1610
    %v1711 = vpop.f32.mrf.mxu0
    %v1712 = vadd.f32 0.0, %v1711
    %v1713 = vpop.f32.mrf.mxu0
    %1714 = vmatprep.mubr.f32.mxu0 0.0
    %1715 = vmatmul.mubr.f32.gmra.mxu0 %v1613
    %v1716 = vpop.f32.mrf.mxu0
    %v1717 = vadd.f32 0.0, %v1716
    %v1718 = vpop.f32.mrf.mxu0
    %1719 = vdwg.mxu0
    %1720 = vmatprep.subr.mxu0 0.0
    %1721 = vmatpush1.msra.mxu0 0.0
    %1722 = vmatprep.subr.mxu0 0.0
    %1723 = vmatpush1.msra.mxu0 0.0
    %1724 = vmatprep.subr.mxu0 0.0
    %1725 = vmatpush1.msra.mxu0 0.0
    %1726 = vmatprep.subr.mxu0 0.0
    %1727 = vmatpush1.msra.mxu0 0.0
    %1728 = vmatprep.subr.mxu0 0.0
    %1729 = vmatpush1.msra.mxu0 0.0
    %1730 = vmatprep.subr.mxu0 0.0
    %1731 = vmatpush1.msra.mxu0 0.0
    %1732 = vmatprep.subr.mxu0 0.0
    %1733 = vmatpush1.msra.mxu0 0.0
    %1734 = vmatprep.subr.mxu0 0.0
    %1735 = vmatpush1.msra.mxu0 0.0
    %1736 = vmatprep.subr.mxu0 0.0
    %1737 = vmatpush1.msra.mxu0 0.0
    %1738 = vmatprep.subr.mxu0 0.0
    %1739 = vmatpush1.msra.mxu0 0.0
    %1740 = vmatprep.subr.mxu0 0.0
    %1741 = vmatpush1.msra.mxu0 0.0
    %1742 = vmatprep.subr.mxu0 0.0
    %1743 = vmatpush1.msra.mxu0 0.0
    %1744 = vmatprep.subr.mxu0 0.0
    %1745 = vmatpush1.msra.mxu0 0.0
    %1746 = vmatprep.subr.mxu0 0.0
    %1747 = vmatpush1.msra.mxu0 0.0
    %1748 = vmatprep.subr.mxu0 0.0
    %1749 = vmatpush1.msra.mxu0 0.0
    %1750 = vmatprep.subr.mxu0 0.0
    %1751 = vmatpush1.msra.mxu0 %v1581
    %1752 = vmatprep.subr.mxu0 0.0
    %1753 = vmatpush2.msra.mxu0 0.0
    %1754 = vmatprep.subr.mxu0 0.0
    %1755 = vmatpush2.msra.mxu0 0.0
    %1756 = vmatprep.subr.mxu0 0.0
    %1757 = vmatpush2.msra.mxu0 0.0
    %1758 = vmatprep.subr.mxu0 0.0
    %1759 = vmatpush2.msra.mxu0 0.0
    %1760 = vmatprep.subr.mxu0 0.0
    %1761 = vmatpush2.msra.mxu0 0.0
    %1762 = vmatprep.subr.mxu0 0.0
    %1763 = vmatpush2.msra.mxu0 0.0
    %1764 = vmatprep.subr.mxu0 0.0
    %1765 = vmatpush2.msra.mxu0 0.0
    %1766 = vmatprep.subr.mxu0 0.0
    %1767 = vmatpush2.msra.mxu0 0.0
    %1768 = vmatprep.subr.mxu0 0.0
    %1769 = vmatpush2.msra.mxu0 0.0
    %1770 = vmatprep.subr.mxu0 0.0
    %1771 = vmatpush2.msra.mxu0 0.0
    %1772 = vmatprep.subr.mxu0 0.0
    %1773 = vmatpush2.msra.mxu0 0.0
    %1774 = vmatprep.subr.mxu0 0.0
    %1775 = vmatpush2.msra.mxu0 0.0
    %1776 = vmatprep.subr.mxu0 0.0
    %1777 = vmatpush2.msra.mxu0 0.0
    %1778 = vmatprep.subr.mxu0 0.0
    %1779 = vmatpush2.msra.mxu0 0.0
    %1780 = vmatprep.subr.mxu0 0.0
    %1781 = vmatpush2.msra.mxu0 0.0
    %1782 = vmatprep.subr.mxu0 0.0
    %1783 = vmatpush2.msra.mxu0 0.0
    %1784 = vmatprep.mubr.f32.mxu0 0.0
    %1785 = vmatmul.mubr.f32.gmra.mxu0 %v1592
    %v1786 = vpop.f32.mrf.mxu0
    %v1787 = vadd.f32 0.0, %v1786
    %v1788 = vpop.f32.mrf.mxu0
    %1789 = vmatprep.mubr.f32.mxu0 0.0
    %1790 = vmatmul.mubr.f32.gmra.mxu0 %v1595
    %v1791 = vpop.f32.mrf.mxu0
    %v1792 = vadd.f32 0.0, %v1791
    %v1793 = vpop.f32.mrf.mxu0
    %1794 = vmatprep.mubr.f32.mxu0 0.0
    %1795 = vmatmul.mubr.f32.gmra.mxu0 %v1598
    %v1796 = vpop.f32.mrf.mxu0
    %v1797 = vadd.f32 0.0, %v1796
    %v1798 = vpop.f32.mrf.mxu0
    %1799 = vmatprep.mubr.f32.mxu0 0.0
    %1800 = vmatmul.mubr.f32.gmra.mxu0 %v1601
    %v1801 = vpop.f32.mrf.mxu0
    %v1802 = vadd.f32 0.0, %v1801
    %v1803 = vpop.f32.mrf.mxu0
    %1804 = vmatprep.mubr.f32.mxu0 0.0
    %1805 = vmatmul.mubr.f32.gmra.mxu0 %v1604
    %v1806 = vpop.f32.mrf.mxu0
    %v1807 = vadd.f32 0.0, %v1806
    %v1808 = vpop.f32.mrf.mxu0
    %1809 = vmatprep.mubr.f32.mxu0 0.0
    %1810 = vmatmul.mubr.f32.gmra.mxu0 %v1607
    %v1811 = vpop.f32.mrf.mxu0
    %v1812 = vadd.f32 0.0, %v1811
    %v1813 = vpop.f32.mrf.mxu0
    %1814 = vmatprep.mubr.f32.mxu0 0.0
    %1815 = vmatmul.mubr.f32.gmra.mxu0 %v1610
    %v1816 = vpop.f32.mrf.mxu0
    %v1817 = vadd.f32 0.0, %v1816
    %v1818 = vpop.f32.mrf.mxu0
    %1819 = vmatprep.mubr.f32.mxu0 0.0
    %1820 = vmatmul.mubr.f32.gmra.mxu0 %v1613
    %v1821 = vpop.f32.mrf.mxu0
    %v1822 = vadd.f32 0.0, %v1821
    %v1823 = vpop.f32.mrf.mxu0
    %1824 = vdwg.mxu0
    %1826 = vset.pattern.permute.xlu0 0
    %1827 = vperm.xlu0 %1826, %v1682
    %v1828 = vpop.permute.xlu0 %1827
    %1831 = vset.pattern.permute.xlu0 0
    %1832 = vperm.xlu0 %1831, %v1687
    %v1833 = vpop.permute.xlu0 %1832
    %1836 = vset.pattern.permute.xlu0 0
    %1837 = vperm.xlu0 %1836, %v1692
    %v1838 = vpop.permute.xlu0 %1837
    %1841 = vset.pattern.permute.xlu0 0
    %1842 = vperm.xlu0 %1841, %v1697
    %v1843 = vpop.permute.xlu0 %1842
    %1846 = vset.pattern.permute.xlu0 0
    %1847 = vperm.xlu0 %1846, %v1702
    %v1848 = vpop.permute.xlu0 %1847
    %1851 = vset.pattern.permute.xlu0 0
    %1852 = vperm.xlu0 %1851, %v1707
    %v1853 = vpop.permute.xlu0 %1852
    %1856 = vset.pattern.permute.xlu0 0
    %1857 = vperm.xlu0 %1856, %v1712
    %v1858 = vpop.permute.xlu0 %1857
    %1861 = vset.pattern.permute.xlu0 0
    %1862 = vperm.xlu0 %1861, %v1717
    %v1863 = vpop.permute.xlu0 %1862
    %v1865 = vmul.f32 %v1334, %v1828
    %v1866 = vmul.f32 %v1339, %v1833
    %v1867 = vmul.f32 %v1344, %v1838
    %v1868 = vmul.f32 %v1349, %v1843
    %v1869 = vmul.f32 %v1354, %v1848
    %v1870 = vmul.f32 %v1359, %v1853
    %v1871 = vmul.f32 %v1364, %v1858
    %v1872 = vmul.f32 %v1369, %v1863
    %1874 = vset.pattern.permute.xlu0 0
    %1875 = vperm.xlu0 %1874, %v1787
    %v1876 = vpop.permute.xlu0 %1875
    %1879 = vset.pattern.permute.xlu0 0
    %1880 = vperm.xlu0 %1879, %v1792
    %v1881 = vpop.permute.xlu0 %1880
    %1884 = vset.pattern.permute.xlu0 0
    %1885 = vperm.xlu0 %1884, %v1797
    %v1886 = vpop.permute.xlu0 %1885
    %1889 = vset.pattern.permute.xlu0 0
    %1890 = vperm.xlu0 %1889, %v1802
    %v1891 = vpop.permute.xlu0 %1890
    %1894 = vset.pattern.permute.xlu0 0
    %1895 = vperm.xlu0 %1894, %v1807
    %v1896 = vpop.permute.xlu0 %1895
    %1899 = vset.pattern.permute.xlu0 0
    %1900 = vperm.xlu0 %1899, %v1812
    %v1901 = vpop.permute.xlu0 %1900
    %1904 = vset.pattern.permute.xlu0 0
    %1905 = vperm.xlu0 %1904, %v1817
    %v1906 = vpop.permute.xlu0 %1905
    %1909 = vset.pattern.permute.xlu0 0
    %1910 = vperm.xlu0 %1909, %v1822
    %v1911 = vpop.permute.xlu0 %1910
    %v1913 = vadd.f32 %v1865, %v1876
    %v1914 = vadd.f32 %v1866, %v1881
    %v1915 = vadd.f32 %v1867, %v1886
    %v1916 = vadd.f32 %v1868, %v1891
    %v1917 = vadd.f32 %v1869, %v1896
    %v1918 = vadd.f32 %v1870, %v1901
    %v1919 = vadd.f32 %v1871, %v1906
    %v1920 = vadd.f32 %v1872, %v1911
    %v1921 = vmax.f32 %v1913, 0.0
    %v1922 = vmax.f32 %v1914, 0.0
    %v1923 = vmax.f32 %v1915, 0.0
    %v1924 = vmax.f32 %v1916, 0.0
    %v1925 = vmax.f32 %v1917, 0.0
    %v1926 = vmax.f32 %v1918, 0.0
    %v1927 = vmax.f32 %v1919, 0.0
    %v1928 = vmax.f32 %v1920, 0.0
    %v1929 = vld [vmem:[%s9] sm:$0xff]
    %v1930 = vld [vmem:[%s9 + $0x8] sm:$0xff]
    %v1931 = vld [vmem:[%s9 + $0x10] sm:$0xff]
    %v1932 = vld [vmem:[%s9 + $0x18] sm:$0xff]
    %v1934 = vsel %vm67, %v1921, 0
    %v1937 = vsel %vm67, %v1922, 0
    %v1940 = vsel %vm67, %v1923, 0
    %v1943 = vsel %vm67, %v1924, 0
    %v1946 = vsel %vm67, %v1925, 0
    %v1949 = vsel %vm67, %v1926, 0
    %v1952 = vsel %vm67, %v1927, 0
    %v1955 = vsel %vm67, %v1928, 0
    %1957 = vmatprep.subr.mxu0 0.0
    %1958 = vmatpush1.msra.mxu0 0.0
    %1959 = vmatprep.subr.mxu0 0.0
    %1960 = vmatpush1.msra.mxu0 0.0
    %1961 = vmatprep.subr.mxu0 0.0
    %1962 = vmatpush1.msra.mxu0 0.0
    %1963 = vmatprep.subr.mxu0 0.0
    %1964 = vmatpush1.msra.mxu0 0.0
    %1965 = vmatprep.subr.mxu0 0.0
    %1966 = vmatpush1.msra.mxu0 0.0
    %1967 = vmatprep.subr.mxu0 0.0
    %1968 = vmatpush1.msra.mxu0 0.0
    %1969 = vmatprep.subr.mxu0 0.0
    %1970 = vmatpush1.msra.mxu0 0.0
    %1971 = vmatprep.subr.mxu0 0.0
    %1972 = vmatpush1.msra.mxu0 0.0
    %1973 = vmatprep.subr.mxu0 0.0
    %1974 = vmatpush1.msra.mxu0 0.0
    %1975 = vmatprep.subr.mxu0 0.0
    %1976 = vmatpush1.msra.mxu0 0.0
    %1977 = vmatprep.subr.mxu0 0.0
    %1978 = vmatpush1.msra.mxu0 0.0
    %1979 = vmatprep.subr.mxu0 0.0
    %1980 = vmatpush1.msra.mxu0 0.0
    %1981 = vmatprep.subr.mxu0 0.0
    %1982 = vmatpush1.msra.mxu0 %v1932
    %1983 = vmatprep.subr.mxu0 0.0
    %1984 = vmatpush1.msra.mxu0 %v1931
    %1985 = vmatprep.subr.mxu0 0.0
    %1986 = vmatpush1.msra.mxu0 %v1930
    %1987 = vmatprep.subr.mxu0 0.0
    %1988 = vmatpush1.msra.mxu0 %v1929
    %1989 = vmatprep.subr.mxu0 0.0
    %1990 = vmatpush2.msra.mxu0 0.0
    %1991 = vmatprep.subr.mxu0 0.0
    %1992 = vmatpush2.msra.mxu0 0.0
    %1993 = vmatprep.subr.mxu0 0.0
    %1994 = vmatpush2.msra.mxu0 0.0
    %1995 = vmatprep.subr.mxu0 0.0
    %1996 = vmatpush2.msra.mxu0 0.0
    %1997 = vmatprep.subr.mxu0 0.0
    %1998 = vmatpush2.msra.mxu0 0.0
    %1999 = vmatprep.subr.mxu0 0.0
    %2000 = vmatpush2.msra.mxu0 0.0
    %2001 = vmatprep.subr.mxu0 0.0
    %2002 = vmatpush2.msra.mxu0 0.0
    %2003 = vmatprep.subr.mxu0 0.0
    %2004 = vmatpush2.msra.mxu0 0.0
    %2005 = vmatprep.subr.mxu0 0.0
    %2006 = vmatpush2.msra.mxu0 0.0
    %2007 = vmatprep.subr.mxu0 0.0
    %2008 = vmatpush2.msra.mxu0 0.0
    %2009 = vmatprep.subr.mxu0 0.0
    %2010 = vmatpush2.msra.mxu0 0.0
    %2011 = vmatprep.subr.mxu0 0.0
    %2012 = vmatpush2.msra.mxu0 0.0
    %2013 = vmatprep.subr.mxu0 0.0
    %2014 = vmatpush2.msra.mxu0 0.0
    %2015 = vmatprep.subr.mxu0 0.0
    %2016 = vmatpush2.msra.mxu0 0.0
    %2017 = vmatprep.subr.mxu0 0.0
    %2018 = vmatpush2.msra.mxu0 0.0
    %2019 = vmatprep.subr.mxu0 0.0
    %2020 = vmatpush2.msra.mxu0 0.0
    %2021 = vmatprep.mubr.f32.mxu0 0.0
    %2022 = vmatmul.mubr.f32.gmra.mxu0 %v1934
    %v2023 = vpop.f32.mrf.mxu0
    %v2024 = vadd.f32 0.0, %v2023
    %v2025 = vpop.f32.mrf.mxu0
    %2026 = vmatprep.mubr.f32.mxu0 0.0
    %2027 = vmatmul.mubr.f32.gmra.mxu0 %v1937
    %v2028 = vpop.f32.mrf.mxu0
    %v2029 = vadd.f32 0.0, %v2028
    %v2030 = vpop.f32.mrf.mxu0
    %2031 = vmatprep.mubr.f32.mxu0 0.0
    %2032 = vmatmul.mubr.f32.gmra.mxu0 %v1940
    %v2033 = vpop.f32.mrf.mxu0
    %v2034 = vadd.f32 0.0, %v2033
    %v2035 = vpop.f32.mrf.mxu0
    %2036 = vmatprep.mubr.f32.mxu0 0.0
    %2037 = vmatmul.mubr.f32.gmra.mxu0 %v1943
    %v2038 = vpop.f32.mrf.mxu0
    %v2039 = vadd.f32 0.0, %v2038
    %v2040 = vpop.f32.mrf.mxu0
    %2041 = vmatprep.mubr.f32.mxu0 0.0
    %2042 = vmatmul.mubr.f32.gmra.mxu0 %v1946
    %v2043 = vpop.f32.mrf.mxu0
    %v2044 = vadd.f32 0.0, %v2043
    %v2045 = vpop.f32.mrf.mxu0
    %2046 = vmatprep.mubr.f32.mxu0 0.0
    %2047 = vmatmul.mubr.f32.gmra.mxu0 %v1949
    %v2048 = vpop.f32.mrf.mxu0
    %v2049 = vadd.f32 0.0, %v2048
    %v2050 = vpop.f32.mrf.mxu0
    %2051 = vmatprep.mubr.f32.mxu0 0.0
    %2052 = vmatmul.mubr.f32.gmra.mxu0 %v1952
    %v2053 = vpop.f32.mrf.mxu0
    %v2054 = vadd.f32 0.0, %v2053
    %v2055 = vpop.f32.mrf.mxu0
    %2056 = vmatprep.mubr.f32.mxu0 0.0
    %2057 = vmatmul.mubr.f32.gmra.mxu0 %v1955
    %v2058 = vpop.f32.mrf.mxu0
    %v2059 = vadd.f32 0.0, %v2058
    %v2060 = vpop.f32.mrf.mxu0
    %2061 = vdwg.mxu0
    %v2062 = vmax.f32 %v2024, %v2029
    %v2063 = vmax.f32 %v2062, %v2034
    %v2064 = vmax.f32 %v2063, %v2039
    %v2065 = vmax.f32 %v2064, %v2044
    %v2066 = vmax.f32 %v2065, %v2049
    %v2067 = vmax.f32 %v2066, %v2054
    %v2068 = vmax.f32 %v2067, %v2059
    %v2069 = vsub.f32 %v2024, %v2068
    %v2070 = vmul.f32 %v2069, 1.442695
    %v2071 = vpow.pop %v2070
    %v2072 = vsub.f32 %v2029, %v2068
    %v2073 = vmul.f32 %v2072, 1.442695
    %v2074 = vpow.pop %v2073
    %v2075 = vsub.f32 %v2034, %v2068
    %v2076 = vmul.f32 %v2075, 1.442695
    %v2077 = vpow.pop %v2076
    %v2078 = vsub.f32 %v2039, %v2068
    %v2079 = vmul.f32 %v2078, 1.442695
    %v2080 = vpow.pop %v2079
    %v2081 = vsub.f32 %v2044, %v2068
    %v2082 = vmul.f32 %v2081, 1.442695
    %v2083 = vpow.pop %v2082
    %v2084 = vsub.f32 %v2049, %v2068
    %v2085 = vmul.f32 %v2084, 1.442695
    %v2086 = vpow.pop %v2085
    %v2087 = vsub.f32 %v2054, %v2068
    %v2088 = vmul.f32 %v2087, 1.442695
    %v2089 = vpow.pop %v2088
    %v2090 = vsub.f32 %v2059, %v2068
    %v2091 = vmul.f32 %v2090, 1.442695
    %v2092 = vpow.pop %v2091
    %v2093 = vadd.f32 %v2071, %v2074
    %v2094 = vadd.f32 %v2093, %v2077
    %v2095 = vadd.f32 %v2094, %v2080
    %v2096 = vadd.f32 %v2095, %v2083
    %v2097 = vadd.f32 %v2096, %v2086
    %v2098 = vadd.f32 %v2097, %v2089
    %v2099 = vadd.f32 %v2098, %v2092
    %v2100 = vrcp.pop %v2099
    %v2101 = vmul.f32 %v2071, %v2100
    %v2102 = vld [vmem:[#allocation3] sm:$0xff]
    %2104 = vset.pattern.permute.xlu0 0
    %2105 = vperm.xlu0 %2104, %v2101
    %v2106 = vpop.permute.xlu0 %2105
    %v2108 = vmul.f32 %v2106, %v2102
    %v2109 = vmul.f32 %v2074, %v2100
    %v2110 = vld [vmem:[#allocation3 + $0x8] sm:$0xff]
    %2112 = vset.pattern.permute.xlu0 0
    %2113 = vperm.xlu0 %2112, %v2109
    %v2114 = vpop.permute.xlu0 %2113
    %v2116 = vmul.f32 %v2114, %v2110
    %v2117 = vadd.f32 %v2108, %v2116
    %v2118 = vmul.f32 %v2077, %v2100
    %v2119 = vld [vmem:[#allocation3 + $0x10] sm:$0xff]
    %2121 = vset.pattern.permute.xlu0 0
    %2122 = vperm.xlu0 %2121, %v2118
    %v2123 = vpop.permute.xlu0 %2122
    %v2125 = vmul.f32 %v2123, %v2119
    %v2126 = vadd.f32 %v2117, %v2125
    %v2127 = vmul.f32 %v2080, %v2100
    %v2128 = vld [vmem:[#allocation3 + $0x18] sm:$0xff]
    %2130 = vset.pattern.permute.xlu0 0
    %2131 = vperm.xlu0 %2130, %v2127
    %v2132 = vpop.permute.xlu0 %2131
    %v2134 = vmul.f32 %v2132, %v2128
    %v2135 = vadd.f32 %v2126, %v2134
    %v2136 = vmul.f32 %v2083, %v2100
    %v2137 = vld [vmem:[#allocation3 + $0x20] sm:$0xff]
    %2139 = vset.pattern.permute.xlu0 0
    %2140 = vperm.xlu0 %2139, %v2136
    %v2141 = vpop.permute.xlu0 %2140
    %v2143 = vmul.f32 %v2141, %v2137
    %v2144 = vadd.f32 %v2135, %v2143
    %v2145 = vmul.f32 %v2086, %v2100
    %v2146 = vld [vmem:[#allocation3 + $0x28] sm:$0xff]
    %2148 = vset.pattern.permute.xlu0 0
    %2149 = vperm.xlu0 %2148, %v2145
    %v2150 = vpop.permute.xlu0 %2149
    %v2152 = vmul.f32 %v2150, %v2146
    %v2153 = vadd.f32 %v2144, %v2152
    %v2154 = vmul.f32 %v2089, %v2100
    %v2155 = vld [vmem:[#allocation3 + $0x30] sm:$0xff]
    %2157 = vset.pattern.permute.xlu0 0
    %2158 = vperm.xlu0 %2157, %v2154
    %v2159 = vpop.permute.xlu0 %2158
    %v2161 = vmul.f32 %v2159, %v2155
    %v2162 = vadd.f32 %v2153, %v2161
    %v2163 = vmul.f32 %v2092, %v2100
    %2165 = vset.pattern.permute.xlu0 0
    %2166 = vperm.xlu0 %2165, %v2163
    %v2167 = vpop.permute.xlu0 %2166
    %v2169 = vmul.f32 %v2167, %v1231
    %v2170 = vadd.f32 %v2162, %v2169
    %2171 = vst.msk [vmem:[#allocation4] sm:$0xff] %vm67, %v2170
    // Predicated region
    $region58: #{tpu_custom_call.1} parent=1 // pred_check
      _
    $region59: #{tpu_custom_call.1} parent=1 // pred_check_branch
      %2173 = sbr.rel (0) target = $region61
    $region60: #{tpu_custom_call.1} parent=1 // pred_region
      %s2175 = ssub.s32 128, 128
      %2176 = vsyncadd [#allocation5], %s2175
      %s2178 = sshll.u32 [#allocation4], 4
      %s2179 = int_to_ptr.vmem [resolvable:$true] %s2178
      %2181 = dma.vmem_to_hbm [thread:$0]  %s2179, 128, %s14, [#allocation5]
    $region61: #{tpu_custom_call.1} parent=1 // pred_fallthru
      _
    // Predicated region
    $region62: #{tpu_custom_call.1} parent=1 // pred_check
      _
    $region63: #{tpu_custom_call.1} parent=1 // pred_check_branch
      %2183 = sbr.rel (0) target = $region65
    $region64: #{tpu_custom_call.1} parent=1 // pred_region
      %2184 = dma.done [#allocation5], 128
    $region65: #{tpu_custom_call.1} parent=1 // pred_fallthru
      _
    %2185 = vsyncpa [#allocation5], 1

</llo_original>
